<compile_context>
chip_gen: v7x
topology: tpu7x:2x2x1
jax: 0.10.0
libtpu: 0.0.40
codegen_flags: <defaults>
</compile_context>

<pallas_src>
import functools

import jax
import jax.numpy as jnp
from jax.experimental import pallas as pl
from jax.experimental.pallas import tpu as pltpu


def _rup(n, m):
    return ((n + m - 1) // m) * m


# -----------------------------------------------------------------------------
# Fused kernel: encoder -> reparameterize -> (T-1) x RK4 3/8-rule steps ->
# one batched block-diagonal decoder.
#   enc : h = tanh(x @ W_e1 + b_e1); [mu|var] = h @ [W_mu|W_var] + [b_mu|b_var]
#   node: f(z) = tanh(z @ W_n1 + b_n1) @ W_n2 + b_n2      (time-invariant)
#   dec : sigmoid(tanh(z @ W_d1 + b_d1) @ W_d2 + b_d2)    (batched over T)
# -----------------------------------------------------------------------------
def vae_node_fused_kernel(x_ref, eps_ref, ws_ref, dec_ref,
                          zmuvar_ref, pred_ref,
                          *, num_t, d_in, h_enc, z_dim, h_node,
                          dt, dt_3, dt_8,
                          r_e1, r_mv, r_n1, r_n2, r_b,
                          r_d1, r_d2, r_bd1, r_bd2):
    f32 = jnp.float32
    tz = num_t * z_dim              # lane width of the z_all carry
    ld = dec_ref.shape[1]           # lane width of the decoder slab / pred out

    x = x_ref[...]                  # (B, D_in)
    eps = eps_ref[...]              # (B, Z)
    ws = ws_ref[...]                # (rows, 128) small-weight slab (one DMA)

    # ---- static slices of the packed slab (one-time, off the RK4 chain) ----
    w_e1 = ws[r_e1:r_e1 + d_in, :h_enc]          # (D_in, H_ENC)
    b_e1 = ws[r_b + 0:r_b + 1, :h_enc]           # (1, H_ENC)
    w_mv = ws[r_mv:r_mv + h_enc, :]              # (H_ENC, 128); lanes >= 2Z are 0
    b_mv = ws[r_b + 1:r_b + 2, :]                # (1, 128);     lanes >= 2Z are 0
    w_n1 = ws[r_n1:r_n1 + z_dim, :h_node]        # (Z, H_NODE)   loop-resident
    b_n1 = ws[r_b + 2:r_b + 3, :h_node]
    w_n2 = ws[r_n2:r_n2 + h_node, :z_dim]        # (H_NODE, Z)   loop-resident
    b_n2 = ws[r_b + 3:r_b + 4, :z_dim]

    # ---- encoder + reparameterization trick ----
    h = jnp.tanh(jnp.dot(x, w_e1, preferred_element_type=f32) + b_e1)
    mv = jnp.dot(h, w_mv, preferred_element_type=f32) + b_mv      # (B, 128)
    zmuvar_ref[...] = mv                          # unmasked 128-lane store
    z_mu = mv[:, :z_dim]
    z_var = mv[:, z_dim:2 * z_dim]
    z = eps * jnp.exp(z_var * 0.5) + z_mu         # z0, (B, Z)

    # TODO(synk): w_n1/w_n2 could be parked in MXU staging registers across the
    # 4*(T-1) serial node evaluations via pltpu.matmul_push_rhs/matmul_acc_lhs.
    def node_f(zz):
        hh = jnp.tanh(jnp.dot(zz, w_n1, preferred_element_type=f32) + b_n1)
        return jnp.dot(hh, w_n2, preferred_element_type=f32) + b_n2

    # ---- fixed-grid RK4 (torchdiffeq 'rk4' == 3/8 rule), fully unrolled ----
    # Scalar constants folded; expressions re-associated so the k-dependencies
    # on the serial chain are minimal (the rest is VPU filler under the MXU).
    zs = [z]
    for _ in range(num_t - 1):
        k1 = node_f(z)
        a = dt_3 * k1
        k2 = node_f(z + a)                                    # z + dt*k1/3
        k3 = node_f((z - a) + dt * k2)                        # z + dt*(k2 - k1/3)
        k4 = node_f((z + dt * (k1 - k2)) + dt * k3)           # z + dt*(k1-k2+k3)
        z = (z + dt_8 * (k1 + 3.0 * (k2 + k3))) + dt_8 * k4
        zs.append(z)
    # Single 1-vreg-wide lane concat, after the serial chain has finished.
    z_all = zs[0] if num_t == 1 else jnp.concatenate(zs, axis=-1)   # (B, T*Z)

    # ---- batched block-diagonal decoder: two well-shaped matmuls ----
    wd1 = dec_ref[r_d1:r_d1 + tz, :]          # (T*Z, LD)  blockdiag(w_d1), 0-pad
    wd2 = dec_ref[r_d2:r_d2 + ld, :]          # (LD,  LD)  blockdiag(w_d2), 0-pad
    bd1 = dec_ref[r_bd1:r_bd1 + 1, :]         # (1, LD)    tiled b_d1
    bd2 = dec_ref[r_bd2:r_bd2 + 1, :]         # (1, LD)    tiled b_d2
    h_all = jnp.tanh(jnp.dot(z_all, wd1, preferred_element_type=f32) + bd1)
    pred_ref[...] = jax.nn.sigmoid(
        jnp.dot(h_all, wd2, preferred_element_type=f32) + bd2)


# -----------------------------------------------------------------------------
# One-time parameter packing (init): weight fusion, zero padding, block-diag
# decoder, bias rows.  Produces exactly two weight slabs (two input DMAs).
# NOTE: the packed decoder is tied to T = x.shape[0] because the original
# module uses ts_ode = linspace(0, 1, x.shape[0]).
# -----------------------------------------------------------------------------
def pack_params(params, num_t):
    f32 = jnp.float32
    w_e1, b_e1 = params["w_e1"].astype(f32), params["b_e1"].astype(f32)
    w_mu, b_mu = params["w_mu"].astype(f32), params["b_mu"].astype(f32)
    w_var, b_var = params["w_var"].astype(f32), params["b_var"].astype(f32)
    w_n1, b_n1 = params["w_n1"].astype(f32), params["b_n1"].astype(f32)
    w_n2, b_n2 = params["w_n2"].astype(f32), params["b_n2"].astype(f32)
    w_d1, b_d1 = params["w_d1"].astype(f32), params["b_d1"].astype(f32)
    w_d2, b_d2 = params["w_d2"].astype(f32), params["b_d2"].astype(f32)

    d_in, h_enc = w_e1.shape
    z_dim = w_mu.shape[1]
    h_node = w_n1.shape[1]
    h_dec = w_d1.shape[1]
    d_out = w_d2.shape[1]

    lanes = 128
    assert h_enc <= lanes and 2 * z_dim <= lanes and h_node <= lanes

    # ---- small-weight slab (rows, 128): every block starts at lane 0, row
    #      offsets rounded to sublane multiples of 8 ----
    r_e1 = 0
    r_mv = _rup(r_e1 + d_in, 8)
    r_n1 = _rup(r_mv + h_enc, 8)
    r_n2 = _rup(r_n1 + z_dim, 8)
    r_b = _rup(r_n2 + h_node, 8)
    n_rows = r_b + 8

    ws = jnp.zeros((n_rows, lanes), f32)
    ws = ws.at[r_e1:r_e1 + d_in, :h_enc].set(w_e1)
    ws = ws.at[r_mv:r_mv + h_enc, :2 * z_dim].set(
        jnp.concatenate([w_mu, w_var], axis=1))          # [W_mu | W_var]
    ws = ws.at[r_n1:r_n1 + z_dim, :h_node].set(w_n1)
    ws = ws.at[r_n2:r_n2 + h_node, :z_dim].set(w_n2)
    ws = ws.at[r_b + 0, :h_enc].set(b_e1[0])
    ws = ws.at[r_b + 1, :2 * z_dim].set(jnp.concatenate([b_mu, b_var], axis=1)[0])
    ws = ws.at[r_b + 2, :h_node].set(b_n1[0])
    ws = ws.at[r_b + 3, :z_dim].set(b_n2[0])

    # ---- block-diagonal decoder slab (rows, LD) ----
    tz, thd, tdo = num_t * z_dim, num_t * h_dec, num_t * d_out
    ld = _rup(max(thd, tdo), 128)          # lane-dense output width
    r_d1 = 0
    r_d2 = _rup(r_d1 + tz, 8)
    r_bd1 = _rup(r_d2 + ld, 8)
    r_bd2 = r_bd1 + 8
    n_rows_d = r_bd2 + 8

    def block_diag(w, reps):
        a, b = w.shape
        out = jnp.zeros((reps * a, reps * b), w.dtype)
        for t in range(reps):
            out = out.at[t * a:(t + 1) * a, t * b:(t + 1) * b].set(w)
        return out

    dec = jnp.zeros((n_rows_d, ld), f32)
    dec = dec.at[r_d1:r_d1 + tz, :thd].set(block_diag(w_d1, num_t))
    dec = dec.at[r_d2:r_d2 + thd, :tdo].set(block_diag(w_d2, num_t))
    dec = dec.at[r_bd1, :thd].set(jnp.tile(b_d1[0], num_t))
    dec = dec.at[r_bd2, :tdo].set(jnp.tile(b_d2[0], num_t))

    meta = dict(num_t=num_t, d_in=d_in, h_enc=h_enc, z_dim=z_dim,
                h_node=h_node, h_dec=h_dec, d_out=d_out, lanes=lanes, ld=ld,
                r_e1=r_e1, r_mv=r_mv, r_n1=r_n1, r_n2=r_n2, r_b=r_b,
                r_d1=r_d1, r_d2=r_d2, r_bd1=r_bd1, r_bd2=r_bd2)
    return {"wsmall": ws, "dec": dec, "meta": meta}


# -----------------------------------------------------------------------------
# Wrapper: flatten NCHW, single pallas_call with 4 operands, free slices on the
# way out.
# -----------------------------------------------------------------------------
def vae_node_forward(x_nchw, eps, packed):
    m = packed["meta"]
    B = x_nchw.shape[0]
    d_in = int(x_nchw.size // B)
    assert d_in == m["d_in"]
    assert B == m["num_t"], "packed decoder is tied to T = batch size"
    x = x_nchw.reshape(B, d_in).astype(jnp.float32)
    eps = eps.astype(jnp.float32)

    T = m["num_t"]
    dt = 1.0 / float(T - 1) if T > 1 else 0.0

    kernel = functools.partial(
        vae_node_fused_kernel,
        num_t=T, d_in=m["d_in"], h_enc=m["h_enc"], z_dim=m["z_dim"],
        h_node=m["h_node"], dt=dt, dt_3=dt / 3.0, dt_8=dt * 0.125,
        r_e1=m["r_e1"], r_mv=m["r_mv"], r_n1=m["r_n1"], r_n2=m["r_n2"],
        r_b=m["r_b"], r_d1=m["r_d1"], r_d2=m["r_d2"],
        r_bd1=m["r_bd1"], r_bd2=m["r_bd2"])

    def vmem():
        return pl.BlockSpec(memory_space=pltpu.MemorySpace.VMEM)

    zmuvar_pad, pred_slab = pl.pallas_call(
        kernel,
        in_specs=[vmem() for _ in range(4)],
        out_specs=(vmem(), vmem()),
        out_shape=(
            jax.ShapeDtypeStruct((B, m["lanes"]), jnp.float32),  # [mu|var|0...]
            jax.ShapeDtypeStruct((B, m["ld"]), jnp.float32),     # lane-dense frames
        ),
    )(x, eps, packed["wsmall"], packed["dec"])

    Z = m["z_dim"]
    z_mu = zmuvar_pad[:, :Z]
    z_var = zmuvar_pad[:, Z:2 * Z]
    # (B, T*D_out) -> (B, T, D_out): batch-major, equivalent to
    # zt.permute(1, 0, 2) followed by dec on the last axis.
    predicted = pred_slab[:, :T * m["d_out"]].reshape(B, T, m["d_out"])
    return predicted, z_mu, z_var


# -----------------------------------------------------------------------------
# Deterministic parameter init (PyTorch-Linear-style uniform +/- 1/sqrt(fan_in))
# -----------------------------------------------------------------------------
def init_params(key, d_in, h_enc, z_dim, h_node, h_dec):
    def lin(k, fan_in, fan_out):
        kw, kb = jax.random.split(k)
        bound = 1.0 / jnp.sqrt(fan_in)
        w = jax.random.uniform(kw, (fan_in, fan_out), jnp.float32, -bound, bound)
        b = jax.random.uniform(kb, (1, fan_out), jnp.float32, -bound, bound)
        return w, b

    ks = jax.random.split(key, 7)
    p = {}
    p["w_e1"], p["b_e1"] = lin(ks[0], d_in, h_enc)
    p["w_mu"], p["b_mu"] = lin(ks[1], h_enc, z_dim)
    p["w_var"], p["b_var"] = lin(ks[2], h_enc, z_dim)
    p["w_n1"], p["b_n1"] = lin(ks[3], z_dim, h_node)
    p["w_n2"], p["b_n2"] = lin(ks[4], h_node, z_dim)
    p["w_d1"], p["b_d1"] = lin(ks[5], z_dim, h_dec)
    p["w_d2"], p["b_d2"] = lin(ks[6], h_dec, d_in)
    return p


if __name__ == "__main__":
    # Small shapes: batch B=8 (also the number of ODE time points),
    # input NCHW (8, 2, 4, 4) -> D_in = 32, latent Z = 16, hidden = 32.
    B, C, H, W = 8, 2, 4, 4
    D_in = C * H * W
    Z, H_ENC, H_NODE, H_DEC = 16, 32, 32, 32

    key = jax.random.PRNGKey(0)
    k_x, k_eps, k_p = jax.random.split(key, 3)

    x = jax.random.uniform(k_x, (B, C, H, W), jnp.float32)   # image-like input
    # torch.randn_like(z_std): RNG drawn in glue with a fixed key (deterministic).
    # TODO(synk): could instead draw eps in-kernel via pltpu.prng_seed/stateful_normal.
    eps = jax.random.normal(k_eps, (B, Z), jnp.float32)
    params = init_params(k_p, D_in, H_ENC, Z, H_NODE, H_DEC)

    packed = pack_params(params, num_t=B)   # one-time: fuse / pad / block-diag
    predicted, z_mu, z_var = vae_node_forward(x, eps, packed)
    jax.block_until_ready((predicted, z_mu, z_var))

    assert predicted.shape == (B, B, D_in)   # (B, T, D_in) with T = B
    assert z_mu.shape == (B, Z) and z_var.shape == (B, Z)
    print("KERNEL_OK")
</pallas_src>

<mosaic_0001>
module attributes {stable_mosaic.version = 11 : i64} {
  func.func @vae_node_fused_kernel(%arg0: memref<8x32xf32, #tpu.memory_space<vmem>>, %arg1: memref<8x16xf32, #tpu.memory_space<vmem>>, %arg2: memref<120x128xf32, #tpu.memory_space<vmem>>, %arg3: memref<400x256xf32, #tpu.memory_space<vmem>>, %arg4: memref<8x128xf32, #tpu.memory_space<vmem>>, %arg5: memref<8x256xf32, #tpu.memory_space<vmem>>) attributes {dimension_semantics = [], scalar_prefetch = 0 : i64, scratch_operands = 0 : i64, tpu.core_type = #tpu.core_type<tc>} {
    %c0 = arith.constant 0 : index
    %c0_0 = arith.constant 0 : index
    %0 = vector.load %arg0[%c0, %c0_0] : memref<8x32xf32, #tpu.memory_space<vmem>>, vector<8x32xf32>
    %c0_1 = arith.constant 0 : index
    %c0_2 = arith.constant 0 : index
    %1 = vector.load %arg1[%c0_1, %c0_2] : memref<8x16xf32, #tpu.memory_space<vmem>>, vector<8x16xf32>
    %c0_3 = arith.constant 0 : index
    %c0_4 = arith.constant 0 : index
    %2 = vector.load %arg2[%c0_3, %c0_4] : memref<120x128xf32, #tpu.memory_space<vmem>>, vector<120x128xf32>
    %3 = vector.extract_strided_slice %2 {offsets = [0, 0], sizes = [32, 32], strides = [1, 1]} : vector<120x128xf32> to vector<32x32xf32>
    %4 = vector.extract_strided_slice %2 {offsets = [112, 0], sizes = [1, 32], strides = [1, 1]} : vector<120x128xf32> to vector<1x32xf32>
    %5 = vector.extract_strided_slice %2 {offsets = [32, 0], sizes = [32, 128], strides = [1, 1]} : vector<120x128xf32> to vector<32x128xf32>
    %6 = vector.extract_strided_slice %2 {offsets = [113, 0], sizes = [1, 128], strides = [1, 1]} : vector<120x128xf32> to vector<1x128xf32>
    %7 = vector.extract_strided_slice %2 {offsets = [64, 0], sizes = [16, 32], strides = [1, 1]} : vector<120x128xf32> to vector<16x32xf32>
    %8 = vector.extract_strided_slice %2 {offsets = [114, 0], sizes = [1, 32], strides = [1, 1]} : vector<120x128xf32> to vector<1x32xf32>
    %9 = vector.extract_strided_slice %2 {offsets = [80, 0], sizes = [32, 16], strides = [1, 1]} : vector<120x128xf32> to vector<32x16xf32>
    %10 = vector.extract_strided_slice %2 {offsets = [115, 0], sizes = [1, 16], strides = [1, 1]} : vector<120x128xf32> to vector<1x16xf32>
    %cst = arith.constant dense<0.000000e+00> : vector<8x32xf32>
    %11 = tpu.matmul %0, %3, %cst {dimension_numbers = #tpu.dot_dimension_numbers<[1], [0], [0], [1], [0, 0, 1, 1], [], []>} : vector<8x32xf32>, vector<32x32xf32>, vector<8x32xf32> -> vector<8x32xf32>
    %12 = vector.broadcast %4 : vector<1x32xf32> to vector<8x32xf32>
    %13 = arith.addf %11, %12 : vector<8x32xf32>
    %14 = math.tanh %13 : vector<8x32xf32>
    %cst_5 = arith.constant dense<0.000000e+00> : vector<8x128xf32>
    %15 = tpu.matmul %14, %5, %cst_5 {dimension_numbers = #tpu.dot_dimension_numbers<[1], [0], [0], [1], [0, 0, 1, 1], [], []>} : vector<8x32xf32>, vector<32x128xf32>, vector<8x128xf32> -> vector<8x128xf32>
    %16 = vector.broadcast %6 : vector<1x128xf32> to vector<8x128xf32>
    %17 = arith.addf %15, %16 : vector<8x128xf32>
    %c0_6 = arith.constant 0 : index
    %c0_7 = arith.constant 0 : index
    %18 = vector.load %arg4[%c0_6, %c0_7] : memref<8x128xf32, #tpu.memory_space<vmem>>, vector<8x128xf32>
    tpu.vector_store %arg4[%c0_6, %c0_7], %17 {strides = array<i32>} : memref<8x128xf32, #tpu.memory_space<vmem>>, vector<8x128xf32>,
    %19 = vector.extract_strided_slice %17 {offsets = [0, 0], sizes = [8, 16], strides = [1, 1]} : vector<8x128xf32> to vector<8x16xf32>
    %20 = vector.extract_strided_slice %17 {offsets = [0, 16], sizes = [8, 16], strides = [1, 1]} : vector<8x128xf32> to vector<8x16xf32>
    %cst_8 = arith.constant 5.000000e-01 : f32
    %21 = vector.broadcast %cst_8 : f32 to vector<8x16xf32>
    %22 = arith.mulf %20, %21 : vector<8x16xf32>
    %23 = math.exp %22 : vector<8x16xf32>
    %24 = arith.mulf %1, %23 : vector<8x16xf32>
    %25 = arith.addf %24, %19 : vector<8x16xf32>
    %cst_9 = arith.constant dense<0.000000e+00> : vector<8x32xf32>
    %26 = tpu.matmul %25, %7, %cst_9 {dimension_numbers = #tpu.dot_dimension_numbers<[1], [0], [0], [1], [0, 0, 1, 1], [], []>} : vector<8x16xf32>, vector<16x32xf32>, vector<8x32xf32> -> vector<8x32xf32>
    %27 = vector.broadcast %8 : vector<1x32xf32> to vector<8x32xf32>
    %28 = arith.addf %26, %27 : vector<8x32xf32>
    %29 = math.tanh %28 : vector<8x32xf32>
    %cst_10 = arith.constant dense<0.000000e+00> : vector<8x16xf32>
    %30 = tpu.matmul %29, %9, %cst_10 {dimension_numbers = #tpu.dot_dimension_numbers<[1], [0], [0], [1], [0, 0, 1, 1], [], []>} : vector<8x32xf32>, vector<32x16xf32>, vector<8x16xf32> -> vector<8x16xf32>
    %31 = vector.broadcast %10 : vector<1x16xf32> to vector<8x16xf32>
    %32 = arith.addf %30, %31 : vector<8x16xf32>
    %cst_11 = arith.constant 0.0476190485 : f32
    %33 = vector.broadcast %cst_11 : f32 to vector<8x16xf32>
    %34 = arith.mulf %33, %32 : vector<8x16xf32>
    %35 = arith.addf %25, %34 : vector<8x16xf32>
    %cst_12 = arith.constant dense<0.000000e+00> : vector<8x32xf32>
    %36 = tpu.matmul %35, %7, %cst_12 {dimension_numbers = #tpu.dot_dimension_numbers<[1], [0], [0], [1], [0, 0, 1, 1], [], []>} : vector<8x16xf32>, vector<16x32xf32>, vector<8x32xf32> -> vector<8x32xf32>
    %37 = vector.broadcast %8 : vector<1x32xf32> to vector<8x32xf32>
    %38 = arith.addf %36, %37 : vector<8x32xf32>
    %39 = math.tanh %38 : vector<8x32xf32>
    %cst_13 = arith.constant dense<0.000000e+00> : vector<8x16xf32>
    %40 = tpu.matmul %39, %9, %cst_13 {dimension_numbers = #tpu.dot_dimension_numbers<[1], [0], [0], [1], [0, 0, 1, 1], [], []>} : vector<8x32xf32>, vector<32x16xf32>, vector<8x16xf32> -> vector<8x16xf32>
    %41 = vector.broadcast %10 : vector<1x16xf32> to vector<8x16xf32>
    %42 = arith.addf %40, %41 : vector<8x16xf32>
    %43 = arith.subf %25, %34 : vector<8x16xf32>
    %cst_14 = arith.constant 0.142857149 : f32
    %44 = vector.broadcast %cst_14 : f32 to vector<8x16xf32>
    %45 = arith.mulf %44, %42 : vector<8x16xf32>
    %46 = arith.addf %43, %45 : vector<8x16xf32>
    %cst_15 = arith.constant dense<0.000000e+00> : vector<8x32xf32>
    %47 = tpu.matmul %46, %7, %cst_15 {dimension_numbers = #tpu.dot_dimension_numbers<[1], [0], [0], [1], [0, 0, 1, 1], [], []>} : vector<8x16xf32>, vector<16x32xf32>, vector<8x32xf32> -> vector<8x32xf32>
    %48 = vector.broadcast %8 : vector<1x32xf32> to vector<8x32xf32>
    %49 = arith.addf %47, %48 : vector<8x32xf32>
    %50 = math.tanh %49 : vector<8x32xf32>
    %cst_16 = arith.constant dense<0.000000e+00> : vector<8x16xf32>
    %51 = tpu.matmul %50, %9, %cst_16 {dimension_numbers = #tpu.dot_dimension_numbers<[1], [0], [0], [1], [0, 0, 1, 1], [], []>} : vector<8x32xf32>, vector<32x16xf32>, vector<8x16xf32> -> vector<8x16xf32>
    %52 = vector.broadcast %10 : vector<1x16xf32> to vector<8x16xf32>
    %53 = arith.addf %51, %52 : vector<8x16xf32>
    %54 = arith.subf %32, %42 : vector<8x16xf32>
    %cst_17 = arith.constant 0.142857149 : f32
    %55 = vector.broadcast %cst_17 : f32 to vector<8x16xf32>
    %56 = arith.mulf %55, %54 : vector<8x16xf32>
    %57 = arith.addf %25, %56 : vector<8x16xf32>
    %cst_18 = arith.constant 0.142857149 : f32
    %58 = vector.broadcast %cst_18 : f32 to vector<8x16xf32>
    %59 = arith.mulf %58, %53 : vector<8x16xf32>
    %60 = arith.addf %57, %59 : vector<8x16xf32>
    %cst_19 = arith.constant dense<0.000000e+00> : vector<8x32xf32>
    %61 = tpu.matmul %60, %7, %cst_19 {dimension_numbers = #tpu.dot_dimension_numbers<[1], [0], [0], [1], [0, 0, 1, 1], [], []>} : vector<8x16xf32>, vector<16x32xf32>, vector<8x32xf32> -> vector<8x32xf32>
    %62 = vector.broadcast %8 : vector<1x32xf32> to vector<8x32xf32>
    %63 = arith.addf %61, %62 : vector<8x32xf32>
    %64 = math.tanh %63 : vector<8x32xf32>
    %cst_20 = arith.constant dense<0.000000e+00> : vector<8x16xf32>
    %65 = tpu.matmul %64, %9, %cst_20 {dimension_numbers = #tpu.dot_dimension_numbers<[1], [0], [0], [1], [0, 0, 1, 1], [], []>} : vector<8x32xf32>, vector<32x16xf32>, vector<8x16xf32> -> vector<8x16xf32>
    %66 = vector.broadcast %10 : vector<1x16xf32> to vector<8x16xf32>
    %67 = arith.addf %65, %66 : vector<8x16xf32>
    %68 = arith.addf %42, %53 : vector<8x16xf32>
    %cst_21 = arith.constant 3.000000e+00 : f32
    %69 = vector.broadcast %cst_21 : f32 to vector<8x16xf32>
    %70 = arith.mulf %69, %68 : vector<8x16xf32>
    %71 = arith.addf %32, %70 : vector<8x16xf32>
    %cst_22 = arith.constant 0.0178571437 : f32
    %72 = vector.broadcast %cst_22 : f32 to vector<8x16xf32>
    %73 = arith.mulf %72, %71 : vector<8x16xf32>
    %74 = arith.addf %25, %73 : vector<8x16xf32>
    %cst_23 = arith.constant 0.0178571437 : f32
    %75 = vector.broadcast %cst_23 : f32 to vector<8x16xf32>
    %76 = arith.mulf %75, %67 : vector<8x16xf32>
    %77 = arith.addf %74, %76 : vector<8x16xf32>
    %cst_24 = arith.constant dense<0.000000e+00> : vector<8x32xf32>
    %78 = tpu.matmul %77, %7, %cst_24 {dimension_numbers = #tpu.dot_dimension_numbers<[1], [0], [0], [1], [0, 0, 1, 1], [], []>} : vector<8x16xf32>, vector<16x32xf32>, vector<8x32xf32> -> vector<8x32xf32>
    %79 = vector.broadcast %8 : vector<1x32xf32> to vector<8x32xf32>
    %80 = arith.addf %78, %79 : vector<8x32xf32>
    %81 = math.tanh %80 : vector<8x32xf32>
    %cst_25 = arith.constant dense<0.000000e+00> : vector<8x16xf32>
    %82 = tpu.matmul %81, %9, %cst_25 {dimension_numbers = #tpu.dot_dimension_numbers<[1], [0], [0], [1], [0, 0, 1, 1], [], []>} : vector<8x32xf32>, vector<32x16xf32>, vector<8x16xf32> -> vector<8x16xf32>
    %83 = vector.broadcast %10 : vector<1x16xf32> to vector<8x16xf32>
    %84 = arith.addf %82, %83 : vector<8x16xf32>
    %cst_26 = arith.constant 0.0476190485 : f32
    %85 = vector.broadcast %cst_26 : f32 to vector<8x16xf32>
    %86 = arith.mulf %85, %84 : vector<8x16xf32>
    %87 = arith.addf %77, %86 : vector<8x16xf32>
    %cst_27 = arith.constant dense<0.000000e+00> : vector<8x32xf32>
    %88 = tpu.matmul %87, %7, %cst_27 {dimension_numbers = #tpu.dot_dimension_numbers<[1], [0], [0], [1], [0, 0, 1, 1], [], []>} : vector<8x16xf32>, vector<16x32xf32>, vector<8x32xf32> -> vector<8x32xf32>
    %89 = vector.broadcast %8 : vector<1x32xf32> to vector<8x32xf32>
    %90 = arith.addf %88, %89 : vector<8x32xf32>
    %91 = math.tanh %90 : vector<8x32xf32>
    %cst_28 = arith.constant dense<0.000000e+00> : vector<8x16xf32>
    %92 = tpu.matmul %91, %9, %cst_28 {dimension_numbers = #tpu.dot_dimension_numbers<[1], [0], [0], [1], [0, 0, 1, 1], [], []>} : vector<8x32xf32>, vector<32x16xf32>, vector<8x16xf32> -> vector<8x16xf32>
    %93 = vector.broadcast %10 : vector<1x16xf32> to vector<8x16xf32>
    %94 = arith.addf %92, %93 : vector<8x16xf32>
    %95 = arith.subf %77, %86 : vector<8x16xf32>
    %cst_29 = arith.constant 0.142857149 : f32
    %96 = vector.broadcast %cst_29 : f32 to vector<8x16xf32>
    %97 = arith.mulf %96, %94 : vector<8x16xf32>
    %98 = arith.addf %95, %97 : vector<8x16xf32>
    %cst_30 = arith.constant dense<0.000000e+00> : vector<8x32xf32>
    %99 = tpu.matmul %98, %7, %cst_30 {dimension_numbers = #tpu.dot_dimension_numbers<[1], [0], [0], [1], [0, 0, 1, 1], [], []>} : vector<8x16xf32>, vector<16x32xf32>, vector<8x32xf32> -> vector<8x32xf32>
    %100 = vector.broadcast %8 : vector<1x32xf32> to vector<8x32xf32>
    %101 = arith.addf %99, %100 : vector<8x32xf32>
    %102 = math.tanh %101 : vector<8x32xf32>
    %cst_31 = arith.constant dense<0.000000e+00> : vector<8x16xf32>
    %103 = tpu.matmul %102, %9, %cst_31 {dimension_numbers = #tpu.dot_dimension_numbers<[1], [0], [0], [1], [0, 0, 1, 1], [], []>} : vector<8x32xf32>, vector<32x16xf32>, vector<8x16xf32> -> vector<8x16xf32>
    %104 = vector.broadcast %10 : vector<1x16xf32> to vector<8x16xf32>
    %105 = arith.addf %103, %104 : vector<8x16xf32>
    %106 = arith.subf %84, %94 : vector<8x16xf32>
    %cst_32 = arith.constant 0.142857149 : f32
    %107 = vector.broadcast %cst_32 : f32 to vector<8x16xf32>
    %108 = arith.mulf %107, %106 : vector<8x16xf32>
    %109 = arith.addf %77, %108 : vector<8x16xf32>
    %cst_33 = arith.constant 0.142857149 : f32
    %110 = vector.broadcast %cst_33 : f32 to vector<8x16xf32>
    %111 = arith.mulf %110, %105 : vector<8x16xf32>
    %112 = arith.addf %109, %111 : vector<8x16xf32>
    %cst_34 = arith.constant dense<0.000000e+00> : vector<8x32xf32>
    %113 = tpu.matmul %112, %7, %cst_34 {dimension_numbers = #tpu.dot_dimension_numbers<[1], [0], [0], [1], [0, 0, 1, 1], [], []>} : vector<8x16xf32>, vector<16x32xf32>, vector<8x32xf32> -> vector<8x32xf32>
    %114 = vector.broadcast %8 : vector<1x32xf32> to vector<8x32xf32>
    %115 = arith.addf %113, %114 : vector<8x32xf32>
    %116 = math.tanh %115 : vector<8x32xf32>
    %cst_35 = arith.constant dense<0.000000e+00> : vector<8x16xf32>
    %117 = tpu.matmul %116, %9, %cst_35 {dimension_numbers = #tpu.dot_dimension_numbers<[1], [0], [0], [1], [0, 0, 1, 1], [], []>} : vector<8x32xf32>, vector<32x16xf32>, vector<8x16xf32> -> vector<8x16xf32>
    %118 = vector.broadcast %10 : vector<1x16xf32> to vector<8x16xf32>
    %119 = arith.addf %117, %118 : vector<8x16xf32>
    %120 = arith.addf %94, %105 : vector<8x16xf32>
    %cst_36 = arith.constant 3.000000e+00 : f32
    %121 = vector.broadcast %cst_36 : f32 to vector<8x16xf32>
    %122 = arith.mulf %121, %120 : vector<8x16xf32>
    %123 = arith.addf %84, %122 : vector<8x16xf32>
    %cst_37 = arith.constant 0.0178571437 : f32
    %124 = vector.broadcast %cst_37 : f32 to vector<8x16xf32>
    %125 = arith.mulf %124, %123 : vector<8x16xf32>
    %126 = arith.addf %77, %125 : vector<8x16xf32>
    %cst_38 = arith.constant 0.0178571437 : f32
    %127 = vector.broadcast %cst_38 : f32 to vector<8x16xf32>
    %128 = arith.mulf %127, %119 : vector<8x16xf32>
    %129 = arith.addf %126, %128 : vector<8x16xf32>
    %cst_39 = arith.constant dense<0.000000e+00> : vector<8x32xf32>
    %130 = tpu.matmul %129, %7, %cst_39 {dimension_numbers = #tpu.dot_dimension_numbers<[1], [0], [0], [1], [0, 0, 1, 1], [], []>} : vector<8x16xf32>, vector<16x32xf32>, vector<8x32xf32> -> vector<8x32xf32>
    %131 = vector.broadcast %8 : vector<1x32xf32> to vector<8x32xf32>
    %132 = arith.addf %130, %131 : vector<8x32xf32>
    %133 = math.tanh %132 : vector<8x32xf32>
    %cst_40 = arith.constant dense<0.000000e+00> : vector<8x16xf32>
    %134 = tpu.matmul %133, %9, %cst_40 {dimension_numbers = #tpu.dot_dimension_numbers<[1], [0], [0], [1], [0, 0, 1, 1], [], []>} : vector<8x32xf32>, vector<32x16xf32>, vector<8x16xf32> -> vector<8x16xf32>
    %135 = vector.broadcast %10 : vector<1x16xf32> to vector<8x16xf32>
    %136 = arith.addf %134, %135 : vector<8x16xf32>
    %cst_41 = arith.constant 0.0476190485 : f32
    %137 = vector.broadcast %cst_41 : f32 to vector<8x16xf32>
    %138 = arith.mulf %137, %136 : vector<8x16xf32>
    %139 = arith.addf %129, %138 : vector<8x16xf32>
    %cst_42 = arith.constant dense<0.000000e+00> : vector<8x32xf32>
    %140 = tpu.matmul %139, %7, %cst_42 {dimension_numbers = #tpu.dot_dimension_numbers<[1], [0], [0], [1], [0, 0, 1, 1], [], []>} : vector<8x16xf32>, vector<16x32xf32>, vector<8x32xf32> -> vector<8x32xf32>
    %141 = vector.broadcast %8 : vector<1x32xf32> to vector<8x32xf32>
    %142 = arith.addf %140, %141 : vector<8x32xf32>
    %143 = math.tanh %142 : vector<8x32xf32>
    %cst_43 = arith.constant dense<0.000000e+00> : vector<8x16xf32>
    %144 = tpu.matmul %143, %9, %cst_43 {dimension_numbers = #tpu.dot_dimension_numbers<[1], [0], [0], [1], [0, 0, 1, 1], [], []>} : vector<8x32xf32>, vector<32x16xf32>, vector<8x16xf32> -> vector<8x16xf32>
    %145 = vector.broadcast %10 : vector<1x16xf32> to vector<8x16xf32>
    %146 = arith.addf %144, %145 : vector<8x16xf32>
    %147 = arith.subf %129, %138 : vector<8x16xf32>
    %cst_44 = arith.constant 0.142857149 : f32
    %148 = vector.broadcast %cst_44 : f32 to vector<8x16xf32>
    %149 = arith.mulf %148, %146 : vector<8x16xf32>
    %150 = arith.addf %147, %149 : vector<8x16xf32>
    %cst_45 = arith.constant dense<0.000000e+00> : vector<8x32xf32>
    %151 = tpu.matmul %150, %7, %cst_45 {dimension_numbers = #tpu.dot_dimension_numbers<[1], [0], [0], [1], [0, 0, 1, 1], [], []>} : vector<8x16xf32>, vector<16x32xf32>, vector<8x32xf32> -> vector<8x32xf32>
    %152 = vector.broadcast %8 : vector<1x32xf32> to vector<8x32xf32>
    %153 = arith.addf %151, %152 : vector<8x32xf32>
    %154 = math.tanh %153 : vector<8x32xf32>
    %cst_46 = arith.constant dense<0.000000e+00> : vector<8x16xf32>
    %155 = tpu.matmul %154, %9, %cst_46 {dimension_numbers = #tpu.dot_dimension_numbers<[1], [0], [0], [1], [0, 0, 1, 1], [], []>} : vector<8x32xf32>, vector<32x16xf32>, vector<8x16xf32> -> vector<8x16xf32>
    %156 = vector.broadcast %10 : vector<1x16xf32> to vector<8x16xf32>
    %157 = arith.addf %155, %156 : vector<8x16xf32>
    %158 = arith.subf %136, %146 : vector<8x16xf32>
    %cst_47 = arith.constant 0.142857149 : f32
    %159 = vector.broadcast %cst_47 : f32 to vector<8x16xf32>
    %160 = arith.mulf %159, %158 : vector<8x16xf32>
    %161 = arith.addf %129, %160 : vector<8x16xf32>
    %cst_48 = arith.constant 0.142857149 : f32
    %162 = vector.broadcast %cst_48 : f32 to vector<8x16xf32>
    %163 = arith.mulf %162, %157 : vector<8x16xf32>
    %164 = arith.addf %161, %163 : vector<8x16xf32>
    %cst_49 = arith.constant dense<0.000000e+00> : vector<8x32xf32>
    %165 = tpu.matmul %164, %7, %cst_49 {dimension_numbers = #tpu.dot_dimension_numbers<[1], [0], [0], [1], [0, 0, 1, 1], [], []>} : vector<8x16xf32>, vector<16x32xf32>, vector<8x32xf32> -> vector<8x32xf32>
    %166 = vector.broadcast %8 : vector<1x32xf32> to vector<8x32xf32>
    %167 = arith.addf %165, %166 : vector<8x32xf32>
    %168 = math.tanh %167 : vector<8x32xf32>
    %cst_50 = arith.constant dense<0.000000e+00> : vector<8x16xf32>
    %169 = tpu.matmul %168, %9, %cst_50 {dimension_numbers = #tpu.dot_dimension_numbers<[1], [0], [0], [1], [0, 0, 1, 1], [], []>} : vector<8x32xf32>, vector<32x16xf32>, vector<8x16xf32> -> vector<8x16xf32>
    %170 = vector.broadcast %10 : vector<1x16xf32> to vector<8x16xf32>
    %171 = arith.addf %169, %170 : vector<8x16xf32>
    %172 = arith.addf %146, %157 : vector<8x16xf32>
    %cst_51 = arith.constant 3.000000e+00 : f32
    %173 = vector.broadcast %cst_51 : f32 to vector<8x16xf32>
    %174 = arith.mulf %173, %172 : vector<8x16xf32>
    %175 = arith.addf %136, %174 : vector<8x16xf32>
    %cst_52 = arith.constant 0.0178571437 : f32
    %176 = vector.broadcast %cst_52 : f32 to vector<8x16xf32>
    %177 = arith.mulf %176, %175 : vector<8x16xf32>
    %178 = arith.addf %129, %177 : vector<8x16xf32>
    %cst_53 = arith.constant 0.0178571437 : f32
    %179 = vector.broadcast %cst_53 : f32 to vector<8x16xf32>
    %180 = arith.mulf %179, %171 : vector<8x16xf32>
    %181 = arith.addf %178, %180 : vector<8x16xf32>
    %cst_54 = arith.constant dense<0.000000e+00> : vector<8x32xf32>
    %182 = tpu.matmul %181, %7, %cst_54 {dimension_numbers = #tpu.dot_dimension_numbers<[1], [0], [0], [1], [0, 0, 1, 1], [], []>} : vector<8x16xf32>, vector<16x32xf32>, vector<8x32xf32> -> vector<8x32xf32>
    %183 = vector.broadcast %8 : vector<1x32xf32> to vector<8x32xf32>
    %184 = arith.addf %182, %183 : vector<8x32xf32>
    %185 = math.tanh %184 : vector<8x32xf32>
    %cst_55 = arith.constant dense<0.000000e+00> : vector<8x16xf32>
    %186 = tpu.matmul %185, %9, %cst_55 {dimension_numbers = #tpu.dot_dimension_numbers<[1], [0], [0], [1], [0, 0, 1, 1], [], []>} : vector<8x32xf32>, vector<32x16xf32>, vector<8x16xf32> -> vector<8x16xf32>
    %187 = vector.broadcast %10 : vector<1x16xf32> to vector<8x16xf32>
    %188 = arith.addf %186, %187 : vector<8x16xf32>
    %cst_56 = arith.constant 0.0476190485 : f32
    %189 = vector.broadcast %cst_56 : f32 to vector<8x16xf32>
    %190 = arith.mulf %189, %188 : vector<8x16xf32>
    %191 = arith.addf %181, %190 : vector<8x16xf32>
    %cst_57 = arith.constant dense<0.000000e+00> : vector<8x32xf32>
    %192 = tpu.matmul %191, %7, %cst_57 {dimension_numbers = #tpu.dot_dimension_numbers<[1], [0], [0], [1], [0, 0, 1, 1], [], []>} : vector<8x16xf32>, vector<16x32xf32>, vector<8x32xf32> -> vector<8x32xf32>
    %193 = vector.broadcast %8 : vector<1x32xf32> to vector<8x32xf32>
    %194 = arith.addf %192, %193 : vector<8x32xf32>
    %195 = math.tanh %194 : vector<8x32xf32>
    %cst_58 = arith.constant dense<0.000000e+00> : vector<8x16xf32>
    %196 = tpu.matmul %195, %9, %cst_58 {dimension_numbers = #tpu.dot_dimension_numbers<[1], [0], [0], [1], [0, 0, 1, 1], [], []>} : vector<8x32xf32>, vector<32x16xf32>, vector<8x16xf32> -> vector<8x16xf32>
    %197 = vector.broadcast %10 : vector<1x16xf32> to vector<8x16xf32>
    %198 = arith.addf %196, %197 : vector<8x16xf32>
    %199 = arith.subf %181, %190 : vector<8x16xf32>
    %cst_59 = arith.constant 0.142857149 : f32
    %200 = vector.broadcast %cst_59 : f32 to vector<8x16xf32>
    %201 = arith.mulf %200, %198 : vector<8x16xf32>
    %202 = arith.addf %199, %201 : vector<8x16xf32>
    %cst_60 = arith.constant dense<0.000000e+00> : vector<8x32xf32>
    %203 = tpu.matmul %202, %7, %cst_60 {dimension_numbers = #tpu.dot_dimension_numbers<[1], [0], [0], [1], [0, 0, 1, 1], [], []>} : vector<8x16xf32>, vector<16x32xf32>, vector<8x32xf32> -> vector<8x32xf32>
    %204 = vector.broadcast %8 : vector<1x32xf32> to vector<8x32xf32>
    %205 = arith.addf %203, %204 : vector<8x32xf32>
    %206 = math.tanh %205 : vector<8x32xf32>
    %cst_61 = arith.constant dense<0.000000e+00> : vector<8x16xf32>
    %207 = tpu.matmul %206, %9, %cst_61 {dimension_numbers = #tpu.dot_dimension_numbers<[1], [0], [0], [1], [0, 0, 1, 1], [], []>} : vector<8x32xf32>, vector<32x16xf32>, vector<8x16xf32> -> vector<8x16xf32>
    %208 = vector.broadcast %10 : vector<1x16xf32> to vector<8x16xf32>
    %209 = arith.addf %207, %208 : vector<8x16xf32>
    %210 = arith.subf %188, %198 : vector<8x16xf32>
    %cst_62 = arith.constant 0.142857149 : f32
    %211 = vector.broadcast %cst_62 : f32 to vector<8x16xf32>
    %212 = arith.mulf %211, %210 : vector<8x16xf32>
    %213 = arith.addf %181, %212 : vector<8x16xf32>
    %cst_63 = arith.constant 0.142857149 : f32
    %214 = vector.broadcast %cst_63 : f32 to vector<8x16xf32>
    %215 = arith.mulf %214, %209 : vector<8x16xf32>
    %216 = arith.addf %213, %215 : vector<8x16xf32>
    %cst_64 = arith.constant dense<0.000000e+00> : vector<8x32xf32>
    %217 = tpu.matmul %216, %7, %cst_64 {dimension_numbers = #tpu.dot_dimension_numbers<[1], [0], [0], [1], [0, 0, 1, 1], [], []>} : vector<8x16xf32>, vector<16x32xf32>, vector<8x32xf32> -> vector<8x32xf32>
    %218 = vector.broadcast %8 : vector<1x32xf32> to vector<8x32xf32>
    %219 = arith.addf %217, %218 : vector<8x32xf32>
    %220 = math.tanh %219 : vector<8x32xf32>
    %cst_65 = arith.constant dense<0.000000e+00> : vector<8x16xf32>
    %221 = tpu.matmul %220, %9, %cst_65 {dimension_numbers = #tpu.dot_dimension_numbers<[1], [0], [0], [1], [0, 0, 1, 1], [], []>} : vector<8x32xf32>, vector<32x16xf32>, vector<8x16xf32> -> vector<8x16xf32>
    %222 = vector.broadcast %10 : vector<1x16xf32> to vector<8x16xf32>
    %223 = arith.addf %221, %222 : vector<8x16xf32>
    %224 = arith.addf %198, %209 : vector<8x16xf32>
    %cst_66 = arith.constant 3.000000e+00 : f32
    %225 = vector.broadcast %cst_66 : f32 to vector<8x16xf32>
    %226 = arith.mulf %225, %224 : vector<8x16xf32>
    %227 = arith.addf %188, %226 : vector<8x16xf32>
    %cst_67 = arith.constant 0.0178571437 : f32
    %228 = vector.broadcast %cst_67 : f32 to vector<8x16xf32>
    %229 = arith.mulf %228, %227 : vector<8x16xf32>
    %230 = arith.addf %181, %229 : vector<8x16xf32>
    %cst_68 = arith.constant 0.0178571437 : f32
    %231 = vector.broadcast %cst_68 : f32 to vector<8x16xf32>
    %232 = arith.mulf %231, %223 : vector<8x16xf32>
    %233 = arith.addf %230, %232 : vector<8x16xf32>
    %cst_69 = arith.constant dense<0.000000e+00> : vector<8x32xf32>
    %234 = tpu.matmul %233, %7, %cst_69 {dimension_numbers = #tpu.dot_dimension_numbers<[1], [0], [0], [1], [0, 0, 1, 1], [], []>} : vector<8x16xf32>, vector<16x32xf32>, vector<8x32xf32> -> vector<8x32xf32>
    %235 = vector.broadcast %8 : vector<1x32xf32> to vector<8x32xf32>
    %236 = arith.addf %234, %235 : vector<8x32xf32>
    %237 = math.tanh %236 : vector<8x32xf32>
    %cst_70 = arith.constant dense<0.000000e+00> : vector<8x16xf32>
    %238 = tpu.matmul %237, %9, %cst_70 {dimension_numbers = #tpu.dot_dimension_numbers<[1], [0], [0], [1], [0, 0, 1, 1], [], []>} : vector<8x32xf32>, vector<32x16xf32>, vector<8x16xf32> -> vector<8x16xf32>
    %239 = vector.broadcast %10 : vector<1x16xf32> to vector<8x16xf32>
    %240 = arith.addf %238, %239 : vector<8x16xf32>
    %cst_71 = arith.constant 0.0476190485 : f32
    %241 = vector.broadcast %cst_71 : f32 to vector<8x16xf32>
    %242 = arith.mulf %241, %240 : vector<8x16xf32>
    %243 = arith.addf %233, %242 : vector<8x16xf32>
    %cst_72 = arith.constant dense<0.000000e+00> : vector<8x32xf32>
    %244 = tpu.matmul %243, %7, %cst_72 {dimension_numbers = #tpu.dot_dimension_numbers<[1], [0], [0], [1], [0, 0, 1, 1], [], []>} : vector<8x16xf32>, vector<16x32xf32>, vector<8x32xf32> -> vector<8x32xf32>
    %245 = vector.broadcast %8 : vector<1x32xf32> to vector<8x32xf32>
    %246 = arith.addf %244, %245 : vector<8x32xf32>
    %247 = math.tanh %246 : vector<8x32xf32>
    %cst_73 = arith.constant dense<0.000000e+00> : vector<8x16xf32>
    %248 = tpu.matmul %247, %9, %cst_73 {dimension_numbers = #tpu.dot_dimension_numbers<[1], [0], [0], [1], [0, 0, 1, 1], [], []>} : vector<8x32xf32>, vector<32x16xf32>, vector<8x16xf32> -> vector<8x16xf32>
    %249 = vector.broadcast %10 : vector<1x16xf32> to vector<8x16xf32>
    %250 = arith.addf %248, %249 : vector<8x16xf32>
    %251 = arith.subf %233, %242 : vector<8x16xf32>
    %cst_74 = arith.constant 0.142857149 : f32
    %252 = vector.broadcast %cst_74 : f32 to vector<8x16xf32>
    %253 = arith.mulf %252, %250 : vector<8x16xf32>
    %254 = arith.addf %251, %253 : vector<8x16xf32>
    %cst_75 = arith.constant dense<0.000000e+00> : vector<8x32xf32>
    %255 = tpu.matmul %254, %7, %cst_75 {dimension_numbers = #tpu.dot_dimension_numbers<[1], [0], [0], [1], [0, 0, 1, 1], [], []>} : vector<8x16xf32>, vector<16x32xf32>, vector<8x32xf32> -> vector<8x32xf32>
    %256 = vector.broadcast %8 : vector<1x32xf32> to vector<8x32xf32>
    %257 = arith.addf %255, %256 : vector<8x32xf32>
    %258 = math.tanh %257 : vector<8x32xf32>
    %cst_76 = arith.constant dense<0.000000e+00> : vector<8x16xf32>
    %259 = tpu.matmul %258, %9, %cst_76 {dimension_numbers = #tpu.dot_dimension_numbers<[1], [0], [0], [1], [0, 0, 1, 1], [], []>} : vector<8x32xf32>, vector<32x16xf32>, vector<8x16xf32> -> vector<8x16xf32>
    %260 = vector.broadcast %10 : vector<1x16xf32> to vector<8x16xf32>
    %261 = arith.addf %259, %260 : vector<8x16xf32>
    %262 = arith.subf %240, %250 : vector<8x16xf32>
    %cst_77 = arith.constant 0.142857149 : f32
    %263 = vector.broadcast %cst_77 : f32 to vector<8x16xf32>
    %264 = arith.mulf %263, %262 : vector<8x16xf32>
    %265 = arith.addf %233, %264 : vector<8x16xf32>
    %cst_78 = arith.constant 0.142857149 : f32
    %266 = vector.broadcast %cst_78 : f32 to vector<8x16xf32>
    %267 = arith.mulf %266, %261 : vector<8x16xf32>
    %268 = arith.addf %265, %267 : vector<8x16xf32>
    %cst_79 = arith.constant dense<0.000000e+00> : vector<8x32xf32>
    %269 = tpu.matmul %268, %7, %cst_79 {dimension_numbers = #tpu.dot_dimension_numbers<[1], [0], [0], [1], [0, 0, 1, 1], [], []>} : vector<8x16xf32>, vector<16x32xf32>, vector<8x32xf32> -> vector<8x32xf32>
    %270 = vector.broadcast %8 : vector<1x32xf32> to vector<8x32xf32>
    %271 = arith.addf %269, %270 : vector<8x32xf32>
    %272 = math.tanh %271 : vector<8x32xf32>
    %cst_80 = arith.constant dense<0.000000e+00> : vector<8x16xf32>
    %273 = tpu.matmul %272, %9, %cst_80 {dimension_numbers = #tpu.dot_dimension_numbers<[1], [0], [0], [1], [0, 0, 1, 1], [], []>} : vector<8x32xf32>, vector<32x16xf32>, vector<8x16xf32> -> vector<8x16xf32>
    %274 = vector.broadcast %10 : vector<1x16xf32> to vector<8x16xf32>
    %275 = arith.addf %273, %274 : vector<8x16xf32>
    %276 = arith.addf %250, %261 : vector<8x16xf32>
    %cst_81 = arith.constant 3.000000e+00 : f32
    %277 = vector.broadcast %cst_81 : f32 to vector<8x16xf32>
    %278 = arith.mulf %277, %276 : vector<8x16xf32>
    %279 = arith.addf %240, %278 : vector<8x16xf32>
    %cst_82 = arith.constant 0.0178571437 : f32
    %280 = vector.broadcast %cst_82 : f32 to vector<8x16xf32>
    %281 = arith.mulf %280, %279 : vector<8x16xf32>
    %282 = arith.addf %233, %281 : vector<8x16xf32>
    %cst_83 = arith.constant 0.0178571437 : f32
    %283 = vector.broadcast %cst_83 : f32 to vector<8x16xf32>
    %284 = arith.mulf %283, %275 : vector<8x16xf32>
    %285 = arith.addf %282, %284 : vector<8x16xf32>
    %cst_84 = arith.constant dense<0.000000e+00> : vector<8x32xf32>
    %286 = tpu.matmul %285, %7, %cst_84 {dimension_numbers = #tpu.dot_dimension_numbers<[1], [0], [0], [1], [0, 0, 1, 1], [], []>} : vector<8x16xf32>, vector<16x32xf32>, vector<8x32xf32> -> vector<8x32xf32>
    %287 = vector.broadcast %8 : vector<1x32xf32> to vector<8x32xf32>
    %288 = arith.addf %286, %287 : vector<8x32xf32>
    %289 = math.tanh %288 : vector<8x32xf32>
    %cst_85 = arith.constant dense<0.000000e+00> : vector<8x16xf32>
    %290 = tpu.matmul %289, %9, %cst_85 {dimension_numbers = #tpu.dot_dimension_numbers<[1], [0], [0], [1], [0, 0, 1, 1], [], []>} : vector<8x32xf32>, vector<32x16xf32>, vector<8x16xf32> -> vector<8x16xf32>
    %291 = vector.broadcast %10 : vector<1x16xf32> to vector<8x16xf32>
    %292 = arith.addf %290, %291 : vector<8x16xf32>
    %cst_86 = arith.constant 0.0476190485 : f32
    %293 = vector.broadcast %cst_86 : f32 to vector<8x16xf32>
    %294 = arith.mulf %293, %292 : vector<8x16xf32>
    %295 = arith.addf %285, %294 : vector<8x16xf32>
    %cst_87 = arith.constant dense<0.000000e+00> : vector<8x32xf32>
    %296 = tpu.matmul %295, %7, %cst_87 {dimension_numbers = #tpu.dot_dimension_numbers<[1], [0], [0], [1], [0, 0, 1, 1], [], []>} : vector<8x16xf32>, vector<16x32xf32>, vector<8x32xf32> -> vector<8x32xf32>
    %297 = vector.broadcast %8 : vector<1x32xf32> to vector<8x32xf32>
    %298 = arith.addf %296, %297 : vector<8x32xf32>
    %299 = math.tanh %298 : vector<8x32xf32>
    %cst_88 = arith.constant dense<0.000000e+00> : vector<8x16xf32>
    %300 = tpu.matmul %299, %9, %cst_88 {dimension_numbers = #tpu.dot_dimension_numbers<[1], [0], [0], [1], [0, 0, 1, 1], [], []>} : vector<8x32xf32>, vector<32x16xf32>, vector<8x16xf32> -> vector<8x16xf32>
    %301 = vector.broadcast %10 : vector<1x16xf32> to vector<8x16xf32>
    %302 = arith.addf %300, %301 : vector<8x16xf32>
    %303 = arith.subf %285, %294 : vector<8x16xf32>
    %cst_89 = arith.constant 0.142857149 : f32
    %304 = vector.broadcast %cst_89 : f32 to vector<8x16xf32>
    %305 = arith.mulf %304, %302 : vector<8x16xf32>
    %306 = arith.addf %303, %305 : vector<8x16xf32>
    %cst_90 = arith.constant dense<0.000000e+00> : vector<8x32xf32>
    %307 = tpu.matmul %306, %7, %cst_90 {dimension_numbers = #tpu.dot_dimension_numbers<[1], [0], [0], [1], [0, 0, 1, 1], [], []>} : vector<8x16xf32>, vector<16x32xf32>, vector<8x32xf32> -> vector<8x32xf32>
    %308 = vector.broadcast %8 : vector<1x32xf32> to vector<8x32xf32>
    %309 = arith.addf %307, %308 : vector<8x32xf32>
    %310 = math.tanh %309 : vector<8x32xf32>
    %cst_91 = arith.constant dense<0.000000e+00> : vector<8x16xf32>
    %311 = tpu.matmul %310, %9, %cst_91 {dimension_numbers = #tpu.dot_dimension_numbers<[1], [0], [0], [1], [0, 0, 1, 1], [], []>} : vector<8x32xf32>, vector<32x16xf32>, vector<8x16xf32> -> vector<8x16xf32>
    %312 = vector.broadcast %10 : vector<1x16xf32> to vector<8x16xf32>
    %313 = arith.addf %311, %312 : vector<8x16xf32>
    %314 = arith.subf %292, %302 : vector<8x16xf32>
    %cst_92 = arith.constant 0.142857149 : f32
    %315 = vector.broadcast %cst_92 : f32 to vector<8x16xf32>
    %316 = arith.mulf %315, %314 : vector<8x16xf32>
    %317 = arith.addf %285, %316 : vector<8x16xf32>
    %cst_93 = arith.constant 0.142857149 : f32
    %318 = vector.broadcast %cst_93 : f32 to vector<8x16xf32>
    %319 = arith.mulf %318, %313 : vector<8x16xf32>
    %320 = arith.addf %317, %319 : vector<8x16xf32>
    %cst_94 = arith.constant dense<0.000000e+00> : vector<8x32xf32>
    %321 = tpu.matmul %320, %7, %cst_94 {dimension_numbers = #tpu.dot_dimension_numbers<[1], [0], [0], [1], [0, 0, 1, 1], [], []>} : vector<8x16xf32>, vector<16x32xf32>, vector<8x32xf32> -> vector<8x32xf32>
    %322 = vector.broadcast %8 : vector<1x32xf32> to vector<8x32xf32>
    %323 = arith.addf %321, %322 : vector<8x32xf32>
    %324 = math.tanh %323 : vector<8x32xf32>
    %cst_95 = arith.constant dense<0.000000e+00> : vector<8x16xf32>
    %325 = tpu.matmul %324, %9, %cst_95 {dimension_numbers = #tpu.dot_dimension_numbers<[1], [0], [0], [1], [0, 0, 1, 1], [], []>} : vector<8x32xf32>, vector<32x16xf32>, vector<8x16xf32> -> vector<8x16xf32>
    %326 = vector.broadcast %10 : vector<1x16xf32> to vector<8x16xf32>
    %327 = arith.addf %325, %326 : vector<8x16xf32>
    %328 = arith.addf %302, %313 : vector<8x16xf32>
    %cst_96 = arith.constant 3.000000e+00 : f32
    %329 = vector.broadcast %cst_96 : f32 to vector<8x16xf32>
    %330 = arith.mulf %329, %328 : vector<8x16xf32>
    %331 = arith.addf %292, %330 : vector<8x16xf32>
    %cst_97 = arith.constant 0.0178571437 : f32
    %332 = vector.broadcast %cst_97 : f32 to vector<8x16xf32>
    %333 = arith.mulf %332, %331 : vector<8x16xf32>
    %334 = arith.addf %285, %333 : vector<8x16xf32>
    %cst_98 = arith.constant 0.0178571437 : f32
    %335 = vector.broadcast %cst_98 : f32 to vector<8x16xf32>
    %336 = arith.mulf %335, %327 : vector<8x16xf32>
    %337 = arith.addf %334, %336 : vector<8x16xf32>
    %cst_99 = arith.constant dense<0.000000e+00> : vector<8x32xf32>
    %338 = tpu.matmul %337, %7, %cst_99 {dimension_numbers = #tpu.dot_dimension_numbers<[1], [0], [0], [1], [0, 0, 1, 1], [], []>} : vector<8x16xf32>, vector<16x32xf32>, vector<8x32xf32> -> vector<8x32xf32>
    %339 = vector.broadcast %8 : vector<1x32xf32> to vector<8x32xf32>
    %340 = arith.addf %338, %339 : vector<8x32xf32>
    %341 = math.tanh %340 : vector<8x32xf32>
    %cst_100 = arith.constant dense<0.000000e+00> : vector<8x16xf32>
    %342 = tpu.matmul %341, %9, %cst_100 {dimension_numbers = #tpu.dot_dimension_numbers<[1], [0], [0], [1], [0, 0, 1, 1], [], []>} : vector<8x32xf32>, vector<32x16xf32>, vector<8x16xf32> -> vector<8x16xf32>
    %343 = vector.broadcast %10 : vector<1x16xf32> to vector<8x16xf32>
    %344 = arith.addf %342, %343 : vector<8x16xf32>
    %cst_101 = arith.constant 0.0476190485 : f32
    %345 = vector.broadcast %cst_101 : f32 to vector<8x16xf32>
    %346 = arith.mulf %345, %344 : vector<8x16xf32>
    %347 = arith.addf %337, %346 : vector<8x16xf32>
    %cst_102 = arith.constant dense<0.000000e+00> : vector<8x32xf32>
    %348 = tpu.matmul %347, %7, %cst_102 {dimension_numbers = #tpu.dot_dimension_numbers<[1], [0], [0], [1], [0, 0, 1, 1], [], []>} : vector<8x16xf32>, vector<16x32xf32>, vector<8x32xf32> -> vector<8x32xf32>
    %349 = vector.broadcast %8 : vector<1x32xf32> to vector<8x32xf32>
    %350 = arith.addf %348, %349 : vector<8x32xf32>
    %351 = math.tanh %350 : vector<8x32xf32>
    %cst_103 = arith.constant dense<0.000000e+00> : vector<8x16xf32>
    %352 = tpu.matmul %351, %9, %cst_103 {dimension_numbers = #tpu.dot_dimension_numbers<[1], [0], [0], [1], [0, 0, 1, 1], [], []>} : vector<8x32xf32>, vector<32x16xf32>, vector<8x16xf32> -> vector<8x16xf32>
    %353 = vector.broadcast %10 : vector<1x16xf32> to vector<8x16xf32>
    %354 = arith.addf %352, %353 : vector<8x16xf32>
    %355 = arith.subf %337, %346 : vector<8x16xf32>
    %cst_104 = arith.constant 0.142857149 : f32
    %356 = vector.broadcast %cst_104 : f32 to vector<8x16xf32>
    %357 = arith.mulf %356, %354 : vector<8x16xf32>
    %358 = arith.addf %355, %357 : vector<8x16xf32>
    %cst_105 = arith.constant dense<0.000000e+00> : vector<8x32xf32>
    %359 = tpu.matmul %358, %7, %cst_105 {dimension_numbers = #tpu.dot_dimension_numbers<[1], [0], [0], [1], [0, 0, 1, 1], [], []>} : vector<8x16xf32>, vector<16x32xf32>, vector<8x32xf32> -> vector<8x32xf32>
    %360 = vector.broadcast %8 : vector<1x32xf32> to vector<8x32xf32>
    %361 = arith.addf %359, %360 : vector<8x32xf32>
    %362 = math.tanh %361 : vector<8x32xf32>
    %cst_106 = arith.constant dense<0.000000e+00> : vector<8x16xf32>
    %363 = tpu.matmul %362, %9, %cst_106 {dimension_numbers = #tpu.dot_dimension_numbers<[1], [0], [0], [1], [0, 0, 1, 1], [], []>} : vector<8x32xf32>, vector<32x16xf32>, vector<8x16xf32> -> vector<8x16xf32>
    %364 = vector.broadcast %10 : vector<1x16xf32> to vector<8x16xf32>
    %365 = arith.addf %363, %364 : vector<8x16xf32>
    %366 = arith.subf %344, %354 : vector<8x16xf32>
    %cst_107 = arith.constant 0.142857149 : f32
    %367 = vector.broadcast %cst_107 : f32 to vector<8x16xf32>
    %368 = arith.mulf %367, %366 : vector<8x16xf32>
    %369 = arith.addf %337, %368 : vector<8x16xf32>
    %cst_108 = arith.constant 0.142857149 : f32
    %370 = vector.broadcast %cst_108 : f32 to vector<8x16xf32>
    %371 = arith.mulf %370, %365 : vector<8x16xf32>
    %372 = arith.addf %369, %371 : vector<8x16xf32>
    %cst_109 = arith.constant dense<0.000000e+00> : vector<8x32xf32>
    %373 = tpu.matmul %372, %7, %cst_109 {dimension_numbers = #tpu.dot_dimension_numbers<[1], [0], [0], [1], [0, 0, 1, 1], [], []>} : vector<8x16xf32>, vector<16x32xf32>, vector<8x32xf32> -> vector<8x32xf32>
    %374 = vector.broadcast %8 : vector<1x32xf32> to vector<8x32xf32>
    %375 = arith.addf %373, %374 : vector<8x32xf32>
    %376 = math.tanh %375 : vector<8x32xf32>
    %cst_110 = arith.constant dense<0.000000e+00> : vector<8x16xf32>
    %377 = tpu.matmul %376, %9, %cst_110 {dimension_numbers = #tpu.dot_dimension_numbers<[1], [0], [0], [1], [0, 0, 1, 1], [], []>} : vector<8x32xf32>, vector<32x16xf32>, vector<8x16xf32> -> vector<8x16xf32>
    %378 = vector.broadcast %10 : vector<1x16xf32> to vector<8x16xf32>
    %379 = arith.addf %377, %378 : vector<8x16xf32>
    %380 = arith.addf %354, %365 : vector<8x16xf32>
    %cst_111 = arith.constant 3.000000e+00 : f32
    %381 = vector.broadcast %cst_111 : f32 to vector<8x16xf32>
    %382 = arith.mulf %381, %380 : vector<8x16xf32>
    %383 = arith.addf %344, %382 : vector<8x16xf32>
    %cst_112 = arith.constant 0.0178571437 : f32
    %384 = vector.broadcast %cst_112 : f32 to vector<8x16xf32>
    %385 = arith.mulf %384, %383 : vector<8x16xf32>
    %386 = arith.addf %337, %385 : vector<8x16xf32>
    %cst_113 = arith.constant 0.0178571437 : f32
    %387 = vector.broadcast %cst_113 : f32 to vector<8x16xf32>
    %388 = arith.mulf %387, %379 : vector<8x16xf32>
    %389 = arith.addf %386, %388 : vector<8x16xf32>
    %390 = tpu.concatenate %25, %77, %129, %181, %233, %285, %337, %389 in 1 : vector<8x16xf32>, vector<8x16xf32>, vector<8x16xf32>, vector<8x16xf32>, vector<8x16xf32>, vector<8x16xf32>, vector<8x16xf32>, vector<8x16xf32> -> vector<8x128xf32>
    %c0_114 = arith.constant 0 : index
    %c0_115 = arith.constant 0 : index
    %391 = vector.load %arg3[%c0_114, %c0_115] : memref<400x256xf32, #tpu.memory_space<vmem>>, vector<128x256xf32>
    %c128 = arith.constant 128 : index
    %c0_116 = arith.constant 0 : index
    %392 = vector.load %arg3[%c128, %c0_116] : memref<400x256xf32, #tpu.memory_space<vmem>>, vector<256x256xf32>
    %c384 = arith.constant 384 : index
    %c0_117 = arith.constant 0 : index
    %393 = vector.load %arg3[%c384, %c0_117] : memref<400x256xf32, #tpu.memory_space<vmem>>, vector<1x256xf32>
    %c392 = arith.constant 392 : index
    %c0_118 = arith.constant 0 : index
    %394 = vector.load %arg3[%c392, %c0_118] : memref<400x256xf32, #tpu.memory_space<vmem>>, vector<1x256xf32>
    %cst_119 = arith.constant dense<0.000000e+00> : vector<8x256xf32>
    %395 = tpu.matmul %390, %391, %cst_119 {dimension_numbers = #tpu.dot_dimension_numbers<[1], [0], [0], [1], [0, 0, 1, 1], [], []>} : vector<8x128xf32>, vector<128x256xf32>, vector<8x256xf32> -> vector<8x256xf32>
    %396 = vector.broadcast %393 : vector<1x256xf32> to vector<8x256xf32>
    %397 = arith.addf %395, %396 : vector<8x256xf32>
    %398 = math.tanh %397 : vector<8x256xf32>
    %cst_120 = arith.constant dense<0.000000e+00> : vector<8x256xf32>
    %399 = tpu.matmul %398, %392, %cst_120 {dimension_numbers = #tpu.dot_dimension_numbers<[1], [0], [0], [1], [0, 0, 1, 1], [], []>} : vector<8x256xf32>, vector<256x256xf32>, vector<8x256xf32> -> vector<8x256xf32>
    %400 = vector.broadcast %394 : vector<1x256xf32> to vector<8x256xf32>
    %401 = arith.addf %399, %400 : vector<8x256xf32>
    %402 = arith.negf %401 : vector<8x256xf32>
    %403 = math.exp %402 : vector<8x256xf32>
    %cst_121 = arith.constant 1.000000e+00 : f32
    %404 = vector.broadcast %cst_121 : f32 to vector<8x256xf32>
    %405 = arith.addf %404, %403 : vector<8x256xf32>
    %406 = arith.divf %404, %405 : vector<8x256xf32>
    %c0_122 = arith.constant 0 : index
    %c0_123 = arith.constant 0 : index
    %407 = vector.load %arg5[%c0_122, %c0_123] : memref<8x256xf32, #tpu.memory_space<vmem>>, vector<8x256xf32>
    tpu.vector_store %arg5[%c0_122, %c0_123], %406 {strides = array<i32>} : memref<8x256xf32, #tpu.memory_space<vmem>>, vector<8x256xf32>,
    return
  }
}

</mosaic_0001>

<llo_original>
// kernel: tpu_custom_call.1
$region0: #{tpu_custom_call.1}
  #allocation0 [shape = 'u32[]', space=smem, size = 0x4, offset = 0x4, fixed_abs, tag = 'smem constant byte address 0x4 - core index']
  #allocation1 [shape = 'u32[144,128]{1,0:T(1,128)}', space=vmem, size = 0x12000, scoped, tag = 'internal scratch']
  %s0 = inlined_call_operand.hbm [shape: f32[8,32], index: 0, kind: input, shape index: {}]
  %s1 = inlined_call_operand.hbm [shape: f32[8,16], index: 1, kind: input, shape index: {}]
  %s2 = inlined_call_operand.hbm [shape: f32[120,128], index: 2, kind: input, shape index: {}]
  %s3 = inlined_call_operand.hbm [shape: f32[400,256], index: 3, kind: input, shape index: {}]
  %s4 = inlined_call_operand.hbm [shape: f32[8,128], index: 4, kind: output, shape index: {0}]
  %s5 = inlined_call_operand.hbm [shape: f32[8,256], index: 5, kind: output, shape index: {1}]
  %6 = xla_tuple %s4, %s5
  %s7 = sld [smem:[#allocation0]]
  $region50: #{tpu_custom_call.1} parent=0
    _
  %s9 = ssub.s32 1, %s7
  %s10 = scalar_select 0, %s9, %s7
  $region1: #{tpu_custom_call.1} parent=0
    #allocation2 [shape = 'u8[4096]{0}', space=vmem, size = 0x1000, scoped, tag = 'input window, operand 0, single buffered']
    #allocation3 [shape = 's32[1]{0}', space=sflag, size = 0x4, scoped, tag = 'scoped memory for tpu_custom_call.1']
    #allocation4 [shape = 's32[1]{0}', space=sflag, size = 0x4, scoped, tag = 'scoped memory for tpu_custom_call.1']
    #allocation5 [shape = 'u8[4096]{0}', space=vmem, size = 0x1000, scoped, tag = 'input window, operand 1, single buffered']
    #allocation6 [shape = 's32[1]{0}', space=sflag, size = 0x4, scoped, tag = 'scoped memory for tpu_custom_call.1']
    #allocation7 [shape = 'u8[61440]{0}', space=vmem, size = 0xf000, scoped, tag = 'input window, operand 2, single buffered']
    #allocation8 [shape = 'u8[409600]{0}', space=vmem, size = 0x64000, scoped, tag = 'input window, operand 3, single buffered']
    #allocation9 [shape = 's32[1]{0}', space=sflag, size = 0x4, scoped, tag = 'scoped memory for tpu_custom_call.1']
    #allocation10 [shape = 'u8[4096]{0}', space=vmem, size = 0x1000, scoped, tag = 'output window, operand 0, single buffered']
    #allocation11 [shape = 'u8[8192]{0}', space=vmem, size = 0x2000, scoped, tag = 'output window, operand 1, single buffered']
    #allocation12 [shape = 's32[1]{0}', space=sflag, size = 0x4, scoped, tag = 'scoped memory for tpu_custom_call.1']
    %11 = vsyncpa [#allocation3], 0
    %12 = vsyncpa [#allocation6], 0
    %13 = vsyncpa [#allocation9], 0
    %14 = vsyncpa [#allocation4], 0
    %15 = vsyncpa [#allocation12], 0
    // Predicated region
    $region2: #{tpu_custom_call.1} parent=1 // pred_check
      _
    $region3: #{tpu_custom_call.1} parent=1 // pred_check_branch
      %17 = sbr.rel (0) target = $region5
    $region4: #{tpu_custom_call.1} parent=1 // pred_region
      %s19 = ssub.s32 128, 128
      %20 = vsyncadd [#allocation3], %s19
      %s22 = sshll.u32 [#allocation2], 4
      %s23 = int_to_ptr.vmem [resolvable:$true] %s22
      %25 = dma.hbm_to_vmem [thread:$0]  %s0, 128, %s23, [#allocation3]
    $region5: #{tpu_custom_call.1} parent=1 // pred_fallthru
      _
    // Predicated region
    $region6: #{tpu_custom_call.1} parent=1 // pred_check
      _
    $region7: #{tpu_custom_call.1} parent=1 // pred_check_branch
      %27 = sbr.rel (0) target = $region9
    $region8: #{tpu_custom_call.1} parent=1 // pred_region
      %s29 = ssub.s32 128, 128
      %30 = vsyncadd [#allocation6], %s29
      %s32 = sshll.u32 [#allocation5], 4
      %s33 = int_to_ptr.vmem [resolvable:$true] %s32
      %35 = dma.hbm_to_vmem [thread:$0]  %s1, 128, %s33, [#allocation6]
    $region9: #{tpu_custom_call.1} parent=1 // pred_fallthru
      _
    // Predicated region
    $region10: #{tpu_custom_call.1} parent=1 // pred_check
      _
    $region11: #{tpu_custom_call.1} parent=1 // pred_check_branch
      %37 = sbr.rel (0) target = $region13
    $region12: #{tpu_custom_call.1} parent=1 // pred_region
      %s39 = ssub.s32 1920, 1920
      %40 = vsyncadd [#allocation6], %s39
      %s41 = sshll.u32 [#allocation7], 4
      %s42 = int_to_ptr.vmem [resolvable:$true] %s41
      %47 = dma.hbm_to_vmem [thread:$0]  %s2, 1920, %s42, [#allocation6], 128, 128, 8
    $region13: #{tpu_custom_call.1} parent=1 // pred_fallthru
      _
    // Predicated region
    $region14: #{tpu_custom_call.1} parent=1 // pred_check
      _
    $region15: #{tpu_custom_call.1} parent=1 // pred_check_branch
      %49 = sbr.rel (0) target = $region17
    $region16: #{tpu_custom_call.1} parent=1 // pred_region
      %s51 = ssub.s32 12800, 12800
      %52 = vsyncadd [#allocation9], %s51
      %s53 = sshll.u32 [#allocation8], 4
      %s54 = int_to_ptr.vmem [resolvable:$true] %s53
      %59 = dma.hbm_to_vmem [thread:$0]  %s3, 12800, %s54, [#allocation9], 256, 256, 16
    $region17: #{tpu_custom_call.1} parent=1 // pred_fallthru
      _
    // Predicated region
    $region18: #{tpu_custom_call.1} parent=1 // pred_check
      _
    $region19: #{tpu_custom_call.1} parent=1 // pred_check_branch
      %61 = sbr.rel (0) target = $region21
    $region20: #{tpu_custom_call.1} parent=1 // pred_region
      %62 = dma.done [#allocation3], 128
    $region21: #{tpu_custom_call.1} parent=1 // pred_fallthru
      _
    // Predicated region
    $region22: #{tpu_custom_call.1} parent=1 // pred_check
      _
    $region23: #{tpu_custom_call.1} parent=1 // pred_check_branch
      %64 = sbr.rel (0) target = $region25
    $region24: #{tpu_custom_call.1} parent=1 // pred_region
      %65 = dma.done [#allocation6], 128
    $region25: #{tpu_custom_call.1} parent=1 // pred_fallthru
      _
    // Predicated region
    $region26: #{tpu_custom_call.1} parent=1 // pred_check
      _
    $region27: #{tpu_custom_call.1} parent=1 // pred_check_branch
      %67 = sbr.rel (0) target = $region29
    $region28: #{tpu_custom_call.1} parent=1 // pred_region
      %68 = dma.done [#allocation6], 1920
    $region29: #{tpu_custom_call.1} parent=1 // pred_fallthru
      _
    // Predicated region
    $region30: #{tpu_custom_call.1} parent=1 // pred_check
      _
    $region31: #{tpu_custom_call.1} parent=1 // pred_check_branch
      %70 = sbr.rel (0) target = $region33
    $region32: #{tpu_custom_call.1} parent=1 // pred_region
      %71 = dma.done [#allocation9], 12800
    $region33: #{tpu_custom_call.1} parent=1 // pred_fallthru
      _
    %v72 = vld [vmem:[#allocation2] sm:$0xff]
    %v73 = vld [vmem:[#allocation5] sm:$0xff]
    %v74 = vld [vmem:[#allocation7] sm:$0xff]
    %v75 = vld [vmem:[#allocation7 + $0x8] sm:$0xff]
    %v76 = vld [vmem:[#allocation7 + $0x10] sm:$0xff]
    %v77 = vld [vmem:[#allocation7 + $0x18] sm:$0xff]
    %v78 = vld [vmem:[#allocation7 + $0x20] sm:$0xff]
    %v79 = vld [vmem:[#allocation7 + $0x28] sm:$0xff]
    %v80 = vld [vmem:[#allocation7 + $0x30] sm:$0xff]
    %v81 = vld [vmem:[#allocation7 + $0x38] sm:$0xff]
    %v82 = vld [vmem:[#allocation7 + $0x40] sm:$0xff]
    %v83 = vld [vmem:[#allocation7 + $0x48] sm:$0xff]
    %v84 = vld [vmem:[#allocation7 + $0x50] sm:$0xff]
    %v85 = vld [vmem:[#allocation7 + $0x58] sm:$0xff]
    %v86 = vld [vmem:[#allocation7 + $0x60] sm:$0xff]
    %v87 = vld [vmem:[#allocation7 + $0x68] sm:$0xff]
    %v88 = vld [vmem:[#allocation7 + $0x70] sm:$0xff]
    %v89 = vlaneseq
    %v90 = vshrl.u32 %v89, 7
    %v91 = vsub.s32 0, %v90
    %v92 = vrot.slane %v88, %v91
    %vm93 = vcmask 261120
    %v95 = vsel %vm93, %v72, 0
    %97 = vmatprep.subr.mxu0 0.0
    %98 = vmatpush1.msra.mxu0 %v74
    %99 = vmatprep.subr.mxu0 0.0
    %100 = vmatpush1.msra.mxu0 %v75
    %101 = vmatprep.subr.mxu0 0.0
    %102 = vmatpush1.msra.mxu0 %v76
    %103 = vmatprep.subr.mxu0 0.0
    %104 = vmatpush1.msra.mxu0 %v77
    %105 = vmatprep.subr.mxu0 0.0
    %106 = vmatpush1.msra.mxu0 0.0
    %107 = vmatprep.subr.mxu0 0.0
    %108 = vmatpush1.msra.mxu0 0.0
    %109 = vmatprep.subr.mxu0 0.0
    %110 = vmatpush1.msra.mxu0 0.0
    %111 = vmatprep.subr.mxu0 0.0
    %112 = vmatpush1.msra.mxu0 0.0
    %113 = vmatprep.subr.mxu0 0.0
    %114 = vmatpush1.msra.mxu0 0.0
    %115 = vmatprep.subr.mxu0 0.0
    %116 = vmatpush1.msra.mxu0 0.0
    %117 = vmatprep.subr.mxu0 0.0
    %118 = vmatpush1.msra.mxu0 0.0
    %119 = vmatprep.subr.mxu0 0.0
    %120 = vmatpush1.msra.mxu0 0.0
    %121 = vmatprep.subr.mxu0 0.0
    %122 = vmatpush1.msra.mxu0 0.0
    %123 = vmatprep.subr.mxu0 0.0
    %124 = vmatpush1.msra.mxu0 0.0
    %125 = vmatprep.subr.mxu0 0.0
    %126 = vmatpush1.msra.mxu0 0.0
    %127 = vmatprep.subr.mxu0 0.0
    %128 = vmatpush1.msra.mxu0 0.0
    %129 = vmatprep.subr.mxu0 0.0
    %130 = vmatpush1.msra.mxu0 0.0
    %131 = vmatprep.subr.mxu0 0.0
    %132 = vmatpush1.msra.mxu0 0.0
    %133 = vmatprep.subr.mxu0 0.0
    %134 = vmatpush1.msra.mxu0 0.0
    %135 = vmatprep.subr.mxu0 0.0
    %136 = vmatpush1.msra.mxu0 0.0
    %137 = vmatprep.subr.mxu0 0.0
    %138 = vmatpush1.msra.mxu0 0.0
    %139 = vmatprep.subr.mxu0 0.0
    %140 = vmatpush1.msra.mxu0 0.0
    %141 = vmatprep.subr.mxu0 0.0
    %142 = vmatpush1.msra.mxu0 0.0
    %143 = vmatprep.subr.mxu0 0.0
    %144 = vmatpush1.msra.mxu0 0.0
    %145 = vmatprep.subr.mxu0 0.0
    %146 = vmatpush1.msra.mxu0 0.0
    %147 = vmatprep.subr.mxu0 0.0
    %148 = vmatpush1.msra.mxu0 0.0
    %149 = vmatprep.subr.mxu0 0.0
    %150 = vmatpush1.msra.mxu0 0.0
    %151 = vmatprep.subr.mxu0 0.0
    %152 = vmatpush1.msra.mxu0 0.0
    %153 = vmatprep.subr.mxu0 0.0
    %154 = vmatpush1.msra.mxu0 0.0
    %155 = vmatprep.subr.mxu0 0.0
    %156 = vmatpush1.msra.mxu0 0.0
    %157 = vmatprep.subr.mxu0 0.0
    %158 = vmatpush1.msra.mxu0 0.0
    %159 = vmatprep.subr.mxu0 0.0
    %160 = vmatpush1.msra.mxu0 0.0
    %161 = vmatprep.mubr.f32.mxu0 0.0
    %162 = vmatmul.mubr.f32.gmra.mrb[0].mxu0 %v95
    %v163 = vpop.f32.mrb[0].mxu0
    %v164 = vadd.f32 %v92, %v163
    %v165 = vpop.f32.mrb[0].mxu0
    %166 = vdwg.mxu0
    %v167 = vtanh.pop %v164
    %v168 = vlaneseq
    %v169 = vshrl.u32 %v168, 7
    %v170 = vsub.s32 1, %v169
    %v171 = vrot.slane %v88, %v170
    %v173 = vsel %vm93, %v167, 0
    %175 = vmatprep.subr.mxu0 0.0
    %176 = vmatpush1.msra.mxu0 %v78
    %177 = vmatprep.subr.mxu0 0.0
    %178 = vmatpush1.msra.mxu0 %v79
    %179 = vmatprep.subr.mxu0 0.0
    %180 = vmatpush1.msra.mxu0 %v80
    %181 = vmatprep.subr.mxu0 0.0
    %182 = vmatpush1.msra.mxu0 %v81
    %183 = vmatprep.subr.mxu0 0.0
    %184 = vmatpush1.msra.mxu0 0.0
    %185 = vmatprep.subr.mxu0 0.0
    %186 = vmatpush1.msra.mxu0 0.0
    %187 = vmatprep.subr.mxu0 0.0
    %188 = vmatpush1.msra.mxu0 0.0
    %189 = vmatprep.subr.mxu0 0.0
    %190 = vmatpush1.msra.mxu0 0.0
    %191 = vmatprep.subr.mxu0 0.0
    %192 = vmatpush1.msra.mxu0 0.0
    %193 = vmatprep.subr.mxu0 0.0
    %194 = vmatpush1.msra.mxu0 0.0
    %195 = vmatprep.subr.mxu0 0.0
    %196 = vmatpush1.msra.mxu0 0.0
    %197 = vmatprep.subr.mxu0 0.0
    %198 = vmatpush1.msra.mxu0 0.0
    %199 = vmatprep.subr.mxu0 0.0
    %200 = vmatpush1.msra.mxu0 0.0
    %201 = vmatprep.subr.mxu0 0.0
    %202 = vmatpush1.msra.mxu0 0.0
    %203 = vmatprep.subr.mxu0 0.0
    %204 = vmatpush1.msra.mxu0 0.0
    %205 = vmatprep.subr.mxu0 0.0
    %206 = vmatpush1.msra.mxu0 0.0
    %207 = vmatprep.subr.mxu0 0.0
    %208 = vmatpush1.msra.mxu0 0.0
    %209 = vmatprep.subr.mxu0 0.0
    %210 = vmatpush1.msra.mxu0 0.0
    %211 = vmatprep.subr.mxu0 0.0
    %212 = vmatpush1.msra.mxu0 0.0
    %213 = vmatprep.subr.mxu0 0.0
    %214 = vmatpush1.msra.mxu0 0.0
    %215 = vmatprep.subr.mxu0 0.0
    %216 = vmatpush1.msra.mxu0 0.0
    %217 = vmatprep.subr.mxu0 0.0
    %218 = vmatpush1.msra.mxu0 0.0
    %219 = vmatprep.subr.mxu0 0.0
    %220 = vmatpush1.msra.mxu0 0.0
    %221 = vmatprep.subr.mxu0 0.0
    %222 = vmatpush1.msra.mxu0 0.0
    %223 = vmatprep.subr.mxu0 0.0
    %224 = vmatpush1.msra.mxu0 0.0
    %225 = vmatprep.subr.mxu0 0.0
    %226 = vmatpush1.msra.mxu0 0.0
    %227 = vmatprep.subr.mxu0 0.0
    %228 = vmatpush1.msra.mxu0 0.0
    %229 = vmatprep.subr.mxu0 0.0
    %230 = vmatpush1.msra.mxu0 0.0
    %231 = vmatprep.subr.mxu0 0.0
    %232 = vmatpush1.msra.mxu0 0.0
    %233 = vmatprep.subr.mxu0 0.0
    %234 = vmatpush1.msra.mxu0 0.0
    %235 = vmatprep.subr.mxu0 0.0
    %236 = vmatpush1.msra.mxu0 0.0
    %237 = vmatprep.subr.mxu0 0.0
    %238 = vmatpush1.msra.mxu0 0.0
    %239 = vmatprep.mubr.f32.mxu0 0.0
    %240 = vmatmul.mubr.f32.gmra.mrb[0].mxu0 %v173
    %v241 = vpop.f32.mrb[0].mxu0
    %v242 = vadd.f32 %v171, %v241
    %v243 = vpop.f32.mrb[0].mxu0
    %244 = vdwg.mxu0
    %245 = vst [vmem:[#allocation10] sm:$0xff] %v242
    %v246 = vmul.f32 %v242, 0.5
    %v247 = vmul.f32 %v246, 1.442695
    %v248 = vpow.pop %v247
    %250 = vrot.lane.b32.xlu0 %v248, 112
    %v251 = vpop.permute.xlu0 %250
    %v253 = vmul.f32 %v73, %v251
    %v254 = vadd.f32 %v253, %v242
    %v255 = vlaneseq
    %v256 = vshrl.u32 %v255, 7
    %v257 = vsub.s32 2, %v256
    %v258 = vrot.slane %v88, %v257
    %vm259 = vcmask 130048
    %v261 = vsel %vm259, %v254, 0
    %263 = vmatprep.subr.mxu0 0.0
    %264 = vmatpush1.msra.mxu0 %v82
    %265 = vmatprep.subr.mxu0 0.0
    %266 = vmatpush1.msra.mxu0 %v83
    %267 = vmatprep.subr.mxu0 0.0
    %268 = vmatpush1.msra.mxu0 0.0
    %269 = vmatprep.subr.mxu0 0.0
    %270 = vmatpush1.msra.mxu0 0.0
    %271 = vmatprep.subr.mxu0 0.0
    %272 = vmatpush1.msra.mxu0 0.0
    %273 = vmatprep.subr.mxu0 0.0
    %274 = vmatpush1.msra.mxu0 0.0
    %275 = vmatprep.subr.mxu0 0.0
    %276 = vmatpush1.msra.mxu0 0.0
    %277 = vmatprep.subr.mxu0 0.0
    %278 = vmatpush1.msra.mxu0 0.0
    %279 = vmatprep.subr.mxu0 0.0
    %280 = vmatpush1.msra.mxu0 0.0
    %281 = vmatprep.subr.mxu0 0.0
    %282 = vmatpush1.msra.mxu0 0.0
    %283 = vmatprep.subr.mxu0 0.0
    %284 = vmatpush1.msra.mxu0 0.0
    %285 = vmatprep.subr.mxu0 0.0
    %286 = vmatpush1.msra.mxu0 0.0
    %287 = vmatprep.subr.mxu0 0.0
    %288 = vmatpush1.msra.mxu0 0.0
    %289 = vmatprep.subr.mxu0 0.0
    %290 = vmatpush1.msra.mxu0 0.0
    %291 = vmatprep.subr.mxu0 0.0
    %292 = vmatpush1.msra.mxu0 0.0
    %293 = vmatprep.subr.mxu0 0.0
    %294 = vmatpush1.msra.mxu0 0.0
    %295 = vmatprep.subr.mxu0 0.0
    %296 = vmatpush1.msra.mxu0 0.0
    %297 = vmatprep.subr.mxu0 0.0
    %298 = vmatpush1.msra.mxu0 0.0
    %299 = vmatprep.subr.mxu0 0.0
    %300 = vmatpush1.msra.mxu0 0.0
    %301 = vmatprep.subr.mxu0 0.0
    %302 = vmatpush1.msra.mxu0 0.0
    %303 = vmatprep.subr.mxu0 0.0
    %304 = vmatpush1.msra.mxu0 0.0
    %305 = vmatprep.subr.mxu0 0.0
    %306 = vmatpush1.msra.mxu0 0.0
    %307 = vmatprep.subr.mxu0 0.0
    %308 = vmatpush1.msra.mxu0 0.0
    %309 = vmatprep.subr.mxu0 0.0
    %310 = vmatpush1.msra.mxu0 0.0
    %311 = vmatprep.subr.mxu0 0.0
    %312 = vmatpush1.msra.mxu0 0.0
    %313 = vmatprep.subr.mxu0 0.0
    %314 = vmatpush1.msra.mxu0 0.0
    %315 = vmatprep.subr.mxu0 0.0
    %316 = vmatpush1.msra.mxu0 0.0
    %317 = vmatprep.subr.mxu0 0.0
    %318 = vmatpush1.msra.mxu0 0.0
    %319 = vmatprep.subr.mxu0 0.0
    %320 = vmatpush1.msra.mxu0 0.0
    %321 = vmatprep.subr.mxu0 0.0
    %322 = vmatpush1.msra.mxu0 0.0
    %323 = vmatprep.subr.mxu0 0.0
    %324 = vmatpush1.msra.mxu0 0.0
    %325 = vmatprep.subr.mxu0 0.0
    %326 = vmatpush1.msra.mxu0 0.0
    %327 = vmatprep.mubr.f32.mxu0 0.0
    %328 = vmatmul.mubr.f32.gmra.mrb[0].mxu0 %v261
    %v329 = vpop.f32.mrb[0].mxu0
    %v330 = vadd.f32 %v258, %v329
    %v331 = vpop.f32.mrb[0].mxu0
    %332 = vdwg.mxu0
    %v333 = vtanh.pop %v330
    %v334 = vlaneseq
    %v335 = vshrl.u32 %v334, 7
    %v336 = vsub.s32 3, %v335
    %v337 = vrot.slane %v88, %v336
    %v339 = vsel %vm93, %v333, 0
    %341 = vmatprep.subr.mxu0 0.0
    %342 = vmatpush1.msra.mxu0 %v84
    %343 = vmatprep.subr.mxu0 0.0
    %344 = vmatpush1.msra.mxu0 %v85
    %345 = vmatprep.subr.mxu0 0.0
    %346 = vmatpush1.msra.mxu0 %v86
    %347 = vmatprep.subr.mxu0 0.0
    %348 = vmatpush1.msra.mxu0 %v87
    %349 = vmatprep.subr.mxu0 0.0
    %350 = vmatpush1.msra.mxu0 0.0
    %351 = vmatprep.subr.mxu0 0.0
    %352 = vmatpush1.msra.mxu0 0.0
    %353 = vmatprep.subr.mxu0 0.0
    %354 = vmatpush1.msra.mxu0 0.0
    %355 = vmatprep.subr.mxu0 0.0
    %356 = vmatpush1.msra.mxu0 0.0
    %357 = vmatprep.subr.mxu0 0.0
    %358 = vmatpush1.msra.mxu0 0.0
    %359 = vmatprep.subr.mxu0 0.0
    %360 = vmatpush1.msra.mxu0 0.0
    %361 = vmatprep.subr.mxu0 0.0
    %362 = vmatpush1.msra.mxu0 0.0
    %363 = vmatprep.subr.mxu0 0.0
    %364 = vmatpush1.msra.mxu0 0.0
    %365 = vmatprep.subr.mxu0 0.0
    %366 = vmatpush1.msra.mxu0 0.0
    %367 = vmatprep.subr.mxu0 0.0
    %368 = vmatpush1.msra.mxu0 0.0
    %369 = vmatprep.subr.mxu0 0.0
    %370 = vmatpush1.msra.mxu0 0.0
    %371 = vmatprep.subr.mxu0 0.0
    %372 = vmatpush1.msra.mxu0 0.0
    %373 = vmatprep.subr.mxu0 0.0
    %374 = vmatpush1.msra.mxu0 0.0
    %375 = vmatprep.subr.mxu0 0.0
    %376 = vmatpush1.msra.mxu0 0.0
    %377 = vmatprep.subr.mxu0 0.0
    %378 = vmatpush1.msra.mxu0 0.0
    %379 = vmatprep.subr.mxu0 0.0
    %380 = vmatpush1.msra.mxu0 0.0
    %381 = vmatprep.subr.mxu0 0.0
    %382 = vmatpush1.msra.mxu0 0.0
    %383 = vmatprep.subr.mxu0 0.0
    %384 = vmatpush1.msra.mxu0 0.0
    %385 = vmatprep.subr.mxu0 0.0
    %386 = vmatpush1.msra.mxu0 0.0
    %387 = vmatprep.subr.mxu0 0.0
    %388 = vmatpush1.msra.mxu0 0.0
    %389 = vmatprep.subr.mxu0 0.0
    %390 = vmatpush1.msra.mxu0 0.0
    %391 = vmatprep.subr.mxu0 0.0
    %392 = vmatpush1.msra.mxu0 0.0
    %393 = vmatprep.subr.mxu0 0.0
    %394 = vmatpush1.msra.mxu0 0.0
    %395 = vmatprep.subr.mxu0 0.0
    %396 = vmatpush1.msra.mxu0 0.0
    %397 = vmatprep.subr.mxu0 0.0
    %398 = vmatpush1.msra.mxu0 0.0
    %399 = vmatprep.subr.mxu0 0.0
    %400 = vmatpush1.msra.mxu0 0.0
    %401 = vmatprep.subr.mxu0 0.0
    %402 = vmatpush1.msra.mxu0 0.0
    %403 = vmatprep.subr.mxu0 0.0
    %404 = vmatpush1.msra.mxu0 0.0
    %405 = vmatprep.mubr.f32.mxu0 0.0
    %406 = vmatmul.mubr.f32.gmra.mrb[0].mxu0 %v339
    %v407 = vpop.f32.mrb[0].mxu0
    %v408 = vadd.f32 %v337, %v407
    %v409 = vpop.f32.mrb[0].mxu0
    %410 = vdwg.mxu0
    %v411 = vmul.f32 %v408, 0.04761905
    %v412 = vadd.f32 %v254, %v411
    %v414 = vsel %vm259, %v412, 0
    %416 = vmatprep.subr.mxu0 0.0
    %417 = vmatpush1.msra.mxu0 %v82
    %418 = vmatprep.subr.mxu0 0.0
    %419 = vmatpush1.msra.mxu0 %v83
    %420 = vmatprep.subr.mxu0 0.0
    %421 = vmatpush1.msra.mxu0 0.0
    %422 = vmatprep.subr.mxu0 0.0
    %423 = vmatpush1.msra.mxu0 0.0
    %424 = vmatprep.subr.mxu0 0.0
    %425 = vmatpush1.msra.mxu0 0.0
    %426 = vmatprep.subr.mxu0 0.0
    %427 = vmatpush1.msra.mxu0 0.0
    %428 = vmatprep.subr.mxu0 0.0
    %429 = vmatpush1.msra.mxu0 0.0
    %430 = vmatprep.subr.mxu0 0.0
    %431 = vmatpush1.msra.mxu0 0.0
    %432 = vmatprep.subr.mxu0 0.0
    %433 = vmatpush1.msra.mxu0 0.0
    %434 = vmatprep.subr.mxu0 0.0
    %435 = vmatpush1.msra.mxu0 0.0
    %436 = vmatprep.subr.mxu0 0.0
    %437 = vmatpush1.msra.mxu0 0.0
    %438 = vmatprep.subr.mxu0 0.0
    %439 = vmatpush1.msra.mxu0 0.0
    %440 = vmatprep.subr.mxu0 0.0
    %441 = vmatpush1.msra.mxu0 0.0
    %442 = vmatprep.subr.mxu0 0.0
    %443 = vmatpush1.msra.mxu0 0.0
    %444 = vmatprep.subr.mxu0 0.0
    %445 = vmatpush1.msra.mxu0 0.0
    %446 = vmatprep.subr.mxu0 0.0
    %447 = vmatpush1.msra.mxu0 0.0
    %448 = vmatprep.subr.mxu0 0.0
    %449 = vmatpush1.msra.mxu0 0.0
    %450 = vmatprep.subr.mxu0 0.0
    %451 = vmatpush1.msra.mxu0 0.0
    %452 = vmatprep.subr.mxu0 0.0
    %453 = vmatpush1.msra.mxu0 0.0
    %454 = vmatprep.subr.mxu0 0.0
    %455 = vmatpush1.msra.mxu0 0.0
    %456 = vmatprep.subr.mxu0 0.0
    %457 = vmatpush1.msra.mxu0 0.0
    %458 = vmatprep.subr.mxu0 0.0
    %459 = vmatpush1.msra.mxu0 0.0
    %460 = vmatprep.subr.mxu0 0.0
    %461 = vmatpush1.msra.mxu0 0.0
    %462 = vmatprep.subr.mxu0 0.0
    %463 = vmatpush1.msra.mxu0 0.0
    %464 = vmatprep.subr.mxu0 0.0
    %465 = vmatpush1.msra.mxu0 0.0
    %466 = vmatprep.subr.mxu0 0.0
    %467 = vmatpush1.msra.mxu0 0.0
    %468 = vmatprep.subr.mxu0 0.0
    %469 = vmatpush1.msra.mxu0 0.0
    %470 = vmatprep.subr.mxu0 0.0
    %471 = vmatpush1.msra.mxu0 0.0
    %472 = vmatprep.subr.mxu0 0.0
    %473 = vmatpush1.msra.mxu0 0.0
    %474 = vmatprep.subr.mxu0 0.0
    %475 = vmatpush1.msra.mxu0 0.0
    %476 = vmatprep.subr.mxu0 0.0
    %477 = vmatpush1.msra.mxu0 0.0
    %478 = vmatprep.subr.mxu0 0.0
    %479 = vmatpush1.msra.mxu0 0.0
    %480 = vmatprep.mubr.f32.mxu0 0.0
    %481 = vmatmul.mubr.f32.gmra.mrb[0].mxu0 %v414
    %v482 = vpop.f32.mrb[0].mxu0
    %v483 = vadd.f32 %v258, %v482
    %v484 = vpop.f32.mrb[0].mxu0
    %485 = vdwg.mxu0
    %v486 = vtanh.pop %v483
    %v488 = vsel %vm93, %v486, 0
    %490 = vmatprep.subr.mxu0 0.0
    %491 = vmatpush1.msra.mxu0 %v84
    %492 = vmatprep.subr.mxu0 0.0
    %493 = vmatpush1.msra.mxu0 %v85
    %494 = vmatprep.subr.mxu0 0.0
    %495 = vmatpush1.msra.mxu0 %v86
    %496 = vmatprep.subr.mxu0 0.0
    %497 = vmatpush1.msra.mxu0 %v87
    %498 = vmatprep.subr.mxu0 0.0
    %499 = vmatpush1.msra.mxu0 0.0
    %500 = vmatprep.subr.mxu0 0.0
    %501 = vmatpush1.msra.mxu0 0.0
    %502 = vmatprep.subr.mxu0 0.0
    %503 = vmatpush1.msra.mxu0 0.0
    %504 = vmatprep.subr.mxu0 0.0
    %505 = vmatpush1.msra.mxu0 0.0
    %506 = vmatprep.subr.mxu0 0.0
    %507 = vmatpush1.msra.mxu0 0.0
    %508 = vmatprep.subr.mxu0 0.0
    %509 = vmatpush1.msra.mxu0 0.0
    %510 = vmatprep.subr.mxu0 0.0
    %511 = vmatpush1.msra.mxu0 0.0
    %512 = vmatprep.subr.mxu0 0.0
    %513 = vmatpush1.msra.mxu0 0.0
    %514 = vmatprep.subr.mxu0 0.0
    %515 = vmatpush1.msra.mxu0 0.0
    %516 = vmatprep.subr.mxu0 0.0
    %517 = vmatpush1.msra.mxu0 0.0
    %518 = vmatprep.subr.mxu0 0.0
    %519 = vmatpush1.msra.mxu0 0.0
    %520 = vmatprep.subr.mxu0 0.0
    %521 = vmatpush1.msra.mxu0 0.0
    %522 = vmatprep.subr.mxu0 0.0
    %523 = vmatpush1.msra.mxu0 0.0
    %524 = vmatprep.subr.mxu0 0.0
    %525 = vmatpush1.msra.mxu0 0.0
    %526 = vmatprep.subr.mxu0 0.0
    %527 = vmatpush1.msra.mxu0 0.0
    %528 = vmatprep.subr.mxu0 0.0
    %529 = vmatpush1.msra.mxu0 0.0
    %530 = vmatprep.subr.mxu0 0.0
    %531 = vmatpush1.msra.mxu0 0.0
    %532 = vmatprep.subr.mxu0 0.0
    %533 = vmatpush1.msra.mxu0 0.0
    %534 = vmatprep.subr.mxu0 0.0
    %535 = vmatpush1.msra.mxu0 0.0
    %536 = vmatprep.subr.mxu0 0.0
    %537 = vmatpush1.msra.mxu0 0.0
    %538 = vmatprep.subr.mxu0 0.0
    %539 = vmatpush1.msra.mxu0 0.0
    %540 = vmatprep.subr.mxu0 0.0
    %541 = vmatpush1.msra.mxu0 0.0
    %542 = vmatprep.subr.mxu0 0.0
    %543 = vmatpush1.msra.mxu0 0.0
    %544 = vmatprep.subr.mxu0 0.0
    %545 = vmatpush1.msra.mxu0 0.0
    %546 = vmatprep.subr.mxu0 0.0
    %547 = vmatpush1.msra.mxu0 0.0
    %548 = vmatprep.subr.mxu0 0.0
    %549 = vmatpush1.msra.mxu0 0.0
    %550 = vmatprep.subr.mxu0 0.0
    %551 = vmatpush1.msra.mxu0 0.0
    %552 = vmatprep.subr.mxu0 0.0
    %553 = vmatpush1.msra.mxu0 0.0
    %554 = vmatprep.mubr.f32.mxu0 0.0
    %555 = vmatmul.mubr.f32.gmra.mrb[0].mxu0 %v488
    %v556 = vpop.f32.mrb[0].mxu0
    %v557 = vadd.f32 %v337, %v556
    %v558 = vpop.f32.mrb[0].mxu0
    %559 = vdwg.mxu0
    %v560 = vsub.f32 %v254, %v411
    %v561 = vmul.f32 %v557, 0.14285715
    %v562 = vadd.f32 %v560, %v561
    %v564 = vsel %vm259, %v562, 0
    %566 = vmatprep.subr.mxu0 0.0
    %567 = vmatpush1.msra.mxu0 %v82
    %568 = vmatprep.subr.mxu0 0.0
    %569 = vmatpush1.msra.mxu0 %v83
    %570 = vmatprep.subr.mxu0 0.0
    %571 = vmatpush1.msra.mxu0 0.0
    %572 = vmatprep.subr.mxu0 0.0
    %573 = vmatpush1.msra.mxu0 0.0
    %574 = vmatprep.subr.mxu0 0.0
    %575 = vmatpush1.msra.mxu0 0.0
    %576 = vmatprep.subr.mxu0 0.0
    %577 = vmatpush1.msra.mxu0 0.0
    %578 = vmatprep.subr.mxu0 0.0
    %579 = vmatpush1.msra.mxu0 0.0
    %580 = vmatprep.subr.mxu0 0.0
    %581 = vmatpush1.msra.mxu0 0.0
    %582 = vmatprep.subr.mxu0 0.0
    %583 = vmatpush1.msra.mxu0 0.0
    %584 = vmatprep.subr.mxu0 0.0
    %585 = vmatpush1.msra.mxu0 0.0
    %586 = vmatprep.subr.mxu0 0.0
    %587 = vmatpush1.msra.mxu0 0.0
    %588 = vmatprep.subr.mxu0 0.0
    %589 = vmatpush1.msra.mxu0 0.0
    %590 = vmatprep.subr.mxu0 0.0
    %591 = vmatpush1.msra.mxu0 0.0
    %592 = vmatprep.subr.mxu0 0.0
    %593 = vmatpush1.msra.mxu0 0.0
    %594 = vmatprep.subr.mxu0 0.0
    %595 = vmatpush1.msra.mxu0 0.0
    %596 = vmatprep.subr.mxu0 0.0
    %597 = vmatpush1.msra.mxu0 0.0
    %598 = vmatprep.subr.mxu0 0.0
    %599 = vmatpush1.msra.mxu0 0.0
    %600 = vmatprep.subr.mxu0 0.0
    %601 = vmatpush1.msra.mxu0 0.0
    %602 = vmatprep.subr.mxu0 0.0
    %603 = vmatpush1.msra.mxu0 0.0
    %604 = vmatprep.subr.mxu0 0.0
    %605 = vmatpush1.msra.mxu0 0.0
    %606 = vmatprep.subr.mxu0 0.0
    %607 = vmatpush1.msra.mxu0 0.0
    %608 = vmatprep.subr.mxu0 0.0
    %609 = vmatpush1.msra.mxu0 0.0
    %610 = vmatprep.subr.mxu0 0.0
    %611 = vmatpush1.msra.mxu0 0.0
    %612 = vmatprep.subr.mxu0 0.0
    %613 = vmatpush1.msra.mxu0 0.0
    %614 = vmatprep.subr.mxu0 0.0
    %615 = vmatpush1.msra.mxu0 0.0
    %616 = vmatprep.subr.mxu0 0.0
    %617 = vmatpush1.msra.mxu0 0.0
    %618 = vmatprep.subr.mxu0 0.0
    %619 = vmatpush1.msra.mxu0 0.0
    %620 = vmatprep.subr.mxu0 0.0
    %621 = vmatpush1.msra.mxu0 0.0
    %622 = vmatprep.subr.mxu0 0.0
    %623 = vmatpush1.msra.mxu0 0.0
    %624 = vmatprep.subr.mxu0 0.0
    %625 = vmatpush1.msra.mxu0 0.0
    %626 = vmatprep.subr.mxu0 0.0
    %627 = vmatpush1.msra.mxu0 0.0
    %628 = vmatprep.subr.mxu0 0.0
    %629 = vmatpush1.msra.mxu0 0.0
    %630 = vmatprep.mubr.f32.mxu0 0.0
    %631 = vmatmul.mubr.f32.gmra.mrb[0].mxu0 %v564
    %v632 = vpop.f32.mrb[0].mxu0
    %v633 = vadd.f32 %v258, %v632
    %v634 = vpop.f32.mrb[0].mxu0
    %635 = vdwg.mxu0
    %v636 = vtanh.pop %v633
    %v638 = vsel %vm93, %v636, 0
    %640 = vmatprep.subr.mxu0 0.0
    %641 = vmatpush1.msra.mxu0 %v84
    %642 = vmatprep.subr.mxu0 0.0
    %643 = vmatpush1.msra.mxu0 %v85
    %644 = vmatprep.subr.mxu0 0.0
    %645 = vmatpush1.msra.mxu0 %v86
    %646 = vmatprep.subr.mxu0 0.0
    %647 = vmatpush1.msra.mxu0 %v87
    %648 = vmatprep.subr.mxu0 0.0
    %649 = vmatpush1.msra.mxu0 0.0
    %650 = vmatprep.subr.mxu0 0.0
    %651 = vmatpush1.msra.mxu0 0.0
    %652 = vmatprep.subr.mxu0 0.0
    %653 = vmatpush1.msra.mxu0 0.0
    %654 = vmatprep.subr.mxu0 0.0
    %655 = vmatpush1.msra.mxu0 0.0
    %656 = vmatprep.subr.mxu0 0.0
    %657 = vmatpush1.msra.mxu0 0.0
    %658 = vmatprep.subr.mxu0 0.0
    %659 = vmatpush1.msra.mxu0 0.0
    %660 = vmatprep.subr.mxu0 0.0
    %661 = vmatpush1.msra.mxu0 0.0
    %662 = vmatprep.subr.mxu0 0.0
    %663 = vmatpush1.msra.mxu0 0.0
    %664 = vmatprep.subr.mxu0 0.0
    %665 = vmatpush1.msra.mxu0 0.0
    %666 = vmatprep.subr.mxu0 0.0
    %667 = vmatpush1.msra.mxu0 0.0
    %668 = vmatprep.subr.mxu0 0.0
    %669 = vmatpush1.msra.mxu0 0.0
    %670 = vmatprep.subr.mxu0 0.0
    %671 = vmatpush1.msra.mxu0 0.0
    %672 = vmatprep.subr.mxu0 0.0
    %673 = vmatpush1.msra.mxu0 0.0
    %674 = vmatprep.subr.mxu0 0.0
    %675 = vmatpush1.msra.mxu0 0.0
    %676 = vmatprep.subr.mxu0 0.0
    %677 = vmatpush1.msra.mxu0 0.0
    %678 = vmatprep.subr.mxu0 0.0
    %679 = vmatpush1.msra.mxu0 0.0
    %680 = vmatprep.subr.mxu0 0.0
    %681 = vmatpush1.msra.mxu0 0.0
    %682 = vmatprep.subr.mxu0 0.0
    %683 = vmatpush1.msra.mxu0 0.0
    %684 = vmatprep.subr.mxu0 0.0
    %685 = vmatpush1.msra.mxu0 0.0
    %686 = vmatprep.subr.mxu0 0.0
    %687 = vmatpush1.msra.mxu0 0.0
    %688 = vmatprep.subr.mxu0 0.0
    %689 = vmatpush1.msra.mxu0 0.0
    %690 = vmatprep.subr.mxu0 0.0
    %691 = vmatpush1.msra.mxu0 0.0
    %692 = vmatprep.subr.mxu0 0.0
    %693 = vmatpush1.msra.mxu0 0.0
    %694 = vmatprep.subr.mxu0 0.0
    %695 = vmatpush1.msra.mxu0 0.0
    %696 = vmatprep.subr.mxu0 0.0
    %697 = vmatpush1.msra.mxu0 0.0
    %698 = vmatprep.subr.mxu0 0.0
    %699 = vmatpush1.msra.mxu0 0.0
    %700 = vmatprep.subr.mxu0 0.0
    %701 = vmatpush1.msra.mxu0 0.0
    %702 = vmatprep.subr.mxu0 0.0
    %703 = vmatpush1.msra.mxu0 0.0
    %704 = vmatprep.mubr.f32.mxu0 0.0
    %705 = vmatmul.mubr.f32.gmra.mrb[0].mxu0 %v638
    %v706 = vpop.f32.mrb[0].mxu0
    %v707 = vadd.f32 %v337, %v706
    %v708 = vpop.f32.mrb[0].mxu0
    %709 = vdwg.mxu0
    %v710 = vsub.f32 %v408, %v557
    %v711 = vmul.f32 %v710, 0.14285715
    %v712 = vadd.f32 %v254, %v711
    %v713 = vmul.f32 %v707, 0.14285715
    %v714 = vadd.f32 %v712, %v713
    %v716 = vsel %vm259, %v714, 0
    %718 = vmatprep.subr.mxu0 0.0
    %719 = vmatpush1.msra.mxu0 %v82
    %720 = vmatprep.subr.mxu0 0.0
    %721 = vmatpush1.msra.mxu0 %v83
    %722 = vmatprep.subr.mxu0 0.0
    %723 = vmatpush1.msra.mxu0 0.0
    %724 = vmatprep.subr.mxu0 0.0
    %725 = vmatpush1.msra.mxu0 0.0
    %726 = vmatprep.subr.mxu0 0.0
    %727 = vmatpush1.msra.mxu0 0.0
    %728 = vmatprep.subr.mxu0 0.0
    %729 = vmatpush1.msra.mxu0 0.0
    %730 = vmatprep.subr.mxu0 0.0
    %731 = vmatpush1.msra.mxu0 0.0
    %732 = vmatprep.subr.mxu0 0.0
    %733 = vmatpush1.msra.mxu0 0.0
    %734 = vmatprep.subr.mxu0 0.0
    %735 = vmatpush1.msra.mxu0 0.0
    %736 = vmatprep.subr.mxu0 0.0
    %737 = vmatpush1.msra.mxu0 0.0
    %738 = vmatprep.subr.mxu0 0.0
    %739 = vmatpush1.msra.mxu0 0.0
    %740 = vmatprep.subr.mxu0 0.0
    %741 = vmatpush1.msra.mxu0 0.0
    %742 = vmatprep.subr.mxu0 0.0
    %743 = vmatpush1.msra.mxu0 0.0
    %744 = vmatprep.subr.mxu0 0.0
    %745 = vmatpush1.msra.mxu0 0.0
    %746 = vmatprep.subr.mxu0 0.0
    %747 = vmatpush1.msra.mxu0 0.0
    %748 = vmatprep.subr.mxu0 0.0
    %749 = vmatpush1.msra.mxu0 0.0
    %750 = vmatprep.subr.mxu0 0.0
    %751 = vmatpush1.msra.mxu0 0.0
    %752 = vmatprep.subr.mxu0 0.0
    %753 = vmatpush1.msra.mxu0 0.0
    %754 = vmatprep.subr.mxu0 0.0
    %755 = vmatpush1.msra.mxu0 0.0
    %756 = vmatprep.subr.mxu0 0.0
    %757 = vmatpush1.msra.mxu0 0.0
    %758 = vmatprep.subr.mxu0 0.0
    %759 = vmatpush1.msra.mxu0 0.0
    %760 = vmatprep.subr.mxu0 0.0
    %761 = vmatpush1.msra.mxu0 0.0
    %762 = vmatprep.subr.mxu0 0.0
    %763 = vmatpush1.msra.mxu0 0.0
    %764 = vmatprep.subr.mxu0 0.0
    %765 = vmatpush1.msra.mxu0 0.0
    %766 = vmatprep.subr.mxu0 0.0
    %767 = vmatpush1.msra.mxu0 0.0
    %768 = vmatprep.subr.mxu0 0.0
    %769 = vmatpush1.msra.mxu0 0.0
    %770 = vmatprep.subr.mxu0 0.0
    %771 = vmatpush1.msra.mxu0 0.0
    %772 = vmatprep.subr.mxu0 0.0
    %773 = vmatpush1.msra.mxu0 0.0
    %774 = vmatprep.subr.mxu0 0.0
    %775 = vmatpush1.msra.mxu0 0.0
    %776 = vmatprep.subr.mxu0 0.0
    %777 = vmatpush1.msra.mxu0 0.0
    %778 = vmatprep.subr.mxu0 0.0
    %779 = vmatpush1.msra.mxu0 0.0
    %780 = vmatprep.subr.mxu0 0.0
    %781 = vmatpush1.msra.mxu0 0.0
    %782 = vmatprep.mubr.f32.mxu0 0.0
    %783 = vmatmul.mubr.f32.gmra.mrb[0].mxu0 %v716
    %v784 = vpop.f32.mrb[0].mxu0
    %v785 = vadd.f32 %v258, %v784
    %v786 = vpop.f32.mrb[0].mxu0
    %787 = vdwg.mxu0
    %v788 = vtanh.pop %v785
    %v790 = vsel %vm93, %v788, 0
    %792 = vmatprep.subr.mxu0 0.0
    %793 = vmatpush1.msra.mxu0 %v84
    %794 = vmatprep.subr.mxu0 0.0
    %795 = vmatpush1.msra.mxu0 %v85
    %796 = vmatprep.subr.mxu0 0.0
    %797 = vmatpush1.msra.mxu0 %v86
    %798 = vmatprep.subr.mxu0 0.0
    %799 = vmatpush1.msra.mxu0 %v87
    %800 = vmatprep.subr.mxu0 0.0
    %801 = vmatpush1.msra.mxu0 0.0
    %802 = vmatprep.subr.mxu0 0.0
    %803 = vmatpush1.msra.mxu0 0.0
    %804 = vmatprep.subr.mxu0 0.0
    %805 = vmatpush1.msra.mxu0 0.0
    %806 = vmatprep.subr.mxu0 0.0
    %807 = vmatpush1.msra.mxu0 0.0
    %808 = vmatprep.subr.mxu0 0.0
    %809 = vmatpush1.msra.mxu0 0.0
    %810 = vmatprep.subr.mxu0 0.0
    %811 = vmatpush1.msra.mxu0 0.0
    %812 = vmatprep.subr.mxu0 0.0
    %813 = vmatpush1.msra.mxu0 0.0
    %814 = vmatprep.subr.mxu0 0.0
    %815 = vmatpush1.msra.mxu0 0.0
    %816 = vmatprep.subr.mxu0 0.0
    %817 = vmatpush1.msra.mxu0 0.0
    %818 = vmatprep.subr.mxu0 0.0
    %819 = vmatpush1.msra.mxu0 0.0
    %820 = vmatprep.subr.mxu0 0.0
    %821 = vmatpush1.msra.mxu0 0.0
    %822 = vmatprep.subr.mxu0 0.0
    %823 = vmatpush1.msra.mxu0 0.0
    %824 = vmatprep.subr.mxu0 0.0
    %825 = vmatpush1.msra.mxu0 0.0
    %826 = vmatprep.subr.mxu0 0.0
    %827 = vmatpush1.msra.mxu0 0.0
    %828 = vmatprep.subr.mxu0 0.0
    %829 = vmatpush1.msra.mxu0 0.0
    %830 = vmatprep.subr.mxu0 0.0
    %831 = vmatpush1.msra.mxu0 0.0
    %832 = vmatprep.subr.mxu0 0.0
    %833 = vmatpush1.msra.mxu0 0.0
    %834 = vmatprep.subr.mxu0 0.0
    %835 = vmatpush1.msra.mxu0 0.0
    %836 = vmatprep.subr.mxu0 0.0
    %837 = vmatpush1.msra.mxu0 0.0
    %838 = vmatprep.subr.mxu0 0.0
    %839 = vmatpush1.msra.mxu0 0.0
    %840 = vmatprep.subr.mxu0 0.0
    %841 = vmatpush1.msra.mxu0 0.0
    %842 = vmatprep.subr.mxu0 0.0
    %843 = vmatpush1.msra.mxu0 0.0
    %844 = vmatprep.subr.mxu0 0.0
    %845 = vmatpush1.msra.mxu0 0.0
    %846 = vmatprep.subr.mxu0 0.0
    %847 = vmatpush1.msra.mxu0 0.0
    %848 = vmatprep.subr.mxu0 0.0
    %849 = vmatpush1.msra.mxu0 0.0
    %850 = vmatprep.subr.mxu0 0.0
    %851 = vmatpush1.msra.mxu0 0.0
    %852 = vmatprep.subr.mxu0 0.0
    %853 = vmatpush1.msra.mxu0 0.0
    %854 = vmatprep.subr.mxu0 0.0
    %855 = vmatpush1.msra.mxu0 0.0
    %856 = vmatprep.mubr.f32.mxu0 0.0
    %857 = vmatmul.mubr.f32.gmra.mrb[0].mxu0 %v790
    %v858 = vpop.f32.mrb[0].mxu0
    %v859 = vadd.f32 %v337, %v858
    %v860 = vpop.f32.mrb[0].mxu0
    %861 = vdwg.mxu0
    %v862 = vadd.f32 %v557, %v707
    %v863 = vmul.f32 %v862, 3.0
    %v864 = vadd.f32 %v408, %v863
    %v865 = vmul.f32 %v864, 0.017857144
    %v866 = vadd.f32 %v254, %v865
    %v867 = vmul.f32 %v859, 0.017857144
    %v868 = vadd.f32 %v866, %v867
    %v870 = vsel %vm259, %v868, 0
    %872 = vmatprep.subr.mxu0 0.0
    %873 = vmatpush1.msra.mxu0 %v82
    %874 = vmatprep.subr.mxu0 0.0
    %875 = vmatpush1.msra.mxu0 %v83
    %876 = vmatprep.subr.mxu0 0.0
    %877 = vmatpush1.msra.mxu0 0.0
    %878 = vmatprep.subr.mxu0 0.0
    %879 = vmatpush1.msra.mxu0 0.0
    %880 = vmatprep.subr.mxu0 0.0
    %881 = vmatpush1.msra.mxu0 0.0
    %882 = vmatprep.subr.mxu0 0.0
    %883 = vmatpush1.msra.mxu0 0.0
    %884 = vmatprep.subr.mxu0 0.0
    %885 = vmatpush1.msra.mxu0 0.0
    %886 = vmatprep.subr.mxu0 0.0
    %887 = vmatpush1.msra.mxu0 0.0
    %888 = vmatprep.subr.mxu0 0.0
    %889 = vmatpush1.msra.mxu0 0.0
    %890 = vmatprep.subr.mxu0 0.0
    %891 = vmatpush1.msra.mxu0 0.0
    %892 = vmatprep.subr.mxu0 0.0
    %893 = vmatpush1.msra.mxu0 0.0
    %894 = vmatprep.subr.mxu0 0.0
    %895 = vmatpush1.msra.mxu0 0.0
    %896 = vmatprep.subr.mxu0 0.0
    %897 = vmatpush1.msra.mxu0 0.0
    %898 = vmatprep.subr.mxu0 0.0
    %899 = vmatpush1.msra.mxu0 0.0
    %900 = vmatprep.subr.mxu0 0.0
    %901 = vmatpush1.msra.mxu0 0.0
    %902 = vmatprep.subr.mxu0 0.0
    %903 = vmatpush1.msra.mxu0 0.0
    %904 = vmatprep.subr.mxu0 0.0
    %905 = vmatpush1.msra.mxu0 0.0
    %906 = vmatprep.subr.mxu0 0.0
    %907 = vmatpush1.msra.mxu0 0.0
    %908 = vmatprep.subr.mxu0 0.0
    %909 = vmatpush1.msra.mxu0 0.0
    %910 = vmatprep.subr.mxu0 0.0
    %911 = vmatpush1.msra.mxu0 0.0
    %912 = vmatprep.subr.mxu0 0.0
    %913 = vmatpush1.msra.mxu0 0.0
    %914 = vmatprep.subr.mxu0 0.0
    %915 = vmatpush1.msra.mxu0 0.0
    %916 = vmatprep.subr.mxu0 0.0
    %917 = vmatpush1.msra.mxu0 0.0
    %918 = vmatprep.subr.mxu0 0.0
    %919 = vmatpush1.msra.mxu0 0.0
    %920 = vmatprep.subr.mxu0 0.0
    %921 = vmatpush1.msra.mxu0 0.0
    %922 = vmatprep.subr.mxu0 0.0
    %923 = vmatpush1.msra.mxu0 0.0
    %924 = vmatprep.subr.mxu0 0.0
    %925 = vmatpush1.msra.mxu0 0.0
    %926 = vmatprep.subr.mxu0 0.0
    %927 = vmatpush1.msra.mxu0 0.0
    %928 = vmatprep.subr.mxu0 0.0
    %929 = vmatpush1.msra.mxu0 0.0
    %930 = vmatprep.subr.mxu0 0.0
    %931 = vmatpush1.msra.mxu0 0.0
    %932 = vmatprep.subr.mxu0 0.0
    %933 = vmatpush1.msra.mxu0 0.0
    %934 = vmatprep.subr.mxu0 0.0
    %935 = vmatpush1.msra.mxu0 0.0
    %936 = vmatprep.mubr.f32.mxu0 0.0
    %937 = vmatmul.mubr.f32.gmra.mrb[0].mxu0 %v870
    %v938 = vpop.f32.mrb[0].mxu0
    %v939 = vadd.f32 %v258, %v938
    %v940 = vpop.f32.mrb[0].mxu0
    %941 = vdwg.mxu0
    %v942 = vtanh.pop %v939
    %v944 = vsel %vm93, %v942, 0
    %946 = vmatprep.subr.mxu0 0.0
    %947 = vmatpush1.msra.mxu0 %v84
    %948 = vmatprep.subr.mxu0 0.0
    %949 = vmatpush1.msra.mxu0 %v85
    %950 = vmatprep.subr.mxu0 0.0
    %951 = vmatpush1.msra.mxu0 %v86
    %952 = vmatprep.subr.mxu0 0.0
    %953 = vmatpush1.msra.mxu0 %v87
    %954 = vmatprep.subr.mxu0 0.0
    %955 = vmatpush1.msra.mxu0 0.0
    %956 = vmatprep.subr.mxu0 0.0
    %957 = vmatpush1.msra.mxu0 0.0
    %958 = vmatprep.subr.mxu0 0.0
    %959 = vmatpush1.msra.mxu0 0.0
    %960 = vmatprep.subr.mxu0 0.0
    %961 = vmatpush1.msra.mxu0 0.0
    %962 = vmatprep.subr.mxu0 0.0
    %963 = vmatpush1.msra.mxu0 0.0
    %964 = vmatprep.subr.mxu0 0.0
    %965 = vmatpush1.msra.mxu0 0.0
    %966 = vmatprep.subr.mxu0 0.0
    %967 = vmatpush1.msra.mxu0 0.0
    %968 = vmatprep.subr.mxu0 0.0
    %969 = vmatpush1.msra.mxu0 0.0
    %970 = vmatprep.subr.mxu0 0.0
    %971 = vmatpush1.msra.mxu0 0.0
    %972 = vmatprep.subr.mxu0 0.0
    %973 = vmatpush1.msra.mxu0 0.0
    %974 = vmatprep.subr.mxu0 0.0
    %975 = vmatpush1.msra.mxu0 0.0
    %976 = vmatprep.subr.mxu0 0.0
    %977 = vmatpush1.msra.mxu0 0.0
    %978 = vmatprep.subr.mxu0 0.0
    %979 = vmatpush1.msra.mxu0 0.0
    %980 = vmatprep.subr.mxu0 0.0
    %981 = vmatpush1.msra.mxu0 0.0
    %982 = vmatprep.subr.mxu0 0.0
    %983 = vmatpush1.msra.mxu0 0.0
    %984 = vmatprep.subr.mxu0 0.0
    %985 = vmatpush1.msra.mxu0 0.0
    %986 = vmatprep.subr.mxu0 0.0
    %987 = vmatpush1.msra.mxu0 0.0
    %988 = vmatprep.subr.mxu0 0.0
    %989 = vmatpush1.msra.mxu0 0.0
    %990 = vmatprep.subr.mxu0 0.0
    %991 = vmatpush1.msra.mxu0 0.0
    %992 = vmatprep.subr.mxu0 0.0
    %993 = vmatpush1.msra.mxu0 0.0
    %994 = vmatprep.subr.mxu0 0.0
    %995 = vmatpush1.msra.mxu0 0.0
    %996 = vmatprep.subr.mxu0 0.0
    %997 = vmatpush1.msra.mxu0 0.0
    %998 = vmatprep.subr.mxu0 0.0
    %999 = vmatpush1.msra.mxu0 0.0
    %1000 = vmatprep.subr.mxu0 0.0
    %1001 = vmatpush1.msra.mxu0 0.0
    %1002 = vmatprep.subr.mxu0 0.0
    %1003 = vmatpush1.msra.mxu0 0.0
    %1004 = vmatprep.subr.mxu0 0.0
    %1005 = vmatpush1.msra.mxu0 0.0
    %1006 = vmatprep.subr.mxu0 0.0
    %1007 = vmatpush1.msra.mxu0 0.0
    %1008 = vmatprep.subr.mxu0 0.0
    %1009 = vmatpush1.msra.mxu0 0.0
    %1010 = vmatprep.mubr.f32.mxu0 0.0
    %1011 = vmatmul.mubr.f32.gmra.mrb[0].mxu0 %v944
    %v1012 = vpop.f32.mrb[0].mxu0
    %v1013 = vadd.f32 %v337, %v1012
    %v1014 = vpop.f32.mrb[0].mxu0
    %1015 = vdwg.mxu0
    %v1016 = vmul.f32 %v1013, 0.04761905
    %v1017 = vadd.f32 %v868, %v1016
    %v1019 = vsel %vm259, %v1017, 0
    %1021 = vmatprep.subr.mxu0 0.0
    %1022 = vmatpush1.msra.mxu0 %v82
    %1023 = vmatprep.subr.mxu0 0.0
    %1024 = vmatpush1.msra.mxu0 %v83
    %1025 = vmatprep.subr.mxu0 0.0
    %1026 = vmatpush1.msra.mxu0 0.0
    %1027 = vmatprep.subr.mxu0 0.0
    %1028 = vmatpush1.msra.mxu0 0.0
    %1029 = vmatprep.subr.mxu0 0.0
    %1030 = vmatpush1.msra.mxu0 0.0
    %1031 = vmatprep.subr.mxu0 0.0
    %1032 = vmatpush1.msra.mxu0 0.0
    %1033 = vmatprep.subr.mxu0 0.0
    %1034 = vmatpush1.msra.mxu0 0.0
    %1035 = vmatprep.subr.mxu0 0.0
    %1036 = vmatpush1.msra.mxu0 0.0
    %1037 = vmatprep.subr.mxu0 0.0
    %1038 = vmatpush1.msra.mxu0 0.0
    %1039 = vmatprep.subr.mxu0 0.0
    %1040 = vmatpush1.msra.mxu0 0.0
    %1041 = vmatprep.subr.mxu0 0.0
    %1042 = vmatpush1.msra.mxu0 0.0
    %1043 = vmatprep.subr.mxu0 0.0
    %1044 = vmatpush1.msra.mxu0 0.0
    %1045 = vmatprep.subr.mxu0 0.0
    %1046 = vmatpush1.msra.mxu0 0.0
    %1047 = vmatprep.subr.mxu0 0.0
    %1048 = vmatpush1.msra.mxu0 0.0
    %1049 = vmatprep.subr.mxu0 0.0
    %1050 = vmatpush1.msra.mxu0 0.0
    %1051 = vmatprep.subr.mxu0 0.0
    %1052 = vmatpush1.msra.mxu0 0.0
    %1053 = vmatprep.subr.mxu0 0.0
    %1054 = vmatpush1.msra.mxu0 0.0
    %1055 = vmatprep.subr.mxu0 0.0
    %1056 = vmatpush1.msra.mxu0 0.0
    %1057 = vmatprep.subr.mxu0 0.0
    %1058 = vmatpush1.msra.mxu0 0.0
    %1059 = vmatprep.subr.mxu0 0.0
    %1060 = vmatpush1.msra.mxu0 0.0
    %1061 = vmatprep.subr.mxu0 0.0
    %1062 = vmatpush1.msra.mxu0 0.0
    %1063 = vmatprep.subr.mxu0 0.0
    %1064 = vmatpush1.msra.mxu0 0.0
    %1065 = vmatprep.subr.mxu0 0.0
    %1066 = vmatpush1.msra.mxu0 0.0
    %1067 = vmatprep.subr.mxu0 0.0
    %1068 = vmatpush1.msra.mxu0 0.0
    %1069 = vmatprep.subr.mxu0 0.0
    %1070 = vmatpush1.msra.mxu0 0.0
    %1071 = vmatprep.subr.mxu0 0.0
    %1072 = vmatpush1.msra.mxu0 0.0
    %1073 = vmatprep.subr.mxu0 0.0
    %1074 = vmatpush1.msra.mxu0 0.0
    %1075 = vmatprep.subr.mxu0 0.0
    %1076 = vmatpush1.msra.mxu0 0.0
    %1077 = vmatprep.subr.mxu0 0.0
    %1078 = vmatpush1.msra.mxu0 0.0
    %1079 = vmatprep.subr.mxu0 0.0
    %1080 = vmatpush1.msra.mxu0 0.0
    %1081 = vmatprep.subr.mxu0 0.0
    %1082 = vmatpush1.msra.mxu0 0.0
    %1083 = vmatprep.subr.mxu0 0.0
    %1084 = vmatpush1.msra.mxu0 0.0
    %1085 = vmatprep.mubr.f32.mxu0 0.0
    %1086 = vmatmul.mubr.f32.gmra.mrb[0].mxu0 %v1019
    %v1087 = vpop.f32.mrb[0].mxu0
    %v1088 = vadd.f32 %v258, %v1087
    %v1089 = vpop.f32.mrb[0].mxu0
    %1090 = vdwg.mxu0
    %v1091 = vtanh.pop %v1088
    %v1093 = vsel %vm93, %v1091, 0
    %1095 = vmatprep.subr.mxu0 0.0
    %1096 = vmatpush1.msra.mxu0 %v84
    %1097 = vmatprep.subr.mxu0 0.0
    %1098 = vmatpush1.msra.mxu0 %v85
    %1099 = vmatprep.subr.mxu0 0.0
    %1100 = vmatpush1.msra.mxu0 %v86
    %1101 = vmatprep.subr.mxu0 0.0
    %1102 = vmatpush1.msra.mxu0 %v87
    %1103 = vmatprep.subr.mxu0 0.0
    %1104 = vmatpush1.msra.mxu0 0.0
    %1105 = vmatprep.subr.mxu0 0.0
    %1106 = vmatpush1.msra.mxu0 0.0
    %1107 = vmatprep.subr.mxu0 0.0
    %1108 = vmatpush1.msra.mxu0 0.0
    %1109 = vmatprep.subr.mxu0 0.0
    %1110 = vmatpush1.msra.mxu0 0.0
    %1111 = vmatprep.subr.mxu0 0.0
    %1112 = vmatpush1.msra.mxu0 0.0
    %1113 = vmatprep.subr.mxu0 0.0
    %1114 = vmatpush1.msra.mxu0 0.0
    %1115 = vmatprep.subr.mxu0 0.0
    %1116 = vmatpush1.msra.mxu0 0.0
    %1117 = vmatprep.subr.mxu0 0.0
    %1118 = vmatpush1.msra.mxu0 0.0
    %1119 = vmatprep.subr.mxu0 0.0
    %1120 = vmatpush1.msra.mxu0 0.0
    %1121 = vmatprep.subr.mxu0 0.0
    %1122 = vmatpush1.msra.mxu0 0.0
    %1123 = vmatprep.subr.mxu0 0.0
    %1124 = vmatpush1.msra.mxu0 0.0
    %1125 = vmatprep.subr.mxu0 0.0
    %1126 = vmatpush1.msra.mxu0 0.0
    %1127 = vmatprep.subr.mxu0 0.0
    %1128 = vmatpush1.msra.mxu0 0.0
    %1129 = vmatprep.subr.mxu0 0.0
    %1130 = vmatpush1.msra.mxu0 0.0
    %1131 = vmatprep.subr.mxu0 0.0
    %1132 = vmatpush1.msra.mxu0 0.0
    %1133 = vmatprep.subr.mxu0 0.0
    %1134 = vmatpush1.msra.mxu0 0.0
    %1135 = vmatprep.subr.mxu0 0.0
    %1136 = vmatpush1.msra.mxu0 0.0
    %1137 = vmatprep.subr.mxu0 0.0
    %1138 = vmatpush1.msra.mxu0 0.0
    %1139 = vmatprep.subr.mxu0 0.0
    %1140 = vmatpush1.msra.mxu0 0.0
    %1141 = vmatprep.subr.mxu0 0.0
    %1142 = vmatpush1.msra.mxu0 0.0
    %1143 = vmatprep.subr.mxu0 0.0
    %1144 = vmatpush1.msra.mxu0 0.0
    %1145 = vmatprep.subr.mxu0 0.0
    %1146 = vmatpush1.msra.mxu0 0.0
    %1147 = vmatprep.subr.mxu0 0.0
    %1148 = vmatpush1.msra.mxu0 0.0
    %1149 = vmatprep.subr.mxu0 0.0
    %1150 = vmatpush1.msra.mxu0 0.0
    %1151 = vmatprep.subr.mxu0 0.0
    %1152 = vmatpush1.msra.mxu0 0.0
    %1153 = vmatprep.subr.mxu0 0.0
    %1154 = vmatpush1.msra.mxu0 0.0
    %1155 = vmatprep.subr.mxu0 0.0
    %1156 = vmatpush1.msra.mxu0 0.0
    %1157 = vmatprep.subr.mxu0 0.0
    %1158 = vmatpush1.msra.mxu0 0.0
    %1159 = vmatprep.mubr.f32.mxu0 0.0
    %1160 = vmatmul.mubr.f32.gmra.mrb[0].mxu0 %v1093
    %v1161 = vpop.f32.mrb[0].mxu0
    %v1162 = vadd.f32 %v337, %v1161
    %v1163 = vpop.f32.mrb[0].mxu0
    %1164 = vdwg.mxu0
    %v1165 = vsub.f32 %v868, %v1016
    %v1166 = vmul.f32 %v1162, 0.14285715
    %v1167 = vadd.f32 %v1165, %v1166
    %v1169 = vsel %vm259, %v1167, 0
    %1171 = vmatprep.subr.mxu0 0.0
    %1172 = vmatpush1.msra.mxu0 %v82
    %1173 = vmatprep.subr.mxu0 0.0
    %1174 = vmatpush1.msra.mxu0 %v83
    %1175 = vmatprep.subr.mxu0 0.0
    %1176 = vmatpush1.msra.mxu0 0.0
    %1177 = vmatprep.subr.mxu0 0.0
    %1178 = vmatpush1.msra.mxu0 0.0
    %1179 = vmatprep.subr.mxu0 0.0
    %1180 = vmatpush1.msra.mxu0 0.0
    %1181 = vmatprep.subr.mxu0 0.0
    %1182 = vmatpush1.msra.mxu0 0.0
    %1183 = vmatprep.subr.mxu0 0.0
    %1184 = vmatpush1.msra.mxu0 0.0
    %1185 = vmatprep.subr.mxu0 0.0
    %1186 = vmatpush1.msra.mxu0 0.0
    %1187 = vmatprep.subr.mxu0 0.0
    %1188 = vmatpush1.msra.mxu0 0.0
    %1189 = vmatprep.subr.mxu0 0.0
    %1190 = vmatpush1.msra.mxu0 0.0
    %1191 = vmatprep.subr.mxu0 0.0
    %1192 = vmatpush1.msra.mxu0 0.0
    %1193 = vmatprep.subr.mxu0 0.0
    %1194 = vmatpush1.msra.mxu0 0.0
    %1195 = vmatprep.subr.mxu0 0.0
    %1196 = vmatpush1.msra.mxu0 0.0
    %1197 = vmatprep.subr.mxu0 0.0
    %1198 = vmatpush1.msra.mxu0 0.0
    %1199 = vmatprep.subr.mxu0 0.0
    %1200 = vmatpush1.msra.mxu0 0.0
    %1201 = vmatprep.subr.mxu0 0.0
    %1202 = vmatpush1.msra.mxu0 0.0
    %1203 = vmatprep.subr.mxu0 0.0
    %1204 = vmatpush1.msra.mxu0 0.0
    %1205 = vmatprep.subr.mxu0 0.0
    %1206 = vmatpush1.msra.mxu0 0.0
    %1207 = vmatprep.subr.mxu0 0.0
    %1208 = vmatpush1.msra.mxu0 0.0
    %1209 = vmatprep.subr.mxu0 0.0
    %1210 = vmatpush1.msra.mxu0 0.0
    %1211 = vmatprep.subr.mxu0 0.0
    %1212 = vmatpush1.msra.mxu0 0.0
    %1213 = vmatprep.subr.mxu0 0.0
    %1214 = vmatpush1.msra.mxu0 0.0
    %1215 = vmatprep.subr.mxu0 0.0
    %1216 = vmatpush1.msra.mxu0 0.0
    %1217 = vmatprep.subr.mxu0 0.0
    %1218 = vmatpush1.msra.mxu0 0.0
    %1219 = vmatprep.subr.mxu0 0.0
    %1220 = vmatpush1.msra.mxu0 0.0
    %1221 = vmatprep.subr.mxu0 0.0
    %1222 = vmatpush1.msra.mxu0 0.0
    %1223 = vmatprep.subr.mxu0 0.0
    %1224 = vmatpush1.msra.mxu0 0.0
    %1225 = vmatprep.subr.mxu0 0.0
    %1226 = vmatpush1.msra.mxu0 0.0
    %1227 = vmatprep.subr.mxu0 0.0
    %1228 = vmatpush1.msra.mxu0 0.0
    %1229 = vmatprep.subr.mxu0 0.0
    %1230 = vmatpush1.msra.mxu0 0.0
    %1231 = vmatprep.subr.mxu0 0.0
    %1232 = vmatpush1.msra.mxu0 0.0
    %1233 = vmatprep.subr.mxu0 0.0
    %1234 = vmatpush1.msra.mxu0 0.0
    %1235 = vmatprep.mubr.f32.mxu0 0.0
    %1236 = vmatmul.mubr.f32.gmra.mrb[0].mxu0 %v1169
    %v1237 = vpop.f32.mrb[0].mxu0
    %v1238 = vadd.f32 %v258, %v1237
    %v1239 = vpop.f32.mrb[0].mxu0
    %1240 = vdwg.mxu0
    %v1241 = vtanh.pop %v1238
    %v1243 = vsel %vm93, %v1241, 0
    %1245 = vmatprep.subr.mxu0 0.0
    %1246 = vmatpush1.msra.mxu0 %v84
    %1247 = vmatprep.subr.mxu0 0.0
    %1248 = vmatpush1.msra.mxu0 %v85
    %1249 = vmatprep.subr.mxu0 0.0
    %1250 = vmatpush1.msra.mxu0 %v86
    %1251 = vmatprep.subr.mxu0 0.0
    %1252 = vmatpush1.msra.mxu0 %v87
    %1253 = vmatprep.subr.mxu0 0.0
    %1254 = vmatpush1.msra.mxu0 0.0
    %1255 = vmatprep.subr.mxu0 0.0
    %1256 = vmatpush1.msra.mxu0 0.0
    %1257 = vmatprep.subr.mxu0 0.0
    %1258 = vmatpush1.msra.mxu0 0.0
    %1259 = vmatprep.subr.mxu0 0.0
    %1260 = vmatpush1.msra.mxu0 0.0
    %1261 = vmatprep.subr.mxu0 0.0
    %1262 = vmatpush1.msra.mxu0 0.0
    %1263 = vmatprep.subr.mxu0 0.0
    %1264 = vmatpush1.msra.mxu0 0.0
    %1265 = vmatprep.subr.mxu0 0.0
    %1266 = vmatpush1.msra.mxu0 0.0
    %1267 = vmatprep.subr.mxu0 0.0
    %1268 = vmatpush1.msra.mxu0 0.0
    %1269 = vmatprep.subr.mxu0 0.0
    %1270 = vmatpush1.msra.mxu0 0.0
    %1271 = vmatprep.subr.mxu0 0.0
    %1272 = vmatpush1.msra.mxu0 0.0
    %1273 = vmatprep.subr.mxu0 0.0
    %1274 = vmatpush1.msra.mxu0 0.0
    %1275 = vmatprep.subr.mxu0 0.0
    %1276 = vmatpush1.msra.mxu0 0.0
    %1277 = vmatprep.subr.mxu0 0.0
    %1278 = vmatpush1.msra.mxu0 0.0
    %1279 = vmatprep.subr.mxu0 0.0
    %1280 = vmatpush1.msra.mxu0 0.0
    %1281 = vmatprep.subr.mxu0 0.0
    %1282 = vmatpush1.msra.mxu0 0.0
    %1283 = vmatprep.subr.mxu0 0.0
    %1284 = vmatpush1.msra.mxu0 0.0
    %1285 = vmatprep.subr.mxu0 0.0
    %1286 = vmatpush1.msra.mxu0 0.0
    %1287 = vmatprep.subr.mxu0 0.0
    %1288 = vmatpush1.msra.mxu0 0.0
    %1289 = vmatprep.subr.mxu0 0.0
    %1290 = vmatpush1.msra.mxu0 0.0
    %1291 = vmatprep.subr.mxu0 0.0
    %1292 = vmatpush1.msra.mxu0 0.0
    %1293 = vmatprep.subr.mxu0 0.0
    %1294 = vmatpush1.msra.mxu0 0.0
    %1295 = vmatprep.subr.mxu0 0.0
    %1296 = vmatpush1.msra.mxu0 0.0
    %1297 = vmatprep.subr.mxu0 0.0
    %1298 = vmatpush1.msra.mxu0 0.0
    %1299 = vmatprep.subr.mxu0 0.0
    %1300 = vmatpush1.msra.mxu0 0.0
    %1301 = vmatprep.subr.mxu0 0.0
    %1302 = vmatpush1.msra.mxu0 0.0
    %1303 = vmatprep.subr.mxu0 0.0
    %1304 = vmatpush1.msra.mxu0 0.0
    %1305 = vmatprep.subr.mxu0 0.0
    %1306 = vmatpush1.msra.mxu0 0.0
    %1307 = vmatprep.subr.mxu0 0.0
    %1308 = vmatpush1.msra.mxu0 0.0
    %1309 = vmatprep.mubr.f32.mxu0 0.0
    %1310 = vmatmul.mubr.f32.gmra.mrb[0].mxu0 %v1243
    %v1311 = vpop.f32.mrb[0].mxu0
    %v1312 = vadd.f32 %v337, %v1311
    %v1313 = vpop.f32.mrb[0].mxu0
    %1314 = vdwg.mxu0
    %v1315 = vsub.f32 %v1013, %v1162
    %v1316 = vmul.f32 %v1315, 0.14285715
    %v1317 = vadd.f32 %v868, %v1316
    %v1318 = vmul.f32 %v1312, 0.14285715
    %v1319 = vadd.f32 %v1317, %v1318
    %v1321 = vsel %vm259, %v1319, 0
    %1323 = vmatprep.subr.mxu0 0.0
    %1324 = vmatpush1.msra.mxu0 %v82
    %1325 = vmatprep.subr.mxu0 0.0
    %1326 = vmatpush1.msra.mxu0 %v83
    %1327 = vmatprep.subr.mxu0 0.0
    %1328 = vmatpush1.msra.mxu0 0.0
    %1329 = vmatprep.subr.mxu0 0.0
    %1330 = vmatpush1.msra.mxu0 0.0
    %1331 = vmatprep.subr.mxu0 0.0
    %1332 = vmatpush1.msra.mxu0 0.0
    %1333 = vmatprep.subr.mxu0 0.0
    %1334 = vmatpush1.msra.mxu0 0.0
    %1335 = vmatprep.subr.mxu0 0.0
    %1336 = vmatpush1.msra.mxu0 0.0
    %1337 = vmatprep.subr.mxu0 0.0
    %1338 = vmatpush1.msra.mxu0 0.0
    %1339 = vmatprep.subr.mxu0 0.0
    %1340 = vmatpush1.msra.mxu0 0.0
    %1341 = vmatprep.subr.mxu0 0.0
    %1342 = vmatpush1.msra.mxu0 0.0
    %1343 = vmatprep.subr.mxu0 0.0
    %1344 = vmatpush1.msra.mxu0 0.0
    %1345 = vmatprep.subr.mxu0 0.0
    %1346 = vmatpush1.msra.mxu0 0.0
    %1347 = vmatprep.subr.mxu0 0.0
    %1348 = vmatpush1.msra.mxu0 0.0
    %1349 = vmatprep.subr.mxu0 0.0
    %1350 = vmatpush1.msra.mxu0 0.0
    %1351 = vmatprep.subr.mxu0 0.0
    %1352 = vmatpush1.msra.mxu0 0.0
    %1353 = vmatprep.subr.mxu0 0.0
    %1354 = vmatpush1.msra.mxu0 0.0
    %1355 = vmatprep.subr.mxu0 0.0
    %1356 = vmatpush1.msra.mxu0 0.0
    %1357 = vmatprep.subr.mxu0 0.0
    %1358 = vmatpush1.msra.mxu0 0.0
    %1359 = vmatprep.subr.mxu0 0.0
    %1360 = vmatpush1.msra.mxu0 0.0
    %1361 = vmatprep.subr.mxu0 0.0
    %1362 = vmatpush1.msra.mxu0 0.0
    %1363 = vmatprep.subr.mxu0 0.0
    %1364 = vmatpush1.msra.mxu0 0.0
    %1365 = vmatprep.subr.mxu0 0.0
    %1366 = vmatpush1.msra.mxu0 0.0
    %1367 = vmatprep.subr.mxu0 0.0
    %1368 = vmatpush1.msra.mxu0 0.0
    %1369 = vmatprep.subr.mxu0 0.0
    %1370 = vmatpush1.msra.mxu0 0.0
    %1371 = vmatprep.subr.mxu0 0.0
    %1372 = vmatpush1.msra.mxu0 0.0
    %1373 = vmatprep.subr.mxu0 0.0
    %1374 = vmatpush1.msra.mxu0 0.0
    %1375 = vmatprep.subr.mxu0 0.0
    %1376 = vmatpush1.msra.mxu0 0.0
    %1377 = vmatprep.subr.mxu0 0.0
    %1378 = vmatpush1.msra.mxu0 0.0
    %1379 = vmatprep.subr.mxu0 0.0
    %1380 = vmatpush1.msra.mxu0 0.0
    %1381 = vmatprep.subr.mxu0 0.0
    %1382 = vmatpush1.msra.mxu0 0.0
    %1383 = vmatprep.subr.mxu0 0.0
    %1384 = vmatpush1.msra.mxu0 0.0
    %1385 = vmatprep.subr.mxu0 0.0
    %1386 = vmatpush1.msra.mxu0 0.0
    %1387 = vmatprep.mubr.f32.mxu0 0.0
    %1388 = vmatmul.mubr.f32.gmra.mrb[0].mxu0 %v1321
    %v1389 = vpop.f32.mrb[0].mxu0
    %v1390 = vadd.f32 %v258, %v1389
    %v1391 = vpop.f32.mrb[0].mxu0
    %1392 = vdwg.mxu0
    %v1393 = vtanh.pop %v1390
    %v1395 = vsel %vm93, %v1393, 0
    %1397 = vmatprep.subr.mxu0 0.0
    %1398 = vmatpush1.msra.mxu0 %v84
    %1399 = vmatprep.subr.mxu0 0.0
    %1400 = vmatpush1.msra.mxu0 %v85
    %1401 = vmatprep.subr.mxu0 0.0
    %1402 = vmatpush1.msra.mxu0 %v86
    %1403 = vmatprep.subr.mxu0 0.0
    %1404 = vmatpush1.msra.mxu0 %v87
    %1405 = vmatprep.subr.mxu0 0.0
    %1406 = vmatpush1.msra.mxu0 0.0
    %1407 = vmatprep.subr.mxu0 0.0
    %1408 = vmatpush1.msra.mxu0 0.0
    %1409 = vmatprep.subr.mxu0 0.0
    %1410 = vmatpush1.msra.mxu0 0.0
    %1411 = vmatprep.subr.mxu0 0.0
    %1412 = vmatpush1.msra.mxu0 0.0
    %1413 = vmatprep.subr.mxu0 0.0
    %1414 = vmatpush1.msra.mxu0 0.0
    %1415 = vmatprep.subr.mxu0 0.0
    %1416 = vmatpush1.msra.mxu0 0.0
    %1417 = vmatprep.subr.mxu0 0.0
    %1418 = vmatpush1.msra.mxu0 0.0
    %1419 = vmatprep.subr.mxu0 0.0
    %1420 = vmatpush1.msra.mxu0 0.0
    %1421 = vmatprep.subr.mxu0 0.0
    %1422 = vmatpush1.msra.mxu0 0.0
    %1423 = vmatprep.subr.mxu0 0.0
    %1424 = vmatpush1.msra.mxu0 0.0
    %1425 = vmatprep.subr.mxu0 0.0
    %1426 = vmatpush1.msra.mxu0 0.0
    %1427 = vmatprep.subr.mxu0 0.0
    %1428 = vmatpush1.msra.mxu0 0.0
    %1429 = vmatprep.subr.mxu0 0.0
    %1430 = vmatpush1.msra.mxu0 0.0
    %1431 = vmatprep.subr.mxu0 0.0
    %1432 = vmatpush1.msra.mxu0 0.0
    %1433 = vmatprep.subr.mxu0 0.0
    %1434 = vmatpush1.msra.mxu0 0.0
    %1435 = vmatprep.subr.mxu0 0.0
    %1436 = vmatpush1.msra.mxu0 0.0
    %1437 = vmatprep.subr.mxu0 0.0
    %1438 = vmatpush1.msra.mxu0 0.0
    %1439 = vmatprep.subr.mxu0 0.0
    %1440 = vmatpush1.msra.mxu0 0.0
    %1441 = vmatprep.subr.mxu0 0.0
    %1442 = vmatpush1.msra.mxu0 0.0
    %1443 = vmatprep.subr.mxu0 0.0
    %1444 = vmatpush1.msra.mxu0 0.0
    %1445 = vmatprep.subr.mxu0 0.0
    %1446 = vmatpush1.msra.mxu0 0.0
    %1447 = vmatprep.subr.mxu0 0.0
    %1448 = vmatpush1.msra.mxu0 0.0
    %1449 = vmatprep.subr.mxu0 0.0
    %1450 = vmatpush1.msra.mxu0 0.0
    %1451 = vmatprep.subr.mxu0 0.0
    %1452 = vmatpush1.msra.mxu0 0.0
    %1453 = vmatprep.subr.mxu0 0.0
    %1454 = vmatpush1.msra.mxu0 0.0
    %1455 = vmatprep.subr.mxu0 0.0
    %1456 = vmatpush1.msra.mxu0 0.0
    %1457 = vmatprep.subr.mxu0 0.0
    %1458 = vmatpush1.msra.mxu0 0.0
    %1459 = vmatprep.subr.mxu0 0.0
    %1460 = vmatpush1.msra.mxu0 0.0
    %1461 = vmatprep.mubr.f32.mxu0 0.0
    %1462 = vmatmul.mubr.f32.gmra.mrb[0].mxu0 %v1395
    %v1463 = vpop.f32.mrb[0].mxu0
    %v1464 = vadd.f32 %v337, %v1463
    %v1465 = vpop.f32.mrb[0].mxu0
    %1466 = vdwg.mxu0
    %v1467 = vadd.f32 %v1162, %v1312
    %v1468 = vmul.f32 %v1467, 3.0
    %v1469 = vadd.f32 %v1013, %v1468
    %v1470 = vmul.f32 %v1469, 0.017857144
    %v1471 = vadd.f32 %v868, %v1470
    %v1472 = vmul.f32 %v1464, 0.017857144
    %v1473 = vadd.f32 %v1471, %v1472
    %v1475 = vsel %vm259, %v1473, 0
    %1477 = vmatprep.subr.mxu0 0.0
    %1478 = vmatpush1.msra.mxu0 %v82
    %1479 = vmatprep.subr.mxu0 0.0
    %1480 = vmatpush1.msra.mxu0 %v83
    %1481 = vmatprep.subr.mxu0 0.0
    %1482 = vmatpush1.msra.mxu0 0.0
    %1483 = vmatprep.subr.mxu0 0.0
    %1484 = vmatpush1.msra.mxu0 0.0
    %1485 = vmatprep.subr.mxu0 0.0
    %1486 = vmatpush1.msra.mxu0 0.0
    %1487 = vmatprep.subr.mxu0 0.0
    %1488 = vmatpush1.msra.mxu0 0.0
    %1489 = vmatprep.subr.mxu0 0.0
    %1490 = vmatpush1.msra.mxu0 0.0
    %1491 = vmatprep.subr.mxu0 0.0
    %1492 = vmatpush1.msra.mxu0 0.0
    %1493 = vmatprep.subr.mxu0 0.0
    %1494 = vmatpush1.msra.mxu0 0.0
    %1495 = vmatprep.subr.mxu0 0.0
    %1496 = vmatpush1.msra.mxu0 0.0
    %1497 = vmatprep.subr.mxu0 0.0
    %1498 = vmatpush1.msra.mxu0 0.0
    %1499 = vmatprep.subr.mxu0 0.0
    %1500 = vmatpush1.msra.mxu0 0.0
    %1501 = vmatprep.subr.mxu0 0.0
    %1502 = vmatpush1.msra.mxu0 0.0
    %1503 = vmatprep.subr.mxu0 0.0
    %1504 = vmatpush1.msra.mxu0 0.0
    %1505 = vmatprep.subr.mxu0 0.0
    %1506 = vmatpush1.msra.mxu0 0.0
    %1507 = vmatprep.subr.mxu0 0.0
    %1508 = vmatpush1.msra.mxu0 0.0
    %1509 = vmatprep.subr.mxu0 0.0
    %1510 = vmatpush1.msra.mxu0 0.0
    %1511 = vmatprep.subr.mxu0 0.0
    %1512 = vmatpush1.msra.mxu0 0.0
    %1513 = vmatprep.subr.mxu0 0.0
    %1514 = vmatpush1.msra.mxu0 0.0
    %1515 = vmatprep.subr.mxu0 0.0
    %1516 = vmatpush1.msra.mxu0 0.0
    %1517 = vmatprep.subr.mxu0 0.0
    %1518 = vmatpush1.msra.mxu0 0.0
    %1519 = vmatprep.subr.mxu0 0.0
    %1520 = vmatpush1.msra.mxu0 0.0
    %1521 = vmatprep.subr.mxu0 0.0
    %1522 = vmatpush1.msra.mxu0 0.0
    %1523 = vmatprep.subr.mxu0 0.0
    %1524 = vmatpush1.msra.mxu0 0.0
    %1525 = vmatprep.subr.mxu0 0.0
    %1526 = vmatpush1.msra.mxu0 0.0
    %1527 = vmatprep.subr.mxu0 0.0
    %1528 = vmatpush1.msra.mxu0 0.0
    %1529 = vmatprep.subr.mxu0 0.0
    %1530 = vmatpush1.msra.mxu0 0.0
    %1531 = vmatprep.subr.mxu0 0.0
    %1532 = vmatpush1.msra.mxu0 0.0
    %1533 = vmatprep.subr.mxu0 0.0
    %1534 = vmatpush1.msra.mxu0 0.0
    %1535 = vmatprep.subr.mxu0 0.0
    %1536 = vmatpush1.msra.mxu0 0.0
    %1537 = vmatprep.subr.mxu0 0.0
    %1538 = vmatpush1.msra.mxu0 0.0
    %1539 = vmatprep.subr.mxu0 0.0
    %1540 = vmatpush1.msra.mxu0 0.0
    %1541 = vmatprep.mubr.f32.mxu0 0.0
    %1542 = vmatmul.mubr.f32.gmra.mrb[0].mxu0 %v1475
    %v1543 = vpop.f32.mrb[0].mxu0
    %v1544 = vadd.f32 %v258, %v1543
    %v1545 = vpop.f32.mrb[0].mxu0
    %1546 = vdwg.mxu0
    %v1547 = vtanh.pop %v1544
    %v1549 = vsel %vm93, %v1547, 0
    %1551 = vmatprep.subr.mxu0 0.0
    %1552 = vmatpush1.msra.mxu0 %v84
    %1553 = vmatprep.subr.mxu0 0.0
    %1554 = vmatpush1.msra.mxu0 %v85
    %1555 = vmatprep.subr.mxu0 0.0
    %1556 = vmatpush1.msra.mxu0 %v86
    %1557 = vmatprep.subr.mxu0 0.0
    %1558 = vmatpush1.msra.mxu0 %v87
    %1559 = vmatprep.subr.mxu0 0.0
    %1560 = vmatpush1.msra.mxu0 0.0
    %1561 = vmatprep.subr.mxu0 0.0
    %1562 = vmatpush1.msra.mxu0 0.0
    %1563 = vmatprep.subr.mxu0 0.0
    %1564 = vmatpush1.msra.mxu0 0.0
    %1565 = vmatprep.subr.mxu0 0.0
    %1566 = vmatpush1.msra.mxu0 0.0
    %1567 = vmatprep.subr.mxu0 0.0
    %1568 = vmatpush1.msra.mxu0 0.0
    %1569 = vmatprep.subr.mxu0 0.0
    %1570 = vmatpush1.msra.mxu0 0.0
    %1571 = vmatprep.subr.mxu0 0.0
    %1572 = vmatpush1.msra.mxu0 0.0
    %1573 = vmatprep.subr.mxu0 0.0
    %1574 = vmatpush1.msra.mxu0 0.0
    %1575 = vmatprep.subr.mxu0 0.0
    %1576 = vmatpush1.msra.mxu0 0.0
    %1577 = vmatprep.subr.mxu0 0.0
    %1578 = vmatpush1.msra.mxu0 0.0
    %1579 = vmatprep.subr.mxu0 0.0
    %1580 = vmatpush1.msra.mxu0 0.0
    %1581 = vmatprep.subr.mxu0 0.0
    %1582 = vmatpush1.msra.mxu0 0.0
    %1583 = vmatprep.subr.mxu0 0.0
    %1584 = vmatpush1.msra.mxu0 0.0
    %1585 = vmatprep.subr.mxu0 0.0
    %1586 = vmatpush1.msra.mxu0 0.0
    %1587 = vmatprep.subr.mxu0 0.0
    %1588 = vmatpush1.msra.mxu0 0.0
    %1589 = vmatprep.subr.mxu0 0.0
    %1590 = vmatpush1.msra.mxu0 0.0
    %1591 = vmatprep.subr.mxu0 0.0
    %1592 = vmatpush1.msra.mxu0 0.0
    %1593 = vmatprep.subr.mxu0 0.0
    %1594 = vmatpush1.msra.mxu0 0.0
    %1595 = vmatprep.subr.mxu0 0.0
    %1596 = vmatpush1.msra.mxu0 0.0
    %1597 = vmatprep.subr.mxu0 0.0
    %1598 = vmatpush1.msra.mxu0 0.0
    %1599 = vmatprep.subr.mxu0 0.0
    %1600 = vmatpush1.msra.mxu0 0.0
    %1601 = vmatprep.subr.mxu0 0.0
    %1602 = vmatpush1.msra.mxu0 0.0
    %1603 = vmatprep.subr.mxu0 0.0
    %1604 = vmatpush1.msra.mxu0 0.0
    %1605 = vmatprep.subr.mxu0 0.0
    %1606 = vmatpush1.msra.mxu0 0.0
    %1607 = vmatprep.subr.mxu0 0.0
    %1608 = vmatpush1.msra.mxu0 0.0
    %1609 = vmatprep.subr.mxu0 0.0
    %1610 = vmatpush1.msra.mxu0 0.0
    %1611 = vmatprep.subr.mxu0 0.0
    %1612 = vmatpush1.msra.mxu0 0.0
    %1613 = vmatprep.subr.mxu0 0.0
    %1614 = vmatpush1.msra.mxu0 0.0
    %1615 = vmatprep.mubr.f32.mxu0 0.0
    %1616 = vmatmul.mubr.f32.gmra.mrb[0].mxu0 %v1549
    %v1617 = vpop.f32.mrb[0].mxu0
    %v1618 = vadd.f32 %v337, %v1617
    %v1619 = vpop.f32.mrb[0].mxu0
    %1620 = vdwg.mxu0
    %v1621 = vmul.f32 %v1618, 0.04761905
    %v1622 = vadd.f32 %v1473, %v1621
    %v1624 = vsel %vm259, %v1622, 0
    %1626 = vmatprep.subr.mxu0 0.0
    %1627 = vmatpush1.msra.mxu0 %v82
    %1628 = vmatprep.subr.mxu0 0.0
    %1629 = vmatpush1.msra.mxu0 %v83
    %1630 = vmatprep.subr.mxu0 0.0
    %1631 = vmatpush1.msra.mxu0 0.0
    %1632 = vmatprep.subr.mxu0 0.0
    %1633 = vmatpush1.msra.mxu0 0.0
    %1634 = vmatprep.subr.mxu0 0.0
    %1635 = vmatpush1.msra.mxu0 0.0
    %1636 = vmatprep.subr.mxu0 0.0
    %1637 = vmatpush1.msra.mxu0 0.0
    %1638 = vmatprep.subr.mxu0 0.0
    %1639 = vmatpush1.msra.mxu0 0.0
    %1640 = vmatprep.subr.mxu0 0.0
    %1641 = vmatpush1.msra.mxu0 0.0
    %1642 = vmatprep.subr.mxu0 0.0
    %1643 = vmatpush1.msra.mxu0 0.0
    %1644 = vmatprep.subr.mxu0 0.0
    %1645 = vmatpush1.msra.mxu0 0.0
    %1646 = vmatprep.subr.mxu0 0.0
    %1647 = vmatpush1.msra.mxu0 0.0
    %1648 = vmatprep.subr.mxu0 0.0
    %1649 = vmatpush1.msra.mxu0 0.0
    %1650 = vmatprep.subr.mxu0 0.0
    %1651 = vmatpush1.msra.mxu0 0.0
    %1652 = vmatprep.subr.mxu0 0.0
    %1653 = vmatpush1.msra.mxu0 0.0
    %1654 = vmatprep.subr.mxu0 0.0
    %1655 = vmatpush1.msra.mxu0 0.0
    %1656 = vmatprep.subr.mxu0 0.0
    %1657 = vmatpush1.msra.mxu0 0.0
    %1658 = vmatprep.subr.mxu0 0.0
    %1659 = vmatpush1.msra.mxu0 0.0
    %1660 = vmatprep.subr.mxu0 0.0
    %1661 = vmatpush1.msra.mxu0 0.0
    %1662 = vmatprep.subr.mxu0 0.0
    %1663 = vmatpush1.msra.mxu0 0.0
    %1664 = vmatprep.subr.mxu0 0.0
    %1665 = vmatpush1.msra.mxu0 0.0
    %1666 = vmatprep.subr.mxu0 0.0
    %1667 = vmatpush1.msra.mxu0 0.0
    %1668 = vmatprep.subr.mxu0 0.0
    %1669 = vmatpush1.msra.mxu0 0.0
    %1670 = vmatprep.subr.mxu0 0.0
    %1671 = vmatpush1.msra.mxu0 0.0
    %1672 = vmatprep.subr.mxu0 0.0
    %1673 = vmatpush1.msra.mxu0 0.0
    %1674 = vmatprep.subr.mxu0 0.0
    %1675 = vmatpush1.msra.mxu0 0.0
    %1676 = vmatprep.subr.mxu0 0.0
    %1677 = vmatpush1.msra.mxu0 0.0
    %1678 = vmatprep.subr.mxu0 0.0
    %1679 = vmatpush1.msra.mxu0 0.0
    %1680 = vmatprep.subr.mxu0 0.0
    %1681 = vmatpush1.msra.mxu0 0.0
    %1682 = vmatprep.subr.mxu0 0.0
    %1683 = vmatpush1.msra.mxu0 0.0
    %1684 = vmatprep.subr.mxu0 0.0
    %1685 = vmatpush1.msra.mxu0 0.0
    %1686 = vmatprep.subr.mxu0 0.0
    %1687 = vmatpush1.msra.mxu0 0.0
    %1688 = vmatprep.subr.mxu0 0.0
    %1689 = vmatpush1.msra.mxu0 0.0
    %1690 = vmatprep.mubr.f32.mxu0 0.0
    %1691 = vmatmul.mubr.f32.gmra.mrb[0].mxu0 %v1624
    %v1692 = vpop.f32.mrb[0].mxu0
    %v1693 = vadd.f32 %v258, %v1692
    %v1694 = vpop.f32.mrb[0].mxu0
    %1695 = vdwg.mxu0
    %v1696 = vtanh.pop %v1693
    %v1698 = vsel %vm93, %v1696, 0
    %1700 = vmatprep.subr.mxu0 0.0
    %1701 = vmatpush1.msra.mxu0 %v84
    %1702 = vmatprep.subr.mxu0 0.0
    %1703 = vmatpush1.msra.mxu0 %v85
    %1704 = vmatprep.subr.mxu0 0.0
    %1705 = vmatpush1.msra.mxu0 %v86
    %1706 = vmatprep.subr.mxu0 0.0
    %1707 = vmatpush1.msra.mxu0 %v87
    %1708 = vmatprep.subr.mxu0 0.0
    %1709 = vmatpush1.msra.mxu0 0.0
    %1710 = vmatprep.subr.mxu0 0.0
    %1711 = vmatpush1.msra.mxu0 0.0
    %1712 = vmatprep.subr.mxu0 0.0
    %1713 = vmatpush1.msra.mxu0 0.0
    %1714 = vmatprep.subr.mxu0 0.0
    %1715 = vmatpush1.msra.mxu0 0.0
    %1716 = vmatprep.subr.mxu0 0.0
    %1717 = vmatpush1.msra.mxu0 0.0
    %1718 = vmatprep.subr.mxu0 0.0
    %1719 = vmatpush1.msra.mxu0 0.0
    %1720 = vmatprep.subr.mxu0 0.0
    %1721 = vmatpush1.msra.mxu0 0.0
    %1722 = vmatprep.subr.mxu0 0.0
    %1723 = vmatpush1.msra.mxu0 0.0
    %1724 = vmatprep.subr.mxu0 0.0
    %1725 = vmatpush1.msra.mxu0 0.0
    %1726 = vmatprep.subr.mxu0 0.0
    %1727 = vmatpush1.msra.mxu0 0.0
    %1728 = vmatprep.subr.mxu0 0.0
    %1729 = vmatpush1.msra.mxu0 0.0
    %1730 = vmatprep.subr.mxu0 0.0
    %1731 = vmatpush1.msra.mxu0 0.0
    %1732 = vmatprep.subr.mxu0 0.0
    %1733 = vmatpush1.msra.mxu0 0.0
    %1734 = vmatprep.subr.mxu0 0.0
    %1735 = vmatpush1.msra.mxu0 0.0
    %1736 = vmatprep.subr.mxu0 0.0
    %1737 = vmatpush1.msra.mxu0 0.0
    %1738 = vmatprep.subr.mxu0 0.0
    %1739 = vmatpush1.msra.mxu0 0.0
    %1740 = vmatprep.subr.mxu0 0.0
    %1741 = vmatpush1.msra.mxu0 0.0
    %1742 = vmatprep.subr.mxu0 0.0
    %1743 = vmatpush1.msra.mxu0 0.0
    %1744 = vmatprep.subr.mxu0 0.0
    %1745 = vmatpush1.msra.mxu0 0.0
    %1746 = vmatprep.subr.mxu0 0.0
    %1747 = vmatpush1.msra.mxu0 0.0
    %1748 = vmatprep.subr.mxu0 0.0
    %1749 = vmatpush1.msra.mxu0 0.0
    %1750 = vmatprep.subr.mxu0 0.0
    %1751 = vmatpush1.msra.mxu0 0.0
    %1752 = vmatprep.subr.mxu0 0.0
    %1753 = vmatpush1.msra.mxu0 0.0
    %1754 = vmatprep.subr.mxu0 0.0
    %1755 = vmatpush1.msra.mxu0 0.0
    %1756 = vmatprep.subr.mxu0 0.0
    %1757 = vmatpush1.msra.mxu0 0.0
    %1758 = vmatprep.subr.mxu0 0.0
    %1759 = vmatpush1.msra.mxu0 0.0
    %1760 = vmatprep.subr.mxu0 0.0
    %1761 = vmatpush1.msra.mxu0 0.0
    %1762 = vmatprep.subr.mxu0 0.0
    %1763 = vmatpush1.msra.mxu0 0.0
    %1764 = vmatprep.mubr.f32.mxu0 0.0
    %1765 = vmatmul.mubr.f32.gmra.mrb[0].mxu0 %v1698
    %v1766 = vpop.f32.mrb[0].mxu0
    %v1767 = vadd.f32 %v337, %v1766
    %v1768 = vpop.f32.mrb[0].mxu0
    %1769 = vdwg.mxu0
    %v1770 = vsub.f32 %v1473, %v1621
    %v1771 = vmul.f32 %v1767, 0.14285715
    %v1772 = vadd.f32 %v1770, %v1771
    %v1774 = vsel %vm259, %v1772, 0
    %1776 = vmatprep.subr.mxu0 0.0
    %1777 = vmatpush1.msra.mxu0 %v82
    %1778 = vmatprep.subr.mxu0 0.0
    %1779 = vmatpush1.msra.mxu0 %v83
    %1780 = vmatprep.subr.mxu0 0.0
    %1781 = vmatpush1.msra.mxu0 0.0
    %1782 = vmatprep.subr.mxu0 0.0
    %1783 = vmatpush1.msra.mxu0 0.0
    %1784 = vmatprep.subr.mxu0 0.0
    %1785 = vmatpush1.msra.mxu0 0.0
    %1786 = vmatprep.subr.mxu0 0.0
    %1787 = vmatpush1.msra.mxu0 0.0
    %1788 = vmatprep.subr.mxu0 0.0
    %1789 = vmatpush1.msra.mxu0 0.0
    %1790 = vmatprep.subr.mxu0 0.0
    %1791 = vmatpush1.msra.mxu0 0.0
    %1792 = vmatprep.subr.mxu0 0.0
    %1793 = vmatpush1.msra.mxu0 0.0
    %1794 = vmatprep.subr.mxu0 0.0
    %1795 = vmatpush1.msra.mxu0 0.0
    %1796 = vmatprep.subr.mxu0 0.0
    %1797 = vmatpush1.msra.mxu0 0.0
    %1798 = vmatprep.subr.mxu0 0.0
    %1799 = vmatpush1.msra.mxu0 0.0
    %1800 = vmatprep.subr.mxu0 0.0
    %1801 = vmatpush1.msra.mxu0 0.0
    %1802 = vmatprep.subr.mxu0 0.0
    %1803 = vmatpush1.msra.mxu0 0.0
    %1804 = vmatprep.subr.mxu0 0.0
    %1805 = vmatpush1.msra.mxu0 0.0
    %1806 = vmatprep.subr.mxu0 0.0
    %1807 = vmatpush1.msra.mxu0 0.0
    %1808 = vmatprep.subr.mxu0 0.0
    %1809 = vmatpush1.msra.mxu0 0.0
    %1810 = vmatprep.subr.mxu0 0.0
    %1811 = vmatpush1.msra.mxu0 0.0
    %1812 = vmatprep.subr.mxu0 0.0
    %1813 = vmatpush1.msra.mxu0 0.0
    %1814 = vmatprep.subr.mxu0 0.0
    %1815 = vmatpush1.msra.mxu0 0.0
    %1816 = vmatprep.subr.mxu0 0.0
    %1817 = vmatpush1.msra.mxu0 0.0
    %1818 = vmatprep.subr.mxu0 0.0
    %1819 = vmatpush1.msra.mxu0 0.0
    %1820 = vmatprep.subr.mxu0 0.0
    %1821 = vmatpush1.msra.mxu0 0.0
    %1822 = vmatprep.subr.mxu0 0.0
    %1823 = vmatpush1.msra.mxu0 0.0
    %1824 = vmatprep.subr.mxu0 0.0
    %1825 = vmatpush1.msra.mxu0 0.0
    %1826 = vmatprep.subr.mxu0 0.0
    %1827 = vmatpush1.msra.mxu0 0.0
    %1828 = vmatprep.subr.mxu0 0.0
    %1829 = vmatpush1.msra.mxu0 0.0
    %1830 = vmatprep.subr.mxu0 0.0
    %1831 = vmatpush1.msra.mxu0 0.0
    %1832 = vmatprep.subr.mxu0 0.0
    %1833 = vmatpush1.msra.mxu0 0.0
    %1834 = vmatprep.subr.mxu0 0.0
    %1835 = vmatpush1.msra.mxu0 0.0
    %1836 = vmatprep.subr.mxu0 0.0
    %1837 = vmatpush1.msra.mxu0 0.0
    %1838 = vmatprep.subr.mxu0 0.0
    %1839 = vmatpush1.msra.mxu0 0.0
    %1840 = vmatprep.mubr.f32.mxu0 0.0
    %1841 = vmatmul.mubr.f32.gmra.mrb[0].mxu0 %v1774
    %v1842 = vpop.f32.mrb[0].mxu0
    %v1843 = vadd.f32 %v258, %v1842
    %v1844 = vpop.f32.mrb[0].mxu0
    %1845 = vdwg.mxu0
    %v1846 = vtanh.pop %v1843
    %v1848 = vsel %vm93, %v1846, 0
    %1850 = vmatprep.subr.mxu0 0.0
    %1851 = vmatpush1.msra.mxu0 %v84
    %1852 = vmatprep.subr.mxu0 0.0
    %1853 = vmatpush1.msra.mxu0 %v85
    %1854 = vmatprep.subr.mxu0 0.0
    %1855 = vmatpush1.msra.mxu0 %v86
    %1856 = vmatprep.subr.mxu0 0.0
    %1857 = vmatpush1.msra.mxu0 %v87
    %1858 = vmatprep.subr.mxu0 0.0
    %1859 = vmatpush1.msra.mxu0 0.0
    %1860 = vmatprep.subr.mxu0 0.0
    %1861 = vmatpush1.msra.mxu0 0.0
    %1862 = vmatprep.subr.mxu0 0.0
    %1863 = vmatpush1.msra.mxu0 0.0
    %1864 = vmatprep.subr.mxu0 0.0
    %1865 = vmatpush1.msra.mxu0 0.0
    %1866 = vmatprep.subr.mxu0 0.0
    %1867 = vmatpush1.msra.mxu0 0.0
    %1868 = vmatprep.subr.mxu0 0.0
    %1869 = vmatpush1.msra.mxu0 0.0
    %1870 = vmatprep.subr.mxu0 0.0
    %1871 = vmatpush1.msra.mxu0 0.0
    %1872 = vmatprep.subr.mxu0 0.0
    %1873 = vmatpush1.msra.mxu0 0.0
    %1874 = vmatprep.subr.mxu0 0.0
    %1875 = vmatpush1.msra.mxu0 0.0
    %1876 = vmatprep.subr.mxu0 0.0
    %1877 = vmatpush1.msra.mxu0 0.0
    %1878 = vmatprep.subr.mxu0 0.0
    %1879 = vmatpush1.msra.mxu0 0.0
    %1880 = vmatprep.subr.mxu0 0.0
    %1881 = vmatpush1.msra.mxu0 0.0
    %1882 = vmatprep.subr.mxu0 0.0
    %1883 = vmatpush1.msra.mxu0 0.0
    %1884 = vmatprep.subr.mxu0 0.0
    %1885 = vmatpush1.msra.mxu0 0.0
    %1886 = vmatprep.subr.mxu0 0.0
    %1887 = vmatpush1.msra.mxu0 0.0
    %1888 = vmatprep.subr.mxu0 0.0
    %1889 = vmatpush1.msra.mxu0 0.0
    %1890 = vmatprep.subr.mxu0 0.0
    %1891 = vmatpush1.msra.mxu0 0.0
    %1892 = vmatprep.subr.mxu0 0.0
    %1893 = vmatpush1.msra.mxu0 0.0
    %1894 = vmatprep.subr.mxu0 0.0
    %1895 = vmatpush1.msra.mxu0 0.0
    %1896 = vmatprep.subr.mxu0 0.0
    %1897 = vmatpush1.msra.mxu0 0.0
    %1898 = vmatprep.subr.mxu0 0.0
    %1899 = vmatpush1.msra.mxu0 0.0
    %1900 = vmatprep.subr.mxu0 0.0
    %1901 = vmatpush1.msra.mxu0 0.0
    %1902 = vmatprep.subr.mxu0 0.0
    %1903 = vmatpush1.msra.mxu0 0.0
    %1904 = vmatprep.subr.mxu0 0.0
    %1905 = vmatpush1.msra.mxu0 0.0
    %1906 = vmatprep.subr.mxu0 0.0
    %1907 = vmatpush1.msra.mxu0 0.0
    %1908 = vmatprep.subr.mxu0 0.0
    %1909 = vmatpush1.msra.mxu0 0.0
    %1910 = vmatprep.subr.mxu0 0.0
    %1911 = vmatpush1.msra.mxu0 0.0
    %1912 = vmatprep.subr.mxu0 0.0
    %1913 = vmatpush1.msra.mxu0 0.0
    %1914 = vmatprep.mubr.f32.mxu0 0.0
    %1915 = vmatmul.mubr.f32.gmra.mrb[0].mxu0 %v1848
    %v1916 = vpop.f32.mrb[0].mxu0
    %v1917 = vadd.f32 %v337, %v1916
    %v1918 = vpop.f32.mrb[0].mxu0
    %1919 = vdwg.mxu0
    %v1920 = vsub.f32 %v1618, %v1767
    %v1921 = vmul.f32 %v1920, 0.14285715
    %v1922 = vadd.f32 %v1473, %v1921
    %v1923 = vmul.f32 %v1917, 0.14285715
    %v1924 = vadd.f32 %v1922, %v1923
    %v1926 = vsel %vm259, %v1924, 0
    %1928 = vmatprep.subr.mxu0 0.0
    %1929 = vmatpush1.msra.mxu0 %v82
    %1930 = vmatprep.subr.mxu0 0.0
    %1931 = vmatpush1.msra.mxu0 %v83
    %1932 = vmatprep.subr.mxu0 0.0
    %1933 = vmatpush1.msra.mxu0 0.0
    %1934 = vmatprep.subr.mxu0 0.0
    %1935 = vmatpush1.msra.mxu0 0.0
    %1936 = vmatprep.subr.mxu0 0.0
    %1937 = vmatpush1.msra.mxu0 0.0
    %1938 = vmatprep.subr.mxu0 0.0
    %1939 = vmatpush1.msra.mxu0 0.0
    %1940 = vmatprep.subr.mxu0 0.0
    %1941 = vmatpush1.msra.mxu0 0.0
    %1942 = vmatprep.subr.mxu0 0.0
    %1943 = vmatpush1.msra.mxu0 0.0
    %1944 = vmatprep.subr.mxu0 0.0
    %1945 = vmatpush1.msra.mxu0 0.0
    %1946 = vmatprep.subr.mxu0 0.0
    %1947 = vmatpush1.msra.mxu0 0.0
    %1948 = vmatprep.subr.mxu0 0.0
    %1949 = vmatpush1.msra.mxu0 0.0
    %1950 = vmatprep.subr.mxu0 0.0
    %1951 = vmatpush1.msra.mxu0 0.0
    %1952 = vmatprep.subr.mxu0 0.0
    %1953 = vmatpush1.msra.mxu0 0.0
    %1954 = vmatprep.subr.mxu0 0.0
    %1955 = vmatpush1.msra.mxu0 0.0
    %1956 = vmatprep.subr.mxu0 0.0
    %1957 = vmatpush1.msra.mxu0 0.0
    %1958 = vmatprep.subr.mxu0 0.0
    %1959 = vmatpush1.msra.mxu0 0.0
    %1960 = vmatprep.subr.mxu0 0.0
    %1961 = vmatpush1.msra.mxu0 0.0
    %1962 = vmatprep.subr.mxu0 0.0
    %1963 = vmatpush1.msra.mxu0 0.0
    %1964 = vmatprep.subr.mxu0 0.0
    %1965 = vmatpush1.msra.mxu0 0.0
    %1966 = vmatprep.subr.mxu0 0.0
    %1967 = vmatpush1.msra.mxu0 0.0
    %1968 = vmatprep.subr.mxu0 0.0
    %1969 = vmatpush1.msra.mxu0 0.0
    %1970 = vmatprep.subr.mxu0 0.0
    %1971 = vmatpush1.msra.mxu0 0.0
    %1972 = vmatprep.subr.mxu0 0.0
    %1973 = vmatpush1.msra.mxu0 0.0
    %1974 = vmatprep.subr.mxu0 0.0
    %1975 = vmatpush1.msra.mxu0 0.0
    %1976 = vmatprep.subr.mxu0 0.0
    %1977 = vmatpush1.msra.mxu0 0.0
    %1978 = vmatprep.subr.mxu0 0.0
    %1979 = vmatpush1.msra.mxu0 0.0
    %1980 = vmatprep.subr.mxu0 0.0
    %1981 = vmatpush1.msra.mxu0 0.0
    %1982 = vmatprep.subr.mxu0 0.0
    %1983 = vmatpush1.msra.mxu0 0.0
    %1984 = vmatprep.subr.mxu0 0.0
    %1985 = vmatpush1.msra.mxu0 0.0
    %1986 = vmatprep.subr.mxu0 0.0
    %1987 = vmatpush1.msra.mxu0 0.0
    %1988 = vmatprep.subr.mxu0 0.0
    %1989 = vmatpush1.msra.mxu0 0.0
    %1990 = vmatprep.subr.mxu0 0.0
    %1991 = vmatpush1.msra.mxu0 0.0
    %1992 = vmatprep.mubr.f32.mxu0 0.0
    %1993 = vmatmul.mubr.f32.gmra.mrb[0].mxu0 %v1926
    %v1994 = vpop.f32.mrb[0].mxu0
    %v1995 = vadd.f32 %v258, %v1994
    %v1996 = vpop.f32.mrb[0].mxu0
    %1997 = vdwg.mxu0
    %v1998 = vtanh.pop %v1995
    %v2000 = vsel %vm93, %v1998, 0
    %2002 = vmatprep.subr.mxu0 0.0
    %2003 = vmatpush1.msra.mxu0 %v84
    %2004 = vmatprep.subr.mxu0 0.0
    %2005 = vmatpush1.msra.mxu0 %v85
    %2006 = vmatprep.subr.mxu0 0.0
    %2007 = vmatpush1.msra.mxu0 %v86
    %2008 = vmatprep.subr.mxu0 0.0
    %2009 = vmatpush1.msra.mxu0 %v87
    %2010 = vmatprep.subr.mxu0 0.0
    %2011 = vmatpush1.msra.mxu0 0.0
    %2012 = vmatprep.subr.mxu0 0.0
    %2013 = vmatpush1.msra.mxu0 0.0
    %2014 = vmatprep.subr.mxu0 0.0
    %2015 = vmatpush1.msra.mxu0 0.0
    %2016 = vmatprep.subr.mxu0 0.0
    %2017 = vmatpush1.msra.mxu0 0.0
    %2018 = vmatprep.subr.mxu0 0.0
    %2019 = vmatpush1.msra.mxu0 0.0
    %2020 = vmatprep.subr.mxu0 0.0
    %2021 = vmatpush1.msra.mxu0 0.0
    %2022 = vmatprep.subr.mxu0 0.0
    %2023 = vmatpush1.msra.mxu0 0.0
    %2024 = vmatprep.subr.mxu0 0.0
    %2025 = vmatpush1.msra.mxu0 0.0
    %2026 = vmatprep.subr.mxu0 0.0
    %2027 = vmatpush1.msra.mxu0 0.0
    %2028 = vmatprep.subr.mxu0 0.0
    %2029 = vmatpush1.msra.mxu0 0.0
    %2030 = vmatprep.subr.mxu0 0.0
    %2031 = vmatpush1.msra.mxu0 0.0
    %2032 = vmatprep.subr.mxu0 0.0
    %2033 = vmatpush1.msra.mxu0 0.0
    %2034 = vmatprep.subr.mxu0 0.0
    %2035 = vmatpush1.msra.mxu0 0.0
    %2036 = vmatprep.subr.mxu0 0.0
    %2037 = vmatpush1.msra.mxu0 0.0
    %2038 = vmatprep.subr.mxu0 0.0
    %2039 = vmatpush1.msra.mxu0 0.0
    %2040 = vmatprep.subr.mxu0 0.0
    %2041 = vmatpush1.msra.mxu0 0.0
    %2042 = vmatprep.subr.mxu0 0.0
    %2043 = vmatpush1.msra.mxu0 0.0
    %2044 = vmatprep.subr.mxu0 0.0
    %2045 = vmatpush1.msra.mxu0 0.0
    %2046 = vmatprep.subr.mxu0 0.0
    %2047 = vmatpush1.msra.mxu0 0.0
    %2048 = vmatprep.subr.mxu0 0.0
    %2049 = vmatpush1.msra.mxu0 0.0
    %2050 = vmatprep.subr.mxu0 0.0
    %2051 = vmatpush1.msra.mxu0 0.0
    %2052 = vmatprep.subr.mxu0 0.0
    %2053 = vmatpush1.msra.mxu0 0.0
    %2054 = vmatprep.subr.mxu0 0.0
    %2055 = vmatpush1.msra.mxu0 0.0
    %2056 = vmatprep.subr.mxu0 0.0
    %2057 = vmatpush1.msra.mxu0 0.0
    %2058 = vmatprep.subr.mxu0 0.0
    %2059 = vmatpush1.msra.mxu0 0.0
    %2060 = vmatprep.subr.mxu0 0.0
    %2061 = vmatpush1.msra.mxu0 0.0
    %2062 = vmatprep.subr.mxu0 0.0
    %2063 = vmatpush1.msra.mxu0 0.0
    %2064 = vmatprep.subr.mxu0 0.0
    %2065 = vmatpush1.msra.mxu0 0.0
    %2066 = vmatprep.mubr.f32.mxu0 0.0
    %2067 = vmatmul.mubr.f32.gmra.mrb[0].mxu0 %v2000
    %v2068 = vpop.f32.mrb[0].mxu0
    %v2069 = vadd.f32 %v337, %v2068
    %v2070 = vpop.f32.mrb[0].mxu0
    %2071 = vdwg.mxu0
    %v2072 = vadd.f32 %v1767, %v1917
    %v2073 = vmul.f32 %v2072, 3.0
    %v2074 = vadd.f32 %v1618, %v2073
    %v2075 = vmul.f32 %v2074, 0.017857144
    %v2076 = vadd.f32 %v1473, %v2075
    %v2077 = vmul.f32 %v2069, 0.017857144
    %v2078 = vadd.f32 %v2076, %v2077
    %v2080 = vsel %vm259, %v2078, 0
    %2082 = vmatprep.subr.mxu0 0.0
    %2083 = vmatpush1.msra.mxu0 %v82
    %2084 = vmatprep.subr.mxu0 0.0
    %2085 = vmatpush1.msra.mxu0 %v83
    %2086 = vmatprep.subr.mxu0 0.0
    %2087 = vmatpush1.msra.mxu0 0.0
    %2088 = vmatprep.subr.mxu0 0.0
    %2089 = vmatpush1.msra.mxu0 0.0
    %2090 = vmatprep.subr.mxu0 0.0
    %2091 = vmatpush1.msra.mxu0 0.0
    %2092 = vmatprep.subr.mxu0 0.0
    %2093 = vmatpush1.msra.mxu0 0.0
    %2094 = vmatprep.subr.mxu0 0.0
    %2095 = vmatpush1.msra.mxu0 0.0
    %2096 = vmatprep.subr.mxu0 0.0
    %2097 = vmatpush1.msra.mxu0 0.0
    %2098 = vmatprep.subr.mxu0 0.0
    %2099 = vmatpush1.msra.mxu0 0.0
    %2100 = vmatprep.subr.mxu0 0.0
    %2101 = vmatpush1.msra.mxu0 0.0
    %2102 = vmatprep.subr.mxu0 0.0
    %2103 = vmatpush1.msra.mxu0 0.0
    %2104 = vmatprep.subr.mxu0 0.0
    %2105 = vmatpush1.msra.mxu0 0.0
    %2106 = vmatprep.subr.mxu0 0.0
    %2107 = vmatpush1.msra.mxu0 0.0
    %2108 = vmatprep.subr.mxu0 0.0
    %2109 = vmatpush1.msra.mxu0 0.0
    %2110 = vmatprep.subr.mxu0 0.0
    %2111 = vmatpush1.msra.mxu0 0.0
    %2112 = vmatprep.subr.mxu0 0.0
    %2113 = vmatpush1.msra.mxu0 0.0
    %2114 = vmatprep.subr.mxu0 0.0
    %2115 = vmatpush1.msra.mxu0 0.0
    %2116 = vmatprep.subr.mxu0 0.0
    %2117 = vmatpush1.msra.mxu0 0.0
    %2118 = vmatprep.subr.mxu0 0.0
    %2119 = vmatpush1.msra.mxu0 0.0
    %2120 = vmatprep.subr.mxu0 0.0
    %2121 = vmatpush1.msra.mxu0 0.0
    %2122 = vmatprep.subr.mxu0 0.0
    %2123 = vmatpush1.msra.mxu0 0.0
    %2124 = vmatprep.subr.mxu0 0.0
    %2125 = vmatpush1.msra.mxu0 0.0
    %2126 = vmatprep.subr.mxu0 0.0
    %2127 = vmatpush1.msra.mxu0 0.0
    %2128 = vmatprep.subr.mxu0 0.0
    %2129 = vmatpush1.msra.mxu0 0.0
    %2130 = vmatprep.subr.mxu0 0.0
    %2131 = vmatpush1.msra.mxu0 0.0
    %2132 = vmatprep.subr.mxu0 0.0
    %2133 = vmatpush1.msra.mxu0 0.0
    %2134 = vmatprep.subr.mxu0 0.0
    %2135 = vmatpush1.msra.mxu0 0.0
    %2136 = vmatprep.subr.mxu0 0.0
    %2137 = vmatpush1.msra.mxu0 0.0
    %2138 = vmatprep.subr.mxu0 0.0
    %2139 = vmatpush1.msra.mxu0 0.0
    %2140 = vmatprep.subr.mxu0 0.0
    %2141 = vmatpush1.msra.mxu0 0.0
    %2142 = vmatprep.subr.mxu0 0.0
    %2143 = vmatpush1.msra.mxu0 0.0
    %2144 = vmatprep.subr.mxu0 0.0
    %2145 = vmatpush1.msra.mxu0 0.0
    %2146 = vmatprep.mubr.f32.mxu0 0.0
    %2147 = vmatmul.mubr.f32.gmra.mrb[0].mxu0 %v2080
    %v2148 = vpop.f32.mrb[0].mxu0
    %v2149 = vadd.f32 %v258, %v2148
    %v2150 = vpop.f32.mrb[0].mxu0
    %2151 = vdwg.mxu0
    %v2152 = vtanh.pop %v2149
    %v2154 = vsel %vm93, %v2152, 0
    %2156 = vmatprep.subr.mxu0 0.0
    %2157 = vmatpush1.msra.mxu0 %v84
    %2158 = vmatprep.subr.mxu0 0.0
    %2159 = vmatpush1.msra.mxu0 %v85
    %2160 = vmatprep.subr.mxu0 0.0
    %2161 = vmatpush1.msra.mxu0 %v86
    %2162 = vmatprep.subr.mxu0 0.0
    %2163 = vmatpush1.msra.mxu0 %v87
    %2164 = vmatprep.subr.mxu0 0.0
    %2165 = vmatpush1.msra.mxu0 0.0
    %2166 = vmatprep.subr.mxu0 0.0
    %2167 = vmatpush1.msra.mxu0 0.0
    %2168 = vmatprep.subr.mxu0 0.0
    %2169 = vmatpush1.msra.mxu0 0.0
    %2170 = vmatprep.subr.mxu0 0.0
    %2171 = vmatpush1.msra.mxu0 0.0
    %2172 = vmatprep.subr.mxu0 0.0
    %2173 = vmatpush1.msra.mxu0 0.0
    %2174 = vmatprep.subr.mxu0 0.0
    %2175 = vmatpush1.msra.mxu0 0.0
    %2176 = vmatprep.subr.mxu0 0.0
    %2177 = vmatpush1.msra.mxu0 0.0
    %2178 = vmatprep.subr.mxu0 0.0
    %2179 = vmatpush1.msra.mxu0 0.0
    %2180 = vmatprep.subr.mxu0 0.0
    %2181 = vmatpush1.msra.mxu0 0.0
    %2182 = vmatprep.subr.mxu0 0.0
    %2183 = vmatpush1.msra.mxu0 0.0
    %2184 = vmatprep.subr.mxu0 0.0
    %2185 = vmatpush1.msra.mxu0 0.0
    %2186 = vmatprep.subr.mxu0 0.0
    %2187 = vmatpush1.msra.mxu0 0.0
    %2188 = vmatprep.subr.mxu0 0.0
    %2189 = vmatpush1.msra.mxu0 0.0
    %2190 = vmatprep.subr.mxu0 0.0
    %2191 = vmatpush1.msra.mxu0 0.0
    %2192 = vmatprep.subr.mxu0 0.0
    %2193 = vmatpush1.msra.mxu0 0.0
    %2194 = vmatprep.subr.mxu0 0.0
    %2195 = vmatpush1.msra.mxu0 0.0
    %2196 = vmatprep.subr.mxu0 0.0
    %2197 = vmatpush1.msra.mxu0 0.0
    %2198 = vmatprep.subr.mxu0 0.0
    %2199 = vmatpush1.msra.mxu0 0.0
    %2200 = vmatprep.subr.mxu0 0.0
    %2201 = vmatpush1.msra.mxu0 0.0
    %2202 = vmatprep.subr.mxu0 0.0
    %2203 = vmatpush1.msra.mxu0 0.0
    %2204 = vmatprep.subr.mxu0 0.0
    %2205 = vmatpush1.msra.mxu0 0.0
    %2206 = vmatprep.subr.mxu0 0.0
    %2207 = vmatpush1.msra.mxu0 0.0
    %2208 = vmatprep.subr.mxu0 0.0
    %2209 = vmatpush1.msra.mxu0 0.0
    %2210 = vmatprep.subr.mxu0 0.0
    %2211 = vmatpush1.msra.mxu0 0.0
    %2212 = vmatprep.subr.mxu0 0.0
    %2213 = vmatpush1.msra.mxu0 0.0
    %2214 = vmatprep.subr.mxu0 0.0
    %2215 = vmatpush1.msra.mxu0 0.0
    %2216 = vmatprep.subr.mxu0 0.0
    %2217 = vmatpush1.msra.mxu0 0.0
    %2218 = vmatprep.subr.mxu0 0.0
    %2219 = vmatpush1.msra.mxu0 0.0
    %2220 = vmatprep.mubr.f32.mxu0 0.0
    %2221 = vmatmul.mubr.f32.gmra.mrb[0].mxu0 %v2154
    %v2222 = vpop.f32.mrb[0].mxu0
    %v2223 = vadd.f32 %v337, %v2222
    %v2224 = vpop.f32.mrb[0].mxu0
    %2225 = vdwg.mxu0
    %v2226 = vmul.f32 %v2223, 0.04761905
    %v2227 = vadd.f32 %v2078, %v2226
    %v2229 = vsel %vm259, %v2227, 0
    %2231 = vmatprep.subr.mxu0 0.0
    %2232 = vmatpush1.msra.mxu0 %v82
    %2233 = vmatprep.subr.mxu0 0.0
    %2234 = vmatpush1.msra.mxu0 %v83
    %2235 = vmatprep.subr.mxu0 0.0
    %2236 = vmatpush1.msra.mxu0 0.0
    %2237 = vmatprep.subr.mxu0 0.0
    %2238 = vmatpush1.msra.mxu0 0.0
    %2239 = vmatprep.subr.mxu0 0.0
    %2240 = vmatpush1.msra.mxu0 0.0
    %2241 = vmatprep.subr.mxu0 0.0
    %2242 = vmatpush1.msra.mxu0 0.0
    %2243 = vmatprep.subr.mxu0 0.0
    %2244 = vmatpush1.msra.mxu0 0.0
    %2245 = vmatprep.subr.mxu0 0.0
    %2246 = vmatpush1.msra.mxu0 0.0
    %2247 = vmatprep.subr.mxu0 0.0
    %2248 = vmatpush1.msra.mxu0 0.0
    %2249 = vmatprep.subr.mxu0 0.0
    %2250 = vmatpush1.msra.mxu0 0.0
    %2251 = vmatprep.subr.mxu0 0.0
    %2252 = vmatpush1.msra.mxu0 0.0
    %2253 = vmatprep.subr.mxu0 0.0
    %2254 = vmatpush1.msra.mxu0 0.0
    %2255 = vmatprep.subr.mxu0 0.0
    %2256 = vmatpush1.msra.mxu0 0.0
    %2257 = vmatprep.subr.mxu0 0.0
    %2258 = vmatpush1.msra.mxu0 0.0
    %2259 = vmatprep.subr.mxu0 0.0
    %2260 = vmatpush1.msra.mxu0 0.0
    %2261 = vmatprep.subr.mxu0 0.0
    %2262 = vmatpush1.msra.mxu0 0.0
    %2263 = vmatprep.subr.mxu0 0.0
    %2264 = vmatpush1.msra.mxu0 0.0
    %2265 = vmatprep.subr.mxu0 0.0
    %2266 = vmatpush1.msra.mxu0 0.0
    %2267 = vmatprep.subr.mxu0 0.0
    %2268 = vmatpush1.msra.mxu0 0.0
    %2269 = vmatprep.subr.mxu0 0.0
    %2270 = vmatpush1.msra.mxu0 0.0
    %2271 = vmatprep.subr.mxu0 0.0
    %2272 = vmatpush1.msra.mxu0 0.0
    %2273 = vmatprep.subr.mxu0 0.0
    %2274 = vmatpush1.msra.mxu0 0.0
    %2275 = vmatprep.subr.mxu0 0.0
    %2276 = vmatpush1.msra.mxu0 0.0
    %2277 = vmatprep.subr.mxu0 0.0
    %2278 = vmatpush1.msra.mxu0 0.0
    %2279 = vmatprep.subr.mxu0 0.0
    %2280 = vmatpush1.msra.mxu0 0.0
    %2281 = vmatprep.subr.mxu0 0.0
    %2282 = vmatpush1.msra.mxu0 0.0
    %2283 = vmatprep.subr.mxu0 0.0
    %2284 = vmatpush1.msra.mxu0 0.0
    %2285 = vmatprep.subr.mxu0 0.0
    %2286 = vmatpush1.msra.mxu0 0.0
    %2287 = vmatprep.subr.mxu0 0.0
    %2288 = vmatpush1.msra.mxu0 0.0
    %2289 = vmatprep.subr.mxu0 0.0
    %2290 = vmatpush1.msra.mxu0 0.0
    %2291 = vmatprep.subr.mxu0 0.0
    %2292 = vmatpush1.msra.mxu0 0.0
    %2293 = vmatprep.subr.mxu0 0.0
    %2294 = vmatpush1.msra.mxu0 0.0
    %2295 = vmatprep.mubr.f32.mxu0 0.0
    %2296 = vmatmul.mubr.f32.gmra.mrb[0].mxu0 %v2229
    %v2297 = vpop.f32.mrb[0].mxu0
    %v2298 = vadd.f32 %v258, %v2297
    %v2299 = vpop.f32.mrb[0].mxu0
    %2300 = vdwg.mxu0
    %v2301 = vtanh.pop %v2298
    %v2303 = vsel %vm93, %v2301, 0
    %2305 = vmatprep.subr.mxu0 0.0
    %2306 = vmatpush1.msra.mxu0 %v84
    %2307 = vmatprep.subr.mxu0 0.0
    %2308 = vmatpush1.msra.mxu0 %v85
    %2309 = vmatprep.subr.mxu0 0.0
    %2310 = vmatpush1.msra.mxu0 %v86
    %2311 = vmatprep.subr.mxu0 0.0
    %2312 = vmatpush1.msra.mxu0 %v87
    %2313 = vmatprep.subr.mxu0 0.0
    %2314 = vmatpush1.msra.mxu0 0.0
    %2315 = vmatprep.subr.mxu0 0.0
    %2316 = vmatpush1.msra.mxu0 0.0
    %2317 = vmatprep.subr.mxu0 0.0
    %2318 = vmatpush1.msra.mxu0 0.0
    %2319 = vmatprep.subr.mxu0 0.0
    %2320 = vmatpush1.msra.mxu0 0.0
    %2321 = vmatprep.subr.mxu0 0.0
    %2322 = vmatpush1.msra.mxu0 0.0
    %2323 = vmatprep.subr.mxu0 0.0
    %2324 = vmatpush1.msra.mxu0 0.0
    %2325 = vmatprep.subr.mxu0 0.0
    %2326 = vmatpush1.msra.mxu0 0.0
    %2327 = vmatprep.subr.mxu0 0.0
    %2328 = vmatpush1.msra.mxu0 0.0
    %2329 = vmatprep.subr.mxu0 0.0
    %2330 = vmatpush1.msra.mxu0 0.0
    %2331 = vmatprep.subr.mxu0 0.0
    %2332 = vmatpush1.msra.mxu0 0.0
    %2333 = vmatprep.subr.mxu0 0.0
    %2334 = vmatpush1.msra.mxu0 0.0
    %2335 = vmatprep.subr.mxu0 0.0
    %2336 = vmatpush1.msra.mxu0 0.0
    %2337 = vmatprep.subr.mxu0 0.0
    %2338 = vmatpush1.msra.mxu0 0.0
    %2339 = vmatprep.subr.mxu0 0.0
    %2340 = vmatpush1.msra.mxu0 0.0
    %2341 = vmatprep.subr.mxu0 0.0
    %2342 = vmatpush1.msra.mxu0 0.0
    %2343 = vmatprep.subr.mxu0 0.0
    %2344 = vmatpush1.msra.mxu0 0.0
    %2345 = vmatprep.subr.mxu0 0.0
    %2346 = vmatpush1.msra.mxu0 0.0
    %2347 = vmatprep.subr.mxu0 0.0
    %2348 = vmatpush1.msra.mxu0 0.0
    %2349 = vmatprep.subr.mxu0 0.0
    %2350 = vmatpush1.msra.mxu0 0.0
    %2351 = vmatprep.subr.mxu0 0.0
    %2352 = vmatpush1.msra.mxu0 0.0
    %2353 = vmatprep.subr.mxu0 0.0
    %2354 = vmatpush1.msra.mxu0 0.0
    %2355 = vmatprep.subr.mxu0 0.0
    %2356 = vmatpush1.msra.mxu0 0.0
    %2357 = vmatprep.subr.mxu0 0.0
    %2358 = vmatpush1.msra.mxu0 0.0
    %2359 = vmatprep.subr.mxu0 0.0
    %2360 = vmatpush1.msra.mxu0 0.0
    %2361 = vmatprep.subr.mxu0 0.0
    %2362 = vmatpush1.msra.mxu0 0.0
    %2363 = vmatprep.subr.mxu0 0.0
    %2364 = vmatpush1.msra.mxu0 0.0
    %2365 = vmatprep.subr.mxu0 0.0
    %2366 = vmatpush1.msra.mxu0 0.0
    %2367 = vmatprep.subr.mxu0 0.0
    %2368 = vmatpush1.msra.mxu0 0.0
    %2369 = vmatprep.mubr.f32.mxu0 0.0
    %2370 = vmatmul.mubr.f32.gmra.mrb[0].mxu0 %v2303
    %v2371 = vpop.f32.mrb[0].mxu0
    %v2372 = vadd.f32 %v337, %v2371
    %v2373 = vpop.f32.mrb[0].mxu0
    %2374 = vdwg.mxu0
    %v2375 = vsub.f32 %v2078, %v2226
    %v2376 = vmul.f32 %v2372, 0.14285715
    %v2377 = vadd.f32 %v2375, %v2376
    %v2379 = vsel %vm259, %v2377, 0
    %2381 = vmatprep.subr.mxu0 0.0
    %2382 = vmatpush1.msra.mxu0 %v82
    %2383 = vmatprep.subr.mxu0 0.0
    %2384 = vmatpush1.msra.mxu0 %v83
    %2385 = vmatprep.subr.mxu0 0.0
    %2386 = vmatpush1.msra.mxu0 0.0
    %2387 = vmatprep.subr.mxu0 0.0
    %2388 = vmatpush1.msra.mxu0 0.0
    %2389 = vmatprep.subr.mxu0 0.0
    %2390 = vmatpush1.msra.mxu0 0.0
    %2391 = vmatprep.subr.mxu0 0.0
    %2392 = vmatpush1.msra.mxu0 0.0
    %2393 = vmatprep.subr.mxu0 0.0
    %2394 = vmatpush1.msra.mxu0 0.0
    %2395 = vmatprep.subr.mxu0 0.0
    %2396 = vmatpush1.msra.mxu0 0.0
    %2397 = vmatprep.subr.mxu0 0.0
    %2398 = vmatpush1.msra.mxu0 0.0
    %2399 = vmatprep.subr.mxu0 0.0
    %2400 = vmatpush1.msra.mxu0 0.0
    %2401 = vmatprep.subr.mxu0 0.0
    %2402 = vmatpush1.msra.mxu0 0.0
    %2403 = vmatprep.subr.mxu0 0.0
    %2404 = vmatpush1.msra.mxu0 0.0
    %2405 = vmatprep.subr.mxu0 0.0
    %2406 = vmatpush1.msra.mxu0 0.0
    %2407 = vmatprep.subr.mxu0 0.0
    %2408 = vmatpush1.msra.mxu0 0.0
    %2409 = vmatprep.subr.mxu0 0.0
    %2410 = vmatpush1.msra.mxu0 0.0
    %2411 = vmatprep.subr.mxu0 0.0
    %2412 = vmatpush1.msra.mxu0 0.0
    %2413 = vmatprep.subr.mxu0 0.0
    %2414 = vmatpush1.msra.mxu0 0.0
    %2415 = vmatprep.subr.mxu0 0.0
    %2416 = vmatpush1.msra.mxu0 0.0
    %2417 = vmatprep.subr.mxu0 0.0
    %2418 = vmatpush1.msra.mxu0 0.0
    %2419 = vmatprep.subr.mxu0 0.0
    %2420 = vmatpush1.msra.mxu0 0.0
    %2421 = vmatprep.subr.mxu0 0.0
    %2422 = vmatpush1.msra.mxu0 0.0
    %2423 = vmatprep.subr.mxu0 0.0
    %2424 = vmatpush1.msra.mxu0 0.0
    %2425 = vmatprep.subr.mxu0 0.0
    %2426 = vmatpush1.msra.mxu0 0.0
    %2427 = vmatprep.subr.mxu0 0.0
    %2428 = vmatpush1.msra.mxu0 0.0
    %2429 = vmatprep.subr.mxu0 0.0
    %2430 = vmatpush1.msra.mxu0 0.0
    %2431 = vmatprep.subr.mxu0 0.0
    %2432 = vmatpush1.msra.mxu0 0.0
    %2433 = vmatprep.subr.mxu0 0.0
    %2434 = vmatpush1.msra.mxu0 0.0
    %2435 = vmatprep.subr.mxu0 0.0
    %2436 = vmatpush1.msra.mxu0 0.0
    %2437 = vmatprep.subr.mxu0 0.0
    %2438 = vmatpush1.msra.mxu0 0.0
    %2439 = vmatprep.subr.mxu0 0.0
    %2440 = vmatpush1.msra.mxu0 0.0
    %2441 = vmatprep.subr.mxu0 0.0
    %2442 = vmatpush1.msra.mxu0 0.0
    %2443 = vmatprep.subr.mxu0 0.0
    %2444 = vmatpush1.msra.mxu0 0.0
    %2445 = vmatprep.mubr.f32.mxu0 0.0
    %2446 = vmatmul.mubr.f32.gmra.mrb[0].mxu0 %v2379
    %v2447 = vpop.f32.mrb[0].mxu0
    %v2448 = vadd.f32 %v258, %v2447
    %v2449 = vpop.f32.mrb[0].mxu0
    %2450 = vdwg.mxu0
    %v2451 = vtanh.pop %v2448
    %v2453 = vsel %vm93, %v2451, 0
    %2455 = vmatprep.subr.mxu0 0.0
    %2456 = vmatpush1.msra.mxu0 %v84
    %2457 = vmatprep.subr.mxu0 0.0
    %2458 = vmatpush1.msra.mxu0 %v85
    %2459 = vmatprep.subr.mxu0 0.0
    %2460 = vmatpush1.msra.mxu0 %v86
    %2461 = vmatprep.subr.mxu0 0.0
    %2462 = vmatpush1.msra.mxu0 %v87
    %2463 = vmatprep.subr.mxu0 0.0
    %2464 = vmatpush1.msra.mxu0 0.0
    %2465 = vmatprep.subr.mxu0 0.0
    %2466 = vmatpush1.msra.mxu0 0.0
    %2467 = vmatprep.subr.mxu0 0.0
    %2468 = vmatpush1.msra.mxu0 0.0
    %2469 = vmatprep.subr.mxu0 0.0
    %2470 = vmatpush1.msra.mxu0 0.0
    %2471 = vmatprep.subr.mxu0 0.0
    %2472 = vmatpush1.msra.mxu0 0.0
    %2473 = vmatprep.subr.mxu0 0.0
    %2474 = vmatpush1.msra.mxu0 0.0
    %2475 = vmatprep.subr.mxu0 0.0
    %2476 = vmatpush1.msra.mxu0 0.0
    %2477 = vmatprep.subr.mxu0 0.0
    %2478 = vmatpush1.msra.mxu0 0.0
    %2479 = vmatprep.subr.mxu0 0.0
    %2480 = vmatpush1.msra.mxu0 0.0
    %2481 = vmatprep.subr.mxu0 0.0
    %2482 = vmatpush1.msra.mxu0 0.0
    %2483 = vmatprep.subr.mxu0 0.0
    %2484 = vmatpush1.msra.mxu0 0.0
    %2485 = vmatprep.subr.mxu0 0.0
    %2486 = vmatpush1.msra.mxu0 0.0
    %2487 = vmatprep.subr.mxu0 0.0
    %2488 = vmatpush1.msra.mxu0 0.0
    %2489 = vmatprep.subr.mxu0 0.0
    %2490 = vmatpush1.msra.mxu0 0.0
    %2491 = vmatprep.subr.mxu0 0.0
    %2492 = vmatpush1.msra.mxu0 0.0
    %2493 = vmatprep.subr.mxu0 0.0
    %2494 = vmatpush1.msra.mxu0 0.0
    %2495 = vmatprep.subr.mxu0 0.0
    %2496 = vmatpush1.msra.mxu0 0.0
    %2497 = vmatprep.subr.mxu0 0.0
    %2498 = vmatpush1.msra.mxu0 0.0
    %2499 = vmatprep.subr.mxu0 0.0
    %2500 = vmatpush1.msra.mxu0 0.0
    %2501 = vmatprep.subr.mxu0 0.0
    %2502 = vmatpush1.msra.mxu0 0.0
    %2503 = vmatprep.subr.mxu0 0.0
    %2504 = vmatpush1.msra.mxu0 0.0
    %2505 = vmatprep.subr.mxu0 0.0
    %2506 = vmatpush1.msra.mxu0 0.0
    %2507 = vmatprep.subr.mxu0 0.0
    %2508 = vmatpush1.msra.mxu0 0.0
    %2509 = vmatprep.subr.mxu0 0.0
    %2510 = vmatpush1.msra.mxu0 0.0
    %2511 = vmatprep.subr.mxu0 0.0
    %2512 = vmatpush1.msra.mxu0 0.0
    %2513 = vmatprep.subr.mxu0 0.0
    %2514 = vmatpush1.msra.mxu0 0.0
    %2515 = vmatprep.subr.mxu0 0.0
    %2516 = vmatpush1.msra.mxu0 0.0
    %2517 = vmatprep.subr.mxu0 0.0
    %2518 = vmatpush1.msra.mxu0 0.0
    %2519 = vmatprep.mubr.f32.mxu0 0.0
    %2520 = vmatmul.mubr.f32.gmra.mrb[0].mxu0 %v2453
    %v2521 = vpop.f32.mrb[0].mxu0
    %v2522 = vadd.f32 %v337, %v2521
    %v2523 = vpop.f32.mrb[0].mxu0
    %2524 = vdwg.mxu0
    %v2525 = vsub.f32 %v2223, %v2372
    %v2526 = vmul.f32 %v2525, 0.14285715
    %v2527 = vadd.f32 %v2078, %v2526
    %v2528 = vmul.f32 %v2522, 0.14285715
    %v2529 = vadd.f32 %v2527, %v2528
    %v2531 = vsel %vm259, %v2529, 0
    %2533 = vmatprep.subr.mxu0 0.0
    %2534 = vmatpush1.msra.mxu0 %v82
    %2535 = vmatprep.subr.mxu0 0.0
    %2536 = vmatpush1.msra.mxu0 %v83
    %2537 = vmatprep.subr.mxu0 0.0
    %2538 = vmatpush1.msra.mxu0 0.0
    %2539 = vmatprep.subr.mxu0 0.0
    %2540 = vmatpush1.msra.mxu0 0.0
    %2541 = vmatprep.subr.mxu0 0.0
    %2542 = vmatpush1.msra.mxu0 0.0
    %2543 = vmatprep.subr.mxu0 0.0
    %2544 = vmatpush1.msra.mxu0 0.0
    %2545 = vmatprep.subr.mxu0 0.0
    %2546 = vmatpush1.msra.mxu0 0.0
    %2547 = vmatprep.subr.mxu0 0.0
    %2548 = vmatpush1.msra.mxu0 0.0
    %2549 = vmatprep.subr.mxu0 0.0
    %2550 = vmatpush1.msra.mxu0 0.0
    %2551 = vmatprep.subr.mxu0 0.0
    %2552 = vmatpush1.msra.mxu0 0.0
    %2553 = vmatprep.subr.mxu0 0.0
    %2554 = vmatpush1.msra.mxu0 0.0
    %2555 = vmatprep.subr.mxu0 0.0
    %2556 = vmatpush1.msra.mxu0 0.0
    %2557 = vmatprep.subr.mxu0 0.0
    %2558 = vmatpush1.msra.mxu0 0.0
    %2559 = vmatprep.subr.mxu0 0.0
    %2560 = vmatpush1.msra.mxu0 0.0
    %2561 = vmatprep.subr.mxu0 0.0
    %2562 = vmatpush1.msra.mxu0 0.0
    %2563 = vmatprep.subr.mxu0 0.0
    %2564 = vmatpush1.msra.mxu0 0.0
    %2565 = vmatprep.subr.mxu0 0.0
    %2566 = vmatpush1.msra.mxu0 0.0
    %2567 = vmatprep.subr.mxu0 0.0
    %2568 = vmatpush1.msra.mxu0 0.0
    %2569 = vmatprep.subr.mxu0 0.0
    %2570 = vmatpush1.msra.mxu0 0.0
    %2571 = vmatprep.subr.mxu0 0.0
    %2572 = vmatpush1.msra.mxu0 0.0
    %2573 = vmatprep.subr.mxu0 0.0
    %2574 = vmatpush1.msra.mxu0 0.0
    %2575 = vmatprep.subr.mxu0 0.0
    %2576 = vmatpush1.msra.mxu0 0.0
    %2577 = vmatprep.subr.mxu0 0.0
    %2578 = vmatpush1.msra.mxu0 0.0
    %2579 = vmatprep.subr.mxu0 0.0
    %2580 = vmatpush1.msra.mxu0 0.0
    %2581 = vmatprep.subr.mxu0 0.0
    %2582 = vmatpush1.msra.mxu0 0.0
    %2583 = vmatprep.subr.mxu0 0.0
    %2584 = vmatpush1.msra.mxu0 0.0
    %2585 = vmatprep.subr.mxu0 0.0
    %2586 = vmatpush1.msra.mxu0 0.0
    %2587 = vmatprep.subr.mxu0 0.0
    %2588 = vmatpush1.msra.mxu0 0.0
    %2589 = vmatprep.subr.mxu0 0.0
    %2590 = vmatpush1.msra.mxu0 0.0
    %2591 = vmatprep.subr.mxu0 0.0
    %2592 = vmatpush1.msra.mxu0 0.0
    %2593 = vmatprep.subr.mxu0 0.0
    %2594 = vmatpush1.msra.mxu0 0.0
    %2595 = vmatprep.subr.mxu0 0.0
    %2596 = vmatpush1.msra.mxu0 0.0
    %2597 = vmatprep.mubr.f32.mxu0 0.0
    %2598 = vmatmul.mubr.f32.gmra.mrb[0].mxu0 %v2531
    %v2599 = vpop.f32.mrb[0].mxu0
    %v2600 = vadd.f32 %v258, %v2599
    %v2601 = vpop.f32.mrb[0].mxu0
    %2602 = vdwg.mxu0
    %v2603 = vtanh.pop %v2600
    %v2605 = vsel %vm93, %v2603, 0
    %2607 = vmatprep.subr.mxu0 0.0
    %2608 = vmatpush1.msra.mxu0 %v84
    %2609 = vmatprep.subr.mxu0 0.0
    %2610 = vmatpush1.msra.mxu0 %v85
    %2611 = vmatprep.subr.mxu0 0.0
    %2612 = vmatpush1.msra.mxu0 %v86
    %2613 = vmatprep.subr.mxu0 0.0
    %2614 = vmatpush1.msra.mxu0 %v87
    %2615 = vmatprep.subr.mxu0 0.0
    %2616 = vmatpush1.msra.mxu0 0.0
    %2617 = vmatprep.subr.mxu0 0.0
    %2618 = vmatpush1.msra.mxu0 0.0
    %2619 = vmatprep.subr.mxu0 0.0
    %2620 = vmatpush1.msra.mxu0 0.0
    %2621 = vmatprep.subr.mxu0 0.0
    %2622 = vmatpush1.msra.mxu0 0.0
    %2623 = vmatprep.subr.mxu0 0.0
    %2624 = vmatpush1.msra.mxu0 0.0
    %2625 = vmatprep.subr.mxu0 0.0
    %2626 = vmatpush1.msra.mxu0 0.0
    %2627 = vmatprep.subr.mxu0 0.0
    %2628 = vmatpush1.msra.mxu0 0.0
    %2629 = vmatprep.subr.mxu0 0.0
    %2630 = vmatpush1.msra.mxu0 0.0
    %2631 = vmatprep.subr.mxu0 0.0
    %2632 = vmatpush1.msra.mxu0 0.0
    %2633 = vmatprep.subr.mxu0 0.0
    %2634 = vmatpush1.msra.mxu0 0.0
    %2635 = vmatprep.subr.mxu0 0.0
    %2636 = vmatpush1.msra.mxu0 0.0
    %2637 = vmatprep.subr.mxu0 0.0
    %2638 = vmatpush1.msra.mxu0 0.0
    %2639 = vmatprep.subr.mxu0 0.0
    %2640 = vmatpush1.msra.mxu0 0.0
    %2641 = vmatprep.subr.mxu0 0.0
    %2642 = vmatpush1.msra.mxu0 0.0
    %2643 = vmatprep.subr.mxu0 0.0
    %2644 = vmatpush1.msra.mxu0 0.0
    %2645 = vmatprep.subr.mxu0 0.0
    %2646 = vmatpush1.msra.mxu0 0.0
    %2647 = vmatprep.subr.mxu0 0.0
    %2648 = vmatpush1.msra.mxu0 0.0
    %2649 = vmatprep.subr.mxu0 0.0
    %2650 = vmatpush1.msra.mxu0 0.0
    %2651 = vmatprep.subr.mxu0 0.0
    %2652 = vmatpush1.msra.mxu0 0.0
    %2653 = vmatprep.subr.mxu0 0.0
    %2654 = vmatpush1.msra.mxu0 0.0
    %2655 = vmatprep.subr.mxu0 0.0
    %2656 = vmatpush1.msra.mxu0 0.0
    %2657 = vmatprep.subr.mxu0 0.0
    %2658 = vmatpush1.msra.mxu0 0.0
    %2659 = vmatprep.subr.mxu0 0.0
    %2660 = vmatpush1.msra.mxu0 0.0
    %2661 = vmatprep.subr.mxu0 0.0
    %2662 = vmatpush1.msra.mxu0 0.0
    %2663 = vmatprep.subr.mxu0 0.0
    %2664 = vmatpush1.msra.mxu0 0.0
    %2665 = vmatprep.subr.mxu0 0.0
    %2666 = vmatpush1.msra.mxu0 0.0
    %2667 = vmatprep.subr.mxu0 0.0
    %2668 = vmatpush1.msra.mxu0 0.0
    %2669 = vmatprep.subr.mxu0 0.0
    %2670 = vmatpush1.msra.mxu0 0.0
    %2671 = vmatprep.mubr.f32.mxu0 0.0
    %2672 = vmatmul.mubr.f32.gmra.mrb[0].mxu0 %v2605
    %v2673 = vpop.f32.mrb[0].mxu0
    %v2674 = vadd.f32 %v337, %v2673
    %v2675 = vpop.f32.mrb[0].mxu0
    %2676 = vdwg.mxu0
    %v2677 = vadd.f32 %v2372, %v2522
    %v2678 = vmul.f32 %v2677, 3.0
    %v2679 = vadd.f32 %v2223, %v2678
    %v2680 = vmul.f32 %v2679, 0.017857144
    %v2681 = vadd.f32 %v2078, %v2680
    %v2682 = vmul.f32 %v2674, 0.017857144
    %v2683 = vadd.f32 %v2681, %v2682
    %v2685 = vsel %vm259, %v2683, 0
    %2687 = vmatprep.subr.mxu0 0.0
    %2688 = vmatpush1.msra.mxu0 %v82
    %2689 = vmatprep.subr.mxu0 0.0
    %2690 = vmatpush1.msra.mxu0 %v83
    %2691 = vmatprep.subr.mxu0 0.0
    %2692 = vmatpush1.msra.mxu0 0.0
    %2693 = vmatprep.subr.mxu0 0.0
    %2694 = vmatpush1.msra.mxu0 0.0
    %2695 = vmatprep.subr.mxu0 0.0
    %2696 = vmatpush1.msra.mxu0 0.0
    %2697 = vmatprep.subr.mxu0 0.0
    %2698 = vmatpush1.msra.mxu0 0.0
    %2699 = vmatprep.subr.mxu0 0.0
    %2700 = vmatpush1.msra.mxu0 0.0
    %2701 = vmatprep.subr.mxu0 0.0
    %2702 = vmatpush1.msra.mxu0 0.0
    %2703 = vmatprep.subr.mxu0 0.0
    %2704 = vmatpush1.msra.mxu0 0.0
    %2705 = vmatprep.subr.mxu0 0.0
    %2706 = vmatpush1.msra.mxu0 0.0
    %2707 = vmatprep.subr.mxu0 0.0
    %2708 = vmatpush1.msra.mxu0 0.0
    %2709 = vmatprep.subr.mxu0 0.0
    %2710 = vmatpush1.msra.mxu0 0.0
    %2711 = vmatprep.subr.mxu0 0.0
    %2712 = vmatpush1.msra.mxu0 0.0
    %2713 = vmatprep.subr.mxu0 0.0
    %2714 = vmatpush1.msra.mxu0 0.0
    %2715 = vmatprep.subr.mxu0 0.0
    %2716 = vmatpush1.msra.mxu0 0.0
    %2717 = vmatprep.subr.mxu0 0.0
    %2718 = vmatpush1.msra.mxu0 0.0
    %2719 = vmatprep.subr.mxu0 0.0
    %2720 = vmatpush1.msra.mxu0 0.0
    %2721 = vmatprep.subr.mxu0 0.0
    %2722 = vmatpush1.msra.mxu0 0.0
    %2723 = vmatprep.subr.mxu0 0.0
    %2724 = vmatpush1.msra.mxu0 0.0
    %2725 = vmatprep.subr.mxu0 0.0
    %2726 = vmatpush1.msra.mxu0 0.0
    %2727 = vmatprep.subr.mxu0 0.0
    %2728 = vmatpush1.msra.mxu0 0.0
    %2729 = vmatprep.subr.mxu0 0.0
    %2730 = vmatpush1.msra.mxu0 0.0
    %2731 = vmatprep.subr.mxu0 0.0
    %2732 = vmatpush1.msra.mxu0 0.0
    %2733 = vmatprep.subr.mxu0 0.0
    %2734 = vmatpush1.msra.mxu0 0.0
    %2735 = vmatprep.subr.mxu0 0.0
    %2736 = vmatpush1.msra.mxu0 0.0
    %2737 = vmatprep.subr.mxu0 0.0
    %2738 = vmatpush1.msra.mxu0 0.0
    %2739 = vmatprep.subr.mxu0 0.0
    %2740 = vmatpush1.msra.mxu0 0.0
    %2741 = vmatprep.subr.mxu0 0.0
    %2742 = vmatpush1.msra.mxu0 0.0
    %2743 = vmatprep.subr.mxu0 0.0
    %2744 = vmatpush1.msra.mxu0 0.0
    %2745 = vmatprep.subr.mxu0 0.0
    %2746 = vmatpush1.msra.mxu0 0.0
    %2747 = vmatprep.subr.mxu0 0.0
    %2748 = vmatpush1.msra.mxu0 0.0
    %2749 = vmatprep.subr.mxu0 0.0
    %2750 = vmatpush1.msra.mxu0 0.0
    %2751 = vmatprep.mubr.f32.mxu0 0.0
    %2752 = vmatmul.mubr.f32.gmra.mrb[0].mxu0 %v2685
    %v2753 = vpop.f32.mrb[0].mxu0
    %v2754 = vadd.f32 %v258, %v2753
    %v2755 = vpop.f32.mrb[0].mxu0
    %2756 = vdwg.mxu0
    %v2757 = vtanh.pop %v2754
    %v2759 = vsel %vm93, %v2757, 0
    %2761 = vmatprep.subr.mxu0 0.0
    %2762 = vmatpush1.msra.mxu0 %v84
    %2763 = vmatprep.subr.mxu0 0.0
    %2764 = vmatpush1.msra.mxu0 %v85
    %2765 = vmatprep.subr.mxu0 0.0
    %2766 = vmatpush1.msra.mxu0 %v86
    %2767 = vmatprep.subr.mxu0 0.0
    %2768 = vmatpush1.msra.mxu0 %v87
    %2769 = vmatprep.subr.mxu0 0.0
    %2770 = vmatpush1.msra.mxu0 0.0
    %2771 = vmatprep.subr.mxu0 0.0
    %2772 = vmatpush1.msra.mxu0 0.0
    %2773 = vmatprep.subr.mxu0 0.0
    %2774 = vmatpush1.msra.mxu0 0.0
    %2775 = vmatprep.subr.mxu0 0.0
    %2776 = vmatpush1.msra.mxu0 0.0
    %2777 = vmatprep.subr.mxu0 0.0
    %2778 = vmatpush1.msra.mxu0 0.0
    %2779 = vmatprep.subr.mxu0 0.0
    %2780 = vmatpush1.msra.mxu0 0.0
    %2781 = vmatprep.subr.mxu0 0.0
    %2782 = vmatpush1.msra.mxu0 0.0
    %2783 = vmatprep.subr.mxu0 0.0
    %2784 = vmatpush1.msra.mxu0 0.0
    %2785 = vmatprep.subr.mxu0 0.0
    %2786 = vmatpush1.msra.mxu0 0.0
    %2787 = vmatprep.subr.mxu0 0.0
    %2788 = vmatpush1.msra.mxu0 0.0
    %2789 = vmatprep.subr.mxu0 0.0
    %2790 = vmatpush1.msra.mxu0 0.0
    %2791 = vmatprep.subr.mxu0 0.0
    %2792 = vmatpush1.msra.mxu0 0.0
    %2793 = vmatprep.subr.mxu0 0.0
    %2794 = vmatpush1.msra.mxu0 0.0
    %2795 = vmatprep.subr.mxu0 0.0
    %2796 = vmatpush1.msra.mxu0 0.0
    %2797 = vmatprep.subr.mxu0 0.0
    %2798 = vmatpush1.msra.mxu0 0.0
    %2799 = vmatprep.subr.mxu0 0.0
    %2800 = vmatpush1.msra.mxu0 0.0
    %2801 = vmatprep.subr.mxu0 0.0
    %2802 = vmatpush1.msra.mxu0 0.0
    %2803 = vmatprep.subr.mxu0 0.0
    %2804 = vmatpush1.msra.mxu0 0.0
    %2805 = vmatprep.subr.mxu0 0.0
    %2806 = vmatpush1.msra.mxu0 0.0
    %2807 = vmatprep.subr.mxu0 0.0
    %2808 = vmatpush1.msra.mxu0 0.0
    %2809 = vmatprep.subr.mxu0 0.0
    %2810 = vmatpush1.msra.mxu0 0.0
    %2811 = vmatprep.subr.mxu0 0.0
    %2812 = vmatpush1.msra.mxu0 0.0
    %2813 = vmatprep.subr.mxu0 0.0
    %2814 = vmatpush1.msra.mxu0 0.0
    %2815 = vmatprep.subr.mxu0 0.0
    %2816 = vmatpush1.msra.mxu0 0.0
    %2817 = vmatprep.subr.mxu0 0.0
    %2818 = vmatpush1.msra.mxu0 0.0
    %2819 = vmatprep.subr.mxu0 0.0
    %2820 = vmatpush1.msra.mxu0 0.0
    %2821 = vmatprep.subr.mxu0 0.0
    %2822 = vmatpush1.msra.mxu0 0.0
    %2823 = vmatprep.subr.mxu0 0.0
    %2824 = vmatpush1.msra.mxu0 0.0
    %2825 = vmatprep.mubr.f32.mxu0 0.0
    %2826 = vmatmul.mubr.f32.gmra.mrb[0].mxu0 %v2759
    %v2827 = vpop.f32.mrb[0].mxu0
    %v2828 = vadd.f32 %v337, %v2827
    %v2829 = vpop.f32.mrb[0].mxu0
    %2830 = vdwg.mxu0
    %v2831 = vmul.f32 %v2828, 0.04761905
    %v2832 = vadd.f32 %v2683, %v2831
    %v2834 = vsel %vm259, %v2832, 0
    %2836 = vmatprep.subr.mxu0 0.0
    %2837 = vmatpush1.msra.mxu0 %v82
    %2838 = vmatprep.subr.mxu0 0.0
    %2839 = vmatpush1.msra.mxu0 %v83
    %2840 = vmatprep.subr.mxu0 0.0
    %2841 = vmatpush1.msra.mxu0 0.0
    %2842 = vmatprep.subr.mxu0 0.0
    %2843 = vmatpush1.msra.mxu0 0.0
    %2844 = vmatprep.subr.mxu0 0.0
    %2845 = vmatpush1.msra.mxu0 0.0
    %2846 = vmatprep.subr.mxu0 0.0
    %2847 = vmatpush1.msra.mxu0 0.0
    %2848 = vmatprep.subr.mxu0 0.0
    %2849 = vmatpush1.msra.mxu0 0.0
    %2850 = vmatprep.subr.mxu0 0.0
    %2851 = vmatpush1.msra.mxu0 0.0
    %2852 = vmatprep.subr.mxu0 0.0
    %2853 = vmatpush1.msra.mxu0 0.0
    %2854 = vmatprep.subr.mxu0 0.0
    %2855 = vmatpush1.msra.mxu0 0.0
    %2856 = vmatprep.subr.mxu0 0.0
    %2857 = vmatpush1.msra.mxu0 0.0
    %2858 = vmatprep.subr.mxu0 0.0
    %2859 = vmatpush1.msra.mxu0 0.0
    %2860 = vmatprep.subr.mxu0 0.0
    %2861 = vmatpush1.msra.mxu0 0.0
    %2862 = vmatprep.subr.mxu0 0.0
    %2863 = vmatpush1.msra.mxu0 0.0
    %2864 = vmatprep.subr.mxu0 0.0
    %2865 = vmatpush1.msra.mxu0 0.0
    %2866 = vmatprep.subr.mxu0 0.0
    %2867 = vmatpush1.msra.mxu0 0.0
    %2868 = vmatprep.subr.mxu0 0.0
    %2869 = vmatpush1.msra.mxu0 0.0
    %2870 = vmatprep.subr.mxu0 0.0
    %2871 = vmatpush1.msra.mxu0 0.0
    %2872 = vmatprep.subr.mxu0 0.0
    %2873 = vmatpush1.msra.mxu0 0.0
    %2874 = vmatprep.subr.mxu0 0.0
    %2875 = vmatpush1.msra.mxu0 0.0
    %2876 = vmatprep.subr.mxu0 0.0
    %2877 = vmatpush1.msra.mxu0 0.0
    %2878 = vmatprep.subr.mxu0 0.0
    %2879 = vmatpush1.msra.mxu0 0.0
    %2880 = vmatprep.subr.mxu0 0.0
    %2881 = vmatpush1.msra.mxu0 0.0
    %2882 = vmatprep.subr.mxu0 0.0
    %2883 = vmatpush1.msra.mxu0 0.0
    %2884 = vmatprep.subr.mxu0 0.0
    %2885 = vmatpush1.msra.mxu0 0.0
    %2886 = vmatprep.subr.mxu0 0.0
    %2887 = vmatpush1.msra.mxu0 0.0
    %2888 = vmatprep.subr.mxu0 0.0
    %2889 = vmatpush1.msra.mxu0 0.0
    %2890 = vmatprep.subr.mxu0 0.0
    %2891 = vmatpush1.msra.mxu0 0.0
    %2892 = vmatprep.subr.mxu0 0.0
    %2893 = vmatpush1.msra.mxu0 0.0
    %2894 = vmatprep.subr.mxu0 0.0
    %2895 = vmatpush1.msra.mxu0 0.0
    %2896 = vmatprep.subr.mxu0 0.0
    %2897 = vmatpush1.msra.mxu0 0.0
    %2898 = vmatprep.subr.mxu0 0.0
    %2899 = vmatpush1.msra.mxu0 0.0
    %2900 = vmatprep.mubr.f32.mxu0 0.0
    %2901 = vmatmul.mubr.f32.gmra.mrb[0].mxu0 %v2834
    %v2902 = vpop.f32.mrb[0].mxu0
    %v2903 = vadd.f32 %v258, %v2902
    %v2904 = vpop.f32.mrb[0].mxu0
    %2905 = vdwg.mxu0
    %v2906 = vtanh.pop %v2903
    %v2908 = vsel %vm93, %v2906, 0
    %2910 = vmatprep.subr.mxu0 0.0
    %2911 = vmatpush1.msra.mxu0 %v84
    %2912 = vmatprep.subr.mxu0 0.0
    %2913 = vmatpush1.msra.mxu0 %v85
    %2914 = vmatprep.subr.mxu0 0.0
    %2915 = vmatpush1.msra.mxu0 %v86
    %2916 = vmatprep.subr.mxu0 0.0
    %2917 = vmatpush1.msra.mxu0 %v87
    %2918 = vmatprep.subr.mxu0 0.0
    %2919 = vmatpush1.msra.mxu0 0.0
    %2920 = vmatprep.subr.mxu0 0.0
    %2921 = vmatpush1.msra.mxu0 0.0
    %2922 = vmatprep.subr.mxu0 0.0
    %2923 = vmatpush1.msra.mxu0 0.0
    %2924 = vmatprep.subr.mxu0 0.0
    %2925 = vmatpush1.msra.mxu0 0.0
    %2926 = vmatprep.subr.mxu0 0.0
    %2927 = vmatpush1.msra.mxu0 0.0
    %2928 = vmatprep.subr.mxu0 0.0
    %2929 = vmatpush1.msra.mxu0 0.0
    %2930 = vmatprep.subr.mxu0 0.0
    %2931 = vmatpush1.msra.mxu0 0.0
    %2932 = vmatprep.subr.mxu0 0.0
    %2933 = vmatpush1.msra.mxu0 0.0
    %2934 = vmatprep.subr.mxu0 0.0
    %2935 = vmatpush1.msra.mxu0 0.0
    %2936 = vmatprep.subr.mxu0 0.0
    %2937 = vmatpush1.msra.mxu0 0.0
    %2938 = vmatprep.subr.mxu0 0.0
    %2939 = vmatpush1.msra.mxu0 0.0
    %2940 = vmatprep.subr.mxu0 0.0
    %2941 = vmatpush1.msra.mxu0 0.0
    %2942 = vmatprep.subr.mxu0 0.0
    %2943 = vmatpush1.msra.mxu0 0.0
    %2944 = vmatprep.subr.mxu0 0.0
    %2945 = vmatpush1.msra.mxu0 0.0
    %2946 = vmatprep.subr.mxu0 0.0
    %2947 = vmatpush1.msra.mxu0 0.0
    %2948 = vmatprep.subr.mxu0 0.0
    %2949 = vmatpush1.msra.mxu0 0.0
    %2950 = vmatprep.subr.mxu0 0.0
    %2951 = vmatpush1.msra.mxu0 0.0
    %2952 = vmatprep.subr.mxu0 0.0
    %2953 = vmatpush1.msra.mxu0 0.0
    %2954 = vmatprep.subr.mxu0 0.0
    %2955 = vmatpush1.msra.mxu0 0.0
    %2956 = vmatprep.subr.mxu0 0.0
    %2957 = vmatpush1.msra.mxu0 0.0
    %2958 = vmatprep.subr.mxu0 0.0
    %2959 = vmatpush1.msra.mxu0 0.0
    %2960 = vmatprep.subr.mxu0 0.0
    %2961 = vmatpush1.msra.mxu0 0.0
    %2962 = vmatprep.subr.mxu0 0.0
    %2963 = vmatpush1.msra.mxu0 0.0
    %2964 = vmatprep.subr.mxu0 0.0
    %2965 = vmatpush1.msra.mxu0 0.0
    %2966 = vmatprep.subr.mxu0 0.0
    %2967 = vmatpush1.msra.mxu0 0.0
    %2968 = vmatprep.subr.mxu0 0.0
    %2969 = vmatpush1.msra.mxu0 0.0
    %2970 = vmatprep.subr.mxu0 0.0
    %2971 = vmatpush1.msra.mxu0 0.0
    %2972 = vmatprep.subr.mxu0 0.0
    %2973 = vmatpush1.msra.mxu0 0.0
    %2974 = vmatprep.mubr.f32.mxu0 0.0
    %2975 = vmatmul.mubr.f32.gmra.mrb[0].mxu0 %v2908
    %v2976 = vpop.f32.mrb[0].mxu0
    %v2977 = vadd.f32 %v337, %v2976
    %v2978 = vpop.f32.mrb[0].mxu0
    %2979 = vdwg.mxu0
    %v2980 = vsub.f32 %v2683, %v2831
    %v2981 = vmul.f32 %v2977, 0.14285715
    %v2982 = vadd.f32 %v2980, %v2981
    %v2984 = vsel %vm259, %v2982, 0
    %2986 = vmatprep.subr.mxu0 0.0
    %2987 = vmatpush1.msra.mxu0 %v82
    %2988 = vmatprep.subr.mxu0 0.0
    %2989 = vmatpush1.msra.mxu0 %v83
    %2990 = vmatprep.subr.mxu0 0.0
    %2991 = vmatpush1.msra.mxu0 0.0
    %2992 = vmatprep.subr.mxu0 0.0
    %2993 = vmatpush1.msra.mxu0 0.0
    %2994 = vmatprep.subr.mxu0 0.0
    %2995 = vmatpush1.msra.mxu0 0.0
    %2996 = vmatprep.subr.mxu0 0.0
    %2997 = vmatpush1.msra.mxu0 0.0
    %2998 = vmatprep.subr.mxu0 0.0
    %2999 = vmatpush1.msra.mxu0 0.0
    %3000 = vmatprep.subr.mxu0 0.0
    %3001 = vmatpush1.msra.mxu0 0.0
    %3002 = vmatprep.subr.mxu0 0.0
    %3003 = vmatpush1.msra.mxu0 0.0
    %3004 = vmatprep.subr.mxu0 0.0
    %3005 = vmatpush1.msra.mxu0 0.0
    %3006 = vmatprep.subr.mxu0 0.0
    %3007 = vmatpush1.msra.mxu0 0.0
    %3008 = vmatprep.subr.mxu0 0.0
    %3009 = vmatpush1.msra.mxu0 0.0
    %3010 = vmatprep.subr.mxu0 0.0
    %3011 = vmatpush1.msra.mxu0 0.0
    %3012 = vmatprep.subr.mxu0 0.0
    %3013 = vmatpush1.msra.mxu0 0.0
    %3014 = vmatprep.subr.mxu0 0.0
    %3015 = vmatpush1.msra.mxu0 0.0
    %3016 = vmatprep.subr.mxu0 0.0
    %3017 = vmatpush1.msra.mxu0 0.0
    %3018 = vmatprep.subr.mxu0 0.0
    %3019 = vmatpush1.msra.mxu0 0.0
    %3020 = vmatprep.subr.mxu0 0.0
    %3021 = vmatpush1.msra.mxu0 0.0
    %3022 = vmatprep.subr.mxu0 0.0
    %3023 = vmatpush1.msra.mxu0 0.0
    %3024 = vmatprep.subr.mxu0 0.0
    %3025 = vmatpush1.msra.mxu0 0.0
    %3026 = vmatprep.subr.mxu0 0.0
    %3027 = vmatpush1.msra.mxu0 0.0
    %3028 = vmatprep.subr.mxu0 0.0
    %3029 = vmatpush1.msra.mxu0 0.0
    %3030 = vmatprep.subr.mxu0 0.0
    %3031 = vmatpush1.msra.mxu0 0.0
    %3032 = vmatprep.subr.mxu0 0.0
    %3033 = vmatpush1.msra.mxu0 0.0
    %3034 = vmatprep.subr.mxu0 0.0
    %3035 = vmatpush1.msra.mxu0 0.0
    %3036 = vmatprep.subr.mxu0 0.0
    %3037 = vmatpush1.msra.mxu0 0.0
    %3038 = vmatprep.subr.mxu0 0.0
    %3039 = vmatpush1.msra.mxu0 0.0
    %3040 = vmatprep.subr.mxu0 0.0
    %3041 = vmatpush1.msra.mxu0 0.0
    %3042 = vmatprep.subr.mxu0 0.0
    %3043 = vmatpush1.msra.mxu0 0.0
    %3044 = vmatprep.subr.mxu0 0.0
    %3045 = vmatpush1.msra.mxu0 0.0
    %3046 = vmatprep.subr.mxu0 0.0
    %3047 = vmatpush1.msra.mxu0 0.0
    %3048 = vmatprep.subr.mxu0 0.0
    %3049 = vmatpush1.msra.mxu0 0.0
    %3050 = vmatprep.mubr.f32.mxu0 0.0
    %3051 = vmatmul.mubr.f32.gmra.mrb[0].mxu0 %v2984
    %v3052 = vpop.f32.mrb[0].mxu0
    %v3053 = vadd.f32 %v258, %v3052
    %v3054 = vpop.f32.mrb[0].mxu0
    %3055 = vdwg.mxu0
    %v3056 = vtanh.pop %v3053
    %v3058 = vsel %vm93, %v3056, 0
    %3060 = vmatprep.subr.mxu0 0.0
    %3061 = vmatpush1.msra.mxu0 %v84
    %3062 = vmatprep.subr.mxu0 0.0
    %3063 = vmatpush1.msra.mxu0 %v85
    %3064 = vmatprep.subr.mxu0 0.0
    %3065 = vmatpush1.msra.mxu0 %v86
    %3066 = vmatprep.subr.mxu0 0.0
    %3067 = vmatpush1.msra.mxu0 %v87
    %3068 = vmatprep.subr.mxu0 0.0
    %3069 = vmatpush1.msra.mxu0 0.0
    %3070 = vmatprep.subr.mxu0 0.0
    %3071 = vmatpush1.msra.mxu0 0.0
    %3072 = vmatprep.subr.mxu0 0.0
    %3073 = vmatpush1.msra.mxu0 0.0
    %3074 = vmatprep.subr.mxu0 0.0
    %3075 = vmatpush1.msra.mxu0 0.0
    %3076 = vmatprep.subr.mxu0 0.0
    %3077 = vmatpush1.msra.mxu0 0.0
    %3078 = vmatprep.subr.mxu0 0.0
    %3079 = vmatpush1.msra.mxu0 0.0
    %3080 = vmatprep.subr.mxu0 0.0
    %3081 = vmatpush1.msra.mxu0 0.0
    %3082 = vmatprep.subr.mxu0 0.0
    %3083 = vmatpush1.msra.mxu0 0.0
    %3084 = vmatprep.subr.mxu0 0.0
    %3085 = vmatpush1.msra.mxu0 0.0
    %3086 = vmatprep.subr.mxu0 0.0
    %3087 = vmatpush1.msra.mxu0 0.0
    %3088 = vmatprep.subr.mxu0 0.0
    %3089 = vmatpush1.msra.mxu0 0.0
    %3090 = vmatprep.subr.mxu0 0.0
    %3091 = vmatpush1.msra.mxu0 0.0
    %3092 = vmatprep.subr.mxu0 0.0
    %3093 = vmatpush1.msra.mxu0 0.0
    %3094 = vmatprep.subr.mxu0 0.0
    %3095 = vmatpush1.msra.mxu0 0.0
    %3096 = vmatprep.subr.mxu0 0.0
    %3097 = vmatpush1.msra.mxu0 0.0
    %3098 = vmatprep.subr.mxu0 0.0
    %3099 = vmatpush1.msra.mxu0 0.0
    %3100 = vmatprep.subr.mxu0 0.0
    %3101 = vmatpush1.msra.mxu0 0.0
    %3102 = vmatprep.subr.mxu0 0.0
    %3103 = vmatpush1.msra.mxu0 0.0
    %3104 = vmatprep.subr.mxu0 0.0
    %3105 = vmatpush1.msra.mxu0 0.0
    %3106 = vmatprep.subr.mxu0 0.0
    %3107 = vmatpush1.msra.mxu0 0.0
    %3108 = vmatprep.subr.mxu0 0.0
    %3109 = vmatpush1.msra.mxu0 0.0
    %3110 = vmatprep.subr.mxu0 0.0
    %3111 = vmatpush1.msra.mxu0 0.0
    %3112 = vmatprep.subr.mxu0 0.0
    %3113 = vmatpush1.msra.mxu0 0.0
    %3114 = vmatprep.subr.mxu0 0.0
    %3115 = vmatpush1.msra.mxu0 0.0
    %3116 = vmatprep.subr.mxu0 0.0
    %3117 = vmatpush1.msra.mxu0 0.0
    %3118 = vmatprep.subr.mxu0 0.0
    %3119 = vmatpush1.msra.mxu0 0.0
    %3120 = vmatprep.subr.mxu0 0.0
    %3121 = vmatpush1.msra.mxu0 0.0
    %3122 = vmatprep.subr.mxu0 0.0
    %3123 = vmatpush1.msra.mxu0 0.0
    %3124 = vmatprep.mubr.f32.mxu0 0.0
    %3125 = vmatmul.mubr.f32.gmra.mrb[0].mxu0 %v3058
    %v3126 = vpop.f32.mrb[0].mxu0
    %v3127 = vadd.f32 %v337, %v3126
    %v3128 = vpop.f32.mrb[0].mxu0
    %3129 = vdwg.mxu0
    %v3130 = vsub.f32 %v2828, %v2977
    %v3131 = vmul.f32 %v3130, 0.14285715
    %v3132 = vadd.f32 %v2683, %v3131
    %v3133 = vmul.f32 %v3127, 0.14285715
    %v3134 = vadd.f32 %v3132, %v3133
    %v3136 = vsel %vm259, %v3134, 0
    %3138 = vmatprep.subr.mxu0 0.0
    %3139 = vmatpush1.msra.mxu0 %v82
    %3140 = vmatprep.subr.mxu0 0.0
    %3141 = vmatpush1.msra.mxu0 %v83
    %3142 = vmatprep.subr.mxu0 0.0
    %3143 = vmatpush1.msra.mxu0 0.0
    %3144 = vmatprep.subr.mxu0 0.0
    %3145 = vmatpush1.msra.mxu0 0.0
    %3146 = vmatprep.subr.mxu0 0.0
    %3147 = vmatpush1.msra.mxu0 0.0
    %3148 = vmatprep.subr.mxu0 0.0
    %3149 = vmatpush1.msra.mxu0 0.0
    %3150 = vmatprep.subr.mxu0 0.0
    %3151 = vmatpush1.msra.mxu0 0.0
    %3152 = vmatprep.subr.mxu0 0.0
    %3153 = vmatpush1.msra.mxu0 0.0
    %3154 = vmatprep.subr.mxu0 0.0
    %3155 = vmatpush1.msra.mxu0 0.0
    %3156 = vmatprep.subr.mxu0 0.0
    %3157 = vmatpush1.msra.mxu0 0.0
    %3158 = vmatprep.subr.mxu0 0.0
    %3159 = vmatpush1.msra.mxu0 0.0
    %3160 = vmatprep.subr.mxu0 0.0
    %3161 = vmatpush1.msra.mxu0 0.0
    %3162 = vmatprep.subr.mxu0 0.0
    %3163 = vmatpush1.msra.mxu0 0.0
    %3164 = vmatprep.subr.mxu0 0.0
    %3165 = vmatpush1.msra.mxu0 0.0
    %3166 = vmatprep.subr.mxu0 0.0
    %3167 = vmatpush1.msra.mxu0 0.0
    %3168 = vmatprep.subr.mxu0 0.0
    %3169 = vmatpush1.msra.mxu0 0.0
    %3170 = vmatprep.subr.mxu0 0.0
    %3171 = vmatpush1.msra.mxu0 0.0
    %3172 = vmatprep.subr.mxu0 0.0
    %3173 = vmatpush1.msra.mxu0 0.0
    %3174 = vmatprep.subr.mxu0 0.0
    %3175 = vmatpush1.msra.mxu0 0.0
    %3176 = vmatprep.subr.mxu0 0.0
    %3177 = vmatpush1.msra.mxu0 0.0
    %3178 = vmatprep.subr.mxu0 0.0
    %3179 = vmatpush1.msra.mxu0 0.0
    %3180 = vmatprep.subr.mxu0 0.0
    %3181 = vmatpush1.msra.mxu0 0.0
    %3182 = vmatprep.subr.mxu0 0.0
    %3183 = vmatpush1.msra.mxu0 0.0
    %3184 = vmatprep.subr.mxu0 0.0
    %3185 = vmatpush1.msra.mxu0 0.0
    %3186 = vmatprep.subr.mxu0 0.0
    %3187 = vmatpush1.msra.mxu0 0.0
    %3188 = vmatprep.subr.mxu0 0.0
    %3189 = vmatpush1.msra.mxu0 0.0
    %3190 = vmatprep.subr.mxu0 0.0
    %3191 = vmatpush1.msra.mxu0 0.0
    %3192 = vmatprep.subr.mxu0 0.0
    %3193 = vmatpush1.msra.mxu0 0.0
    %3194 = vmatprep.subr.mxu0 0.0
    %3195 = vmatpush1.msra.mxu0 0.0
    %3196 = vmatprep.subr.mxu0 0.0
    %3197 = vmatpush1.msra.mxu0 0.0
    %3198 = vmatprep.subr.mxu0 0.0
    %3199 = vmatpush1.msra.mxu0 0.0
    %3200 = vmatprep.subr.mxu0 0.0
    %3201 = vmatpush1.msra.mxu0 0.0
    %3202 = vmatprep.mubr.f32.mxu0 0.0
    %3203 = vmatmul.mubr.f32.gmra.mrb[0].mxu0 %v3136
    %v3204 = vpop.f32.mrb[0].mxu0
    %v3205 = vadd.f32 %v258, %v3204
    %v3206 = vpop.f32.mrb[0].mxu0
    %3207 = vdwg.mxu0
    %v3208 = vtanh.pop %v3205
    %v3210 = vsel %vm93, %v3208, 0
    %3212 = vmatprep.subr.mxu0 0.0
    %3213 = vmatpush1.msra.mxu0 %v84
    %3214 = vmatprep.subr.mxu0 0.0
    %3215 = vmatpush1.msra.mxu0 %v85
    %3216 = vmatprep.subr.mxu0 0.0
    %3217 = vmatpush1.msra.mxu0 %v86
    %3218 = vmatprep.subr.mxu0 0.0
    %3219 = vmatpush1.msra.mxu0 %v87
    %3220 = vmatprep.subr.mxu0 0.0
    %3221 = vmatpush1.msra.mxu0 0.0
    %3222 = vmatprep.subr.mxu0 0.0
    %3223 = vmatpush1.msra.mxu0 0.0
    %3224 = vmatprep.subr.mxu0 0.0
    %3225 = vmatpush1.msra.mxu0 0.0
    %3226 = vmatprep.subr.mxu0 0.0
    %3227 = vmatpush1.msra.mxu0 0.0
    %3228 = vmatprep.subr.mxu0 0.0
    %3229 = vmatpush1.msra.mxu0 0.0
    %3230 = vmatprep.subr.mxu0 0.0
    %3231 = vmatpush1.msra.mxu0 0.0
    %3232 = vmatprep.subr.mxu0 0.0
    %3233 = vmatpush1.msra.mxu0 0.0
    %3234 = vmatprep.subr.mxu0 0.0
    %3235 = vmatpush1.msra.mxu0 0.0
    %3236 = vmatprep.subr.mxu0 0.0
    %3237 = vmatpush1.msra.mxu0 0.0
    %3238 = vmatprep.subr.mxu0 0.0
    %3239 = vmatpush1.msra.mxu0 0.0
    %3240 = vmatprep.subr.mxu0 0.0
    %3241 = vmatpush1.msra.mxu0 0.0
    %3242 = vmatprep.subr.mxu0 0.0
    %3243 = vmatpush1.msra.mxu0 0.0
    %3244 = vmatprep.subr.mxu0 0.0
    %3245 = vmatpush1.msra.mxu0 0.0
    %3246 = vmatprep.subr.mxu0 0.0
    %3247 = vmatpush1.msra.mxu0 0.0
    %3248 = vmatprep.subr.mxu0 0.0
    %3249 = vmatpush1.msra.mxu0 0.0
    %3250 = vmatprep.subr.mxu0 0.0
    %3251 = vmatpush1.msra.mxu0 0.0
    %3252 = vmatprep.subr.mxu0 0.0
    %3253 = vmatpush1.msra.mxu0 0.0
    %3254 = vmatprep.subr.mxu0 0.0
    %3255 = vmatpush1.msra.mxu0 0.0
    %3256 = vmatprep.subr.mxu0 0.0
    %3257 = vmatpush1.msra.mxu0 0.0
    %3258 = vmatprep.subr.mxu0 0.0
    %3259 = vmatpush1.msra.mxu0 0.0
    %3260 = vmatprep.subr.mxu0 0.0
    %3261 = vmatpush1.msra.mxu0 0.0
    %3262 = vmatprep.subr.mxu0 0.0
    %3263 = vmatpush1.msra.mxu0 0.0
    %3264 = vmatprep.subr.mxu0 0.0
    %3265 = vmatpush1.msra.mxu0 0.0
    %3266 = vmatprep.subr.mxu0 0.0
    %3267 = vmatpush1.msra.mxu0 0.0
    %3268 = vmatprep.subr.mxu0 0.0
    %3269 = vmatpush1.msra.mxu0 0.0
    %3270 = vmatprep.subr.mxu0 0.0
    %3271 = vmatpush1.msra.mxu0 0.0
    %3272 = vmatprep.subr.mxu0 0.0
    %3273 = vmatpush1.msra.mxu0 0.0
    %3274 = vmatprep.subr.mxu0 0.0
    %3275 = vmatpush1.msra.mxu0 0.0
    %3276 = vmatprep.mubr.f32.mxu0 0.0
    %3277 = vmatmul.mubr.f32.gmra.mrb[0].mxu0 %v3210
    %v3278 = vpop.f32.mrb[0].mxu0
    %v3279 = vadd.f32 %v337, %v3278
    %v3280 = vpop.f32.mrb[0].mxu0
    %3281 = vdwg.mxu0
    %v3282 = vadd.f32 %v2977, %v3127
    %v3283 = vmul.f32 %v3282, 3.0
    %v3284 = vadd.f32 %v2828, %v3283
    %v3285 = vmul.f32 %v3284, 0.017857144
    %v3286 = vadd.f32 %v2683, %v3285
    %v3287 = vmul.f32 %v3279, 0.017857144
    %v3288 = vadd.f32 %v3286, %v3287
    %v3290 = vsel %vm259, %v3288, 0
    %3292 = vmatprep.subr.mxu0 0.0
    %3293 = vmatpush1.msra.mxu0 %v82
    %3294 = vmatprep.subr.mxu0 0.0
    %3295 = vmatpush1.msra.mxu0 %v83
    %3296 = vmatprep.subr.mxu0 0.0
    %3297 = vmatpush1.msra.mxu0 0.0
    %3298 = vmatprep.subr.mxu0 0.0
    %3299 = vmatpush1.msra.mxu0 0.0
    %3300 = vmatprep.subr.mxu0 0.0
    %3301 = vmatpush1.msra.mxu0 0.0
    %3302 = vmatprep.subr.mxu0 0.0
    %3303 = vmatpush1.msra.mxu0 0.0
    %3304 = vmatprep.subr.mxu0 0.0
    %3305 = vmatpush1.msra.mxu0 0.0
    %3306 = vmatprep.subr.mxu0 0.0
    %3307 = vmatpush1.msra.mxu0 0.0
    %3308 = vmatprep.subr.mxu0 0.0
    %3309 = vmatpush1.msra.mxu0 0.0
    %3310 = vmatprep.subr.mxu0 0.0
    %3311 = vmatpush1.msra.mxu0 0.0
    %3312 = vmatprep.subr.mxu0 0.0
    %3313 = vmatpush1.msra.mxu0 0.0
    %3314 = vmatprep.subr.mxu0 0.0
    %3315 = vmatpush1.msra.mxu0 0.0
    %3316 = vmatprep.subr.mxu0 0.0
    %3317 = vmatpush1.msra.mxu0 0.0
    %3318 = vmatprep.subr.mxu0 0.0
    %3319 = vmatpush1.msra.mxu0 0.0
    %3320 = vmatprep.subr.mxu0 0.0
    %3321 = vmatpush1.msra.mxu0 0.0
    %3322 = vmatprep.subr.mxu0 0.0
    %3323 = vmatpush1.msra.mxu0 0.0
    %3324 = vmatprep.subr.mxu0 0.0
    %3325 = vmatpush1.msra.mxu0 0.0
    %3326 = vmatprep.subr.mxu0 0.0
    %3327 = vmatpush1.msra.mxu0 0.0
    %3328 = vmatprep.subr.mxu0 0.0
    %3329 = vmatpush1.msra.mxu0 0.0
    %3330 = vmatprep.subr.mxu0 0.0
    %3331 = vmatpush1.msra.mxu0 0.0
    %3332 = vmatprep.subr.mxu0 0.0
    %3333 = vmatpush1.msra.mxu0 0.0
    %3334 = vmatprep.subr.mxu0 0.0
    %3335 = vmatpush1.msra.mxu0 0.0
    %3336 = vmatprep.subr.mxu0 0.0
    %3337 = vmatpush1.msra.mxu0 0.0
    %3338 = vmatprep.subr.mxu0 0.0
    %3339 = vmatpush1.msra.mxu0 0.0
    %3340 = vmatprep.subr.mxu0 0.0
    %3341 = vmatpush1.msra.mxu0 0.0
    %3342 = vmatprep.subr.mxu0 0.0
    %3343 = vmatpush1.msra.mxu0 0.0
    %3344 = vmatprep.subr.mxu0 0.0
    %3345 = vmatpush1.msra.mxu0 0.0
    %3346 = vmatprep.subr.mxu0 0.0
    %3347 = vmatpush1.msra.mxu0 0.0
    %3348 = vmatprep.subr.mxu0 0.0
    %3349 = vmatpush1.msra.mxu0 0.0
    %3350 = vmatprep.subr.mxu0 0.0
    %3351 = vmatpush1.msra.mxu0 0.0
    %3352 = vmatprep.subr.mxu0 0.0
    %3353 = vmatpush1.msra.mxu0 0.0
    %3354 = vmatprep.subr.mxu0 0.0
    %3355 = vmatpush1.msra.mxu0 0.0
    %3356 = vmatprep.mubr.f32.mxu0 0.0
    %3357 = vmatmul.mubr.f32.gmra.mrb[0].mxu0 %v3290
    %v3358 = vpop.f32.mrb[0].mxu0
    %v3359 = vadd.f32 %v258, %v3358
    %v3360 = vpop.f32.mrb[0].mxu0
    %3361 = vdwg.mxu0
    %v3362 = vtanh.pop %v3359
    %v3364 = vsel %vm93, %v3362, 0
    %3366 = vmatprep.subr.mxu0 0.0
    %3367 = vmatpush1.msra.mxu0 %v84
    %3368 = vmatprep.subr.mxu0 0.0
    %3369 = vmatpush1.msra.mxu0 %v85
    %3370 = vmatprep.subr.mxu0 0.0
    %3371 = vmatpush1.msra.mxu0 %v86
    %3372 = vmatprep.subr.mxu0 0.0
    %3373 = vmatpush1.msra.mxu0 %v87
    %3374 = vmatprep.subr.mxu0 0.0
    %3375 = vmatpush1.msra.mxu0 0.0
    %3376 = vmatprep.subr.mxu0 0.0
    %3377 = vmatpush1.msra.mxu0 0.0
    %3378 = vmatprep.subr.mxu0 0.0
    %3379 = vmatpush1.msra.mxu0 0.0
    %3380 = vmatprep.subr.mxu0 0.0
    %3381 = vmatpush1.msra.mxu0 0.0
    %3382 = vmatprep.subr.mxu0 0.0
    %3383 = vmatpush1.msra.mxu0 0.0
    %3384 = vmatprep.subr.mxu0 0.0
    %3385 = vmatpush1.msra.mxu0 0.0
    %3386 = vmatprep.subr.mxu0 0.0
    %3387 = vmatpush1.msra.mxu0 0.0
    %3388 = vmatprep.subr.mxu0 0.0
    %3389 = vmatpush1.msra.mxu0 0.0
    %3390 = vmatprep.subr.mxu0 0.0
    %3391 = vmatpush1.msra.mxu0 0.0
    %3392 = vmatprep.subr.mxu0 0.0
    %3393 = vmatpush1.msra.mxu0 0.0
    %3394 = vmatprep.subr.mxu0 0.0
    %3395 = vmatpush1.msra.mxu0 0.0
    %3396 = vmatprep.subr.mxu0 0.0
    %3397 = vmatpush1.msra.mxu0 0.0
    %3398 = vmatprep.subr.mxu0 0.0
    %3399 = vmatpush1.msra.mxu0 0.0
    %3400 = vmatprep.subr.mxu0 0.0
    %3401 = vmatpush1.msra.mxu0 0.0
    %3402 = vmatprep.subr.mxu0 0.0
    %3403 = vmatpush1.msra.mxu0 0.0
    %3404 = vmatprep.subr.mxu0 0.0
    %3405 = vmatpush1.msra.mxu0 0.0
    %3406 = vmatprep.subr.mxu0 0.0
    %3407 = vmatpush1.msra.mxu0 0.0
    %3408 = vmatprep.subr.mxu0 0.0
    %3409 = vmatpush1.msra.mxu0 0.0
    %3410 = vmatprep.subr.mxu0 0.0
    %3411 = vmatpush1.msra.mxu0 0.0
    %3412 = vmatprep.subr.mxu0 0.0
    %3413 = vmatpush1.msra.mxu0 0.0
    %3414 = vmatprep.subr.mxu0 0.0
    %3415 = vmatpush1.msra.mxu0 0.0
    %3416 = vmatprep.subr.mxu0 0.0
    %3417 = vmatpush1.msra.mxu0 0.0
    %3418 = vmatprep.subr.mxu0 0.0
    %3419 = vmatpush1.msra.mxu0 0.0
    %3420 = vmatprep.subr.mxu0 0.0
    %3421 = vmatpush1.msra.mxu0 0.0
    %3422 = vmatprep.subr.mxu0 0.0
    %3423 = vmatpush1.msra.mxu0 0.0
    %3424 = vmatprep.subr.mxu0 0.0
    %3425 = vmatpush1.msra.mxu0 0.0
    %3426 = vmatprep.subr.mxu0 0.0
    %3427 = vmatpush1.msra.mxu0 0.0
    %3428 = vmatprep.subr.mxu0 0.0
    %3429 = vmatpush1.msra.mxu0 0.0
    %3430 = vmatprep.mubr.f32.mxu0 0.0
    %3431 = vmatmul.mubr.f32.gmra.mrb[0].mxu0 %v3364
    %v3432 = vpop.f32.mrb[0].mxu0
    %v3433 = vadd.f32 %v337, %v3432
    %v3434 = vpop.f32.mrb[0].mxu0
    %3435 = vdwg.mxu0
    %v3436 = vmul.f32 %v3433, 0.04761905
    %v3437 = vadd.f32 %v3288, %v3436
    %v3439 = vsel %vm259, %v3437, 0
    %3441 = vmatprep.subr.mxu0 0.0
    %3442 = vmatpush1.msra.mxu0 %v82
    %3443 = vmatprep.subr.mxu0 0.0
    %3444 = vmatpush1.msra.mxu0 %v83
    %3445 = vmatprep.subr.mxu0 0.0
    %3446 = vmatpush1.msra.mxu0 0.0
    %3447 = vmatprep.subr.mxu0 0.0
    %3448 = vmatpush1.msra.mxu0 0.0
    %3449 = vmatprep.subr.mxu0 0.0
    %3450 = vmatpush1.msra.mxu0 0.0
    %3451 = vmatprep.subr.mxu0 0.0
    %3452 = vmatpush1.msra.mxu0 0.0
    %3453 = vmatprep.subr.mxu0 0.0
    %3454 = vmatpush1.msra.mxu0 0.0
    %3455 = vmatprep.subr.mxu0 0.0
    %3456 = vmatpush1.msra.mxu0 0.0
    %3457 = vmatprep.subr.mxu0 0.0
    %3458 = vmatpush1.msra.mxu0 0.0
    %3459 = vmatprep.subr.mxu0 0.0
    %3460 = vmatpush1.msra.mxu0 0.0
    %3461 = vmatprep.subr.mxu0 0.0
    %3462 = vmatpush1.msra.mxu0 0.0
    %3463 = vmatprep.subr.mxu0 0.0
    %3464 = vmatpush1.msra.mxu0 0.0
    %3465 = vmatprep.subr.mxu0 0.0
    %3466 = vmatpush1.msra.mxu0 0.0
    %3467 = vmatprep.subr.mxu0 0.0
    %3468 = vmatpush1.msra.mxu0 0.0
    %3469 = vmatprep.subr.mxu0 0.0
    %3470 = vmatpush1.msra.mxu0 0.0
    %3471 = vmatprep.subr.mxu0 0.0
    %3472 = vmatpush1.msra.mxu0 0.0
    %3473 = vmatprep.subr.mxu0 0.0
    %3474 = vmatpush1.msra.mxu0 0.0
    %3475 = vmatprep.subr.mxu0 0.0
    %3476 = vmatpush1.msra.mxu0 0.0
    %3477 = vmatprep.subr.mxu0 0.0
    %3478 = vmatpush1.msra.mxu0 0.0
    %3479 = vmatprep.subr.mxu0 0.0
    %3480 = vmatpush1.msra.mxu0 0.0
    %3481 = vmatprep.subr.mxu0 0.0
    %3482 = vmatpush1.msra.mxu0 0.0
    %3483 = vmatprep.subr.mxu0 0.0
    %3484 = vmatpush1.msra.mxu0 0.0
    %3485 = vmatprep.subr.mxu0 0.0
    %3486 = vmatpush1.msra.mxu0 0.0
    %3487 = vmatprep.subr.mxu0 0.0
    %3488 = vmatpush1.msra.mxu0 0.0
    %3489 = vmatprep.subr.mxu0 0.0
    %3490 = vmatpush1.msra.mxu0 0.0
    %3491 = vmatprep.subr.mxu0 0.0
    %3492 = vmatpush1.msra.mxu0 0.0
    %3493 = vmatprep.subr.mxu0 0.0
    %3494 = vmatpush1.msra.mxu0 0.0
    %3495 = vmatprep.subr.mxu0 0.0
    %3496 = vmatpush1.msra.mxu0 0.0
    %3497 = vmatprep.subr.mxu0 0.0
    %3498 = vmatpush1.msra.mxu0 0.0
    %3499 = vmatprep.subr.mxu0 0.0
    %3500 = vmatpush1.msra.mxu0 0.0
    %3501 = vmatprep.subr.mxu0 0.0
    %3502 = vmatpush1.msra.mxu0 0.0
    %3503 = vmatprep.subr.mxu0 0.0
    %3504 = vmatpush1.msra.mxu0 0.0
    %3505 = vmatprep.mubr.f32.mxu0 0.0
    %3506 = vmatmul.mubr.f32.gmra.mrb[0].mxu0 %v3439
    %v3507 = vpop.f32.mrb[0].mxu0
    %v3508 = vadd.f32 %v258, %v3507
    %v3509 = vpop.f32.mrb[0].mxu0
    %3510 = vdwg.mxu0
    %v3511 = vtanh.pop %v3508
    %v3513 = vsel %vm93, %v3511, 0
    %3515 = vmatprep.subr.mxu0 0.0
    %3516 = vmatpush1.msra.mxu0 %v84
    %3517 = vmatprep.subr.mxu0 0.0
    %3518 = vmatpush1.msra.mxu0 %v85
    %3519 = vmatprep.subr.mxu0 0.0
    %3520 = vmatpush1.msra.mxu0 %v86
    %3521 = vmatprep.subr.mxu0 0.0
    %3522 = vmatpush1.msra.mxu0 %v87
    %3523 = vmatprep.subr.mxu0 0.0
    %3524 = vmatpush1.msra.mxu0 0.0
    %3525 = vmatprep.subr.mxu0 0.0
    %3526 = vmatpush1.msra.mxu0 0.0
    %3527 = vmatprep.subr.mxu0 0.0
    %3528 = vmatpush1.msra.mxu0 0.0
    %3529 = vmatprep.subr.mxu0 0.0
    %3530 = vmatpush1.msra.mxu0 0.0
    %3531 = vmatprep.subr.mxu0 0.0
    %3532 = vmatpush1.msra.mxu0 0.0
    %3533 = vmatprep.subr.mxu0 0.0
    %3534 = vmatpush1.msra.mxu0 0.0
    %3535 = vmatprep.subr.mxu0 0.0
    %3536 = vmatpush1.msra.mxu0 0.0
    %3537 = vmatprep.subr.mxu0 0.0
    %3538 = vmatpush1.msra.mxu0 0.0
    %3539 = vmatprep.subr.mxu0 0.0
    %3540 = vmatpush1.msra.mxu0 0.0
    %3541 = vmatprep.subr.mxu0 0.0
    %3542 = vmatpush1.msra.mxu0 0.0
    %3543 = vmatprep.subr.mxu0 0.0
    %3544 = vmatpush1.msra.mxu0 0.0
    %3545 = vmatprep.subr.mxu0 0.0
    %3546 = vmatpush1.msra.mxu0 0.0
    %3547 = vmatprep.subr.mxu0 0.0
    %3548 = vmatpush1.msra.mxu0 0.0
    %3549 = vmatprep.subr.mxu0 0.0
    %3550 = vmatpush1.msra.mxu0 0.0
    %3551 = vmatprep.subr.mxu0 0.0
    %3552 = vmatpush1.msra.mxu0 0.0
    %3553 = vmatprep.subr.mxu0 0.0
    %3554 = vmatpush1.msra.mxu0 0.0
    %3555 = vmatprep.subr.mxu0 0.0
    %3556 = vmatpush1.msra.mxu0 0.0
    %3557 = vmatprep.subr.mxu0 0.0
    %3558 = vmatpush1.msra.mxu0 0.0
    %3559 = vmatprep.subr.mxu0 0.0
    %3560 = vmatpush1.msra.mxu0 0.0
    %3561 = vmatprep.subr.mxu0 0.0
    %3562 = vmatpush1.msra.mxu0 0.0
    %3563 = vmatprep.subr.mxu0 0.0
    %3564 = vmatpush1.msra.mxu0 0.0
    %3565 = vmatprep.subr.mxu0 0.0
    %3566 = vmatpush1.msra.mxu0 0.0
    %3567 = vmatprep.subr.mxu0 0.0
    %3568 = vmatpush1.msra.mxu0 0.0
    %3569 = vmatprep.subr.mxu0 0.0
    %3570 = vmatpush1.msra.mxu0 0.0
    %3571 = vmatprep.subr.mxu0 0.0
    %3572 = vmatpush1.msra.mxu0 0.0
    %3573 = vmatprep.subr.mxu0 0.0
    %3574 = vmatpush1.msra.mxu0 0.0
    %3575 = vmatprep.subr.mxu0 0.0
    %3576 = vmatpush1.msra.mxu0 0.0
    %3577 = vmatprep.subr.mxu0 0.0
    %3578 = vmatpush1.msra.mxu0 0.0
    %3579 = vmatprep.mubr.f32.mxu0 0.0
    %3580 = vmatmul.mubr.f32.gmra.mrb[0].mxu0 %v3513
    %v3581 = vpop.f32.mrb[0].mxu0
    %v3582 = vadd.f32 %v337, %v3581
    %v3583 = vpop.f32.mrb[0].mxu0
    %3584 = vdwg.mxu0
    %v3585 = vsub.f32 %v3288, %v3436
    %v3586 = vmul.f32 %v3582, 0.14285715
    %v3587 = vadd.f32 %v3585, %v3586
    %v3589 = vsel %vm259, %v3587, 0
    %3591 = vmatprep.subr.mxu0 0.0
    %3592 = vmatpush1.msra.mxu0 %v82
    %3593 = vmatprep.subr.mxu0 0.0
    %3594 = vmatpush1.msra.mxu0 %v83
    %3595 = vmatprep.subr.mxu0 0.0
    %3596 = vmatpush1.msra.mxu0 0.0
    %3597 = vmatprep.subr.mxu0 0.0
    %3598 = vmatpush1.msra.mxu0 0.0
    %3599 = vmatprep.subr.mxu0 0.0
    %3600 = vmatpush1.msra.mxu0 0.0
    %3601 = vmatprep.subr.mxu0 0.0
    %3602 = vmatpush1.msra.mxu0 0.0
    %3603 = vmatprep.subr.mxu0 0.0
    %3604 = vmatpush1.msra.mxu0 0.0
    %3605 = vmatprep.subr.mxu0 0.0
    %3606 = vmatpush1.msra.mxu0 0.0
    %3607 = vmatprep.subr.mxu0 0.0
    %3608 = vmatpush1.msra.mxu0 0.0
    %3609 = vmatprep.subr.mxu0 0.0
    %3610 = vmatpush1.msra.mxu0 0.0
    %3611 = vmatprep.subr.mxu0 0.0
    %3612 = vmatpush1.msra.mxu0 0.0
    %3613 = vmatprep.subr.mxu0 0.0
    %3614 = vmatpush1.msra.mxu0 0.0
    %3615 = vmatprep.subr.mxu0 0.0
    %3616 = vmatpush1.msra.mxu0 0.0
    %3617 = vmatprep.subr.mxu0 0.0
    %3618 = vmatpush1.msra.mxu0 0.0
    %3619 = vmatprep.subr.mxu0 0.0
    %3620 = vmatpush1.msra.mxu0 0.0
    %3621 = vmatprep.subr.mxu0 0.0
    %3622 = vmatpush1.msra.mxu0 0.0
    %3623 = vmatprep.subr.mxu0 0.0
    %3624 = vmatpush1.msra.mxu0 0.0
    %3625 = vmatprep.subr.mxu0 0.0
    %3626 = vmatpush1.msra.mxu0 0.0
    %3627 = vmatprep.subr.mxu0 0.0
    %3628 = vmatpush1.msra.mxu0 0.0
    %3629 = vmatprep.subr.mxu0 0.0
    %3630 = vmatpush1.msra.mxu0 0.0
    %3631 = vmatprep.subr.mxu0 0.0
    %3632 = vmatpush1.msra.mxu0 0.0
    %3633 = vmatprep.subr.mxu0 0.0
    %3634 = vmatpush1.msra.mxu0 0.0
    %3635 = vmatprep.subr.mxu0 0.0
    %3636 = vmatpush1.msra.mxu0 0.0
    %3637 = vmatprep.subr.mxu0 0.0
    %3638 = vmatpush1.msra.mxu0 0.0
    %3639 = vmatprep.subr.mxu0 0.0
    %3640 = vmatpush1.msra.mxu0 0.0
    %3641 = vmatprep.subr.mxu0 0.0
    %3642 = vmatpush1.msra.mxu0 0.0
    %3643 = vmatprep.subr.mxu0 0.0
    %3644 = vmatpush1.msra.mxu0 0.0
    %3645 = vmatprep.subr.mxu0 0.0
    %3646 = vmatpush1.msra.mxu0 0.0
    %3647 = vmatprep.subr.mxu0 0.0
    %3648 = vmatpush1.msra.mxu0 0.0
    %3649 = vmatprep.subr.mxu0 0.0
    %3650 = vmatpush1.msra.mxu0 0.0
    %3651 = vmatprep.subr.mxu0 0.0
    %3652 = vmatpush1.msra.mxu0 0.0
    %3653 = vmatprep.subr.mxu0 0.0
    %3654 = vmatpush1.msra.mxu0 0.0
    %3655 = vmatprep.mubr.f32.mxu0 0.0
    %3656 = vmatmul.mubr.f32.gmra.mrb[0].mxu0 %v3589
    %v3657 = vpop.f32.mrb[0].mxu0
    %v3658 = vadd.f32 %v258, %v3657
    %v3659 = vpop.f32.mrb[0].mxu0
    %3660 = vdwg.mxu0
    %v3661 = vtanh.pop %v3658
    %v3663 = vsel %vm93, %v3661, 0
    %3665 = vmatprep.subr.mxu0 0.0
    %3666 = vmatpush1.msra.mxu0 %v84
    %3667 = vmatprep.subr.mxu0 0.0
    %3668 = vmatpush1.msra.mxu0 %v85
    %3669 = vmatprep.subr.mxu0 0.0
    %3670 = vmatpush1.msra.mxu0 %v86
    %3671 = vmatprep.subr.mxu0 0.0
    %3672 = vmatpush1.msra.mxu0 %v87
    %3673 = vmatprep.subr.mxu0 0.0
    %3674 = vmatpush1.msra.mxu0 0.0
    %3675 = vmatprep.subr.mxu0 0.0
    %3676 = vmatpush1.msra.mxu0 0.0
    %3677 = vmatprep.subr.mxu0 0.0
    %3678 = vmatpush1.msra.mxu0 0.0
    %3679 = vmatprep.subr.mxu0 0.0
    %3680 = vmatpush1.msra.mxu0 0.0
    %3681 = vmatprep.subr.mxu0 0.0
    %3682 = vmatpush1.msra.mxu0 0.0
    %3683 = vmatprep.subr.mxu0 0.0
    %3684 = vmatpush1.msra.mxu0 0.0
    %3685 = vmatprep.subr.mxu0 0.0
    %3686 = vmatpush1.msra.mxu0 0.0
    %3687 = vmatprep.subr.mxu0 0.0
    %3688 = vmatpush1.msra.mxu0 0.0
    %3689 = vmatprep.subr.mxu0 0.0
    %3690 = vmatpush1.msra.mxu0 0.0
    %3691 = vmatprep.subr.mxu0 0.0
    %3692 = vmatpush1.msra.mxu0 0.0
    %3693 = vmatprep.subr.mxu0 0.0
    %3694 = vmatpush1.msra.mxu0 0.0
    %3695 = vmatprep.subr.mxu0 0.0
    %3696 = vmatpush1.msra.mxu0 0.0
    %3697 = vmatprep.subr.mxu0 0.0
    %3698 = vmatpush1.msra.mxu0 0.0
    %3699 = vmatprep.subr.mxu0 0.0
    %3700 = vmatpush1.msra.mxu0 0.0
    %3701 = vmatprep.subr.mxu0 0.0
    %3702 = vmatpush1.msra.mxu0 0.0
    %3703 = vmatprep.subr.mxu0 0.0
    %3704 = vmatpush1.msra.mxu0 0.0
    %3705 = vmatprep.subr.mxu0 0.0
    %3706 = vmatpush1.msra.mxu0 0.0
    %3707 = vmatprep.subr.mxu0 0.0
    %3708 = vmatpush1.msra.mxu0 0.0
    %3709 = vmatprep.subr.mxu0 0.0
    %3710 = vmatpush1.msra.mxu0 0.0
    %3711 = vmatprep.subr.mxu0 0.0
    %3712 = vmatpush1.msra.mxu0 0.0
    %3713 = vmatprep.subr.mxu0 0.0
    %3714 = vmatpush1.msra.mxu0 0.0
    %3715 = vmatprep.subr.mxu0 0.0
    %3716 = vmatpush1.msra.mxu0 0.0
    %3717 = vmatprep.subr.mxu0 0.0
    %3718 = vmatpush1.msra.mxu0 0.0
    %3719 = vmatprep.subr.mxu0 0.0
    %3720 = vmatpush1.msra.mxu0 0.0
    %3721 = vmatprep.subr.mxu0 0.0
    %3722 = vmatpush1.msra.mxu0 0.0
    %3723 = vmatprep.subr.mxu0 0.0
    %3724 = vmatpush1.msra.mxu0 0.0
    %3725 = vmatprep.subr.mxu0 0.0
    %3726 = vmatpush1.msra.mxu0 0.0
    %3727 = vmatprep.subr.mxu0 0.0
    %3728 = vmatpush1.msra.mxu0 0.0
    %3729 = vmatprep.mubr.f32.mxu0 0.0
    %3730 = vmatmul.mubr.f32.gmra.mrb[0].mxu0 %v3663
    %v3731 = vpop.f32.mrb[0].mxu0
    %v3732 = vadd.f32 %v337, %v3731
    %v3733 = vpop.f32.mrb[0].mxu0
    %3734 = vdwg.mxu0
    %v3735 = vsub.f32 %v3433, %v3582
    %v3736 = vmul.f32 %v3735, 0.14285715
    %v3737 = vadd.f32 %v3288, %v3736
    %v3738 = vmul.f32 %v3732, 0.14285715
    %v3739 = vadd.f32 %v3737, %v3738
    %v3741 = vsel %vm259, %v3739, 0
    %3743 = vmatprep.subr.mxu0 0.0
    %3744 = vmatpush1.msra.mxu0 %v82
    %3745 = vmatprep.subr.mxu0 0.0
    %3746 = vmatpush1.msra.mxu0 %v83
    %3747 = vmatprep.subr.mxu0 0.0
    %3748 = vmatpush1.msra.mxu0 0.0
    %3749 = vmatprep.subr.mxu0 0.0
    %3750 = vmatpush1.msra.mxu0 0.0
    %3751 = vmatprep.subr.mxu0 0.0
    %3752 = vmatpush1.msra.mxu0 0.0
    %3753 = vmatprep.subr.mxu0 0.0
    %3754 = vmatpush1.msra.mxu0 0.0
    %3755 = vmatprep.subr.mxu0 0.0
    %3756 = vmatpush1.msra.mxu0 0.0
    %3757 = vmatprep.subr.mxu0 0.0
    %3758 = vmatpush1.msra.mxu0 0.0
    %3759 = vmatprep.subr.mxu0 0.0
    %3760 = vmatpush1.msra.mxu0 0.0
    %3761 = vmatprep.subr.mxu0 0.0
    %3762 = vmatpush1.msra.mxu0 0.0
    %3763 = vmatprep.subr.mxu0 0.0
    %3764 = vmatpush1.msra.mxu0 0.0
    %3765 = vmatprep.subr.mxu0 0.0
    %3766 = vmatpush1.msra.mxu0 0.0
    %3767 = vmatprep.subr.mxu0 0.0
    %3768 = vmatpush1.msra.mxu0 0.0
    %3769 = vmatprep.subr.mxu0 0.0
    %3770 = vmatpush1.msra.mxu0 0.0
    %3771 = vmatprep.subr.mxu0 0.0
    %3772 = vmatpush1.msra.mxu0 0.0
    %3773 = vmatprep.subr.mxu0 0.0
    %3774 = vmatpush1.msra.mxu0 0.0
    %3775 = vmatprep.subr.mxu0 0.0
    %3776 = vmatpush1.msra.mxu0 0.0
    %3777 = vmatprep.subr.mxu0 0.0
    %3778 = vmatpush1.msra.mxu0 0.0
    %3779 = vmatprep.subr.mxu0 0.0
    %3780 = vmatpush1.msra.mxu0 0.0
    %3781 = vmatprep.subr.mxu0 0.0
    %3782 = vmatpush1.msra.mxu0 0.0
    %3783 = vmatprep.subr.mxu0 0.0
    %3784 = vmatpush1.msra.mxu0 0.0
    %3785 = vmatprep.subr.mxu0 0.0
    %3786 = vmatpush1.msra.mxu0 0.0
    %3787 = vmatprep.subr.mxu0 0.0
    %3788 = vmatpush1.msra.mxu0 0.0
    %3789 = vmatprep.subr.mxu0 0.0
    %3790 = vmatpush1.msra.mxu0 0.0
    %3791 = vmatprep.subr.mxu0 0.0
    %3792 = vmatpush1.msra.mxu0 0.0
    %3793 = vmatprep.subr.mxu0 0.0
    %3794 = vmatpush1.msra.mxu0 0.0
    %3795 = vmatprep.subr.mxu0 0.0
    %3796 = vmatpush1.msra.mxu0 0.0
    %3797 = vmatprep.subr.mxu0 0.0
    %3798 = vmatpush1.msra.mxu0 0.0
    %3799 = vmatprep.subr.mxu0 0.0
    %3800 = vmatpush1.msra.mxu0 0.0
    %3801 = vmatprep.subr.mxu0 0.0
    %3802 = vmatpush1.msra.mxu0 0.0
    %3803 = vmatprep.subr.mxu0 0.0
    %3804 = vmatpush1.msra.mxu0 0.0
    %3805 = vmatprep.subr.mxu0 0.0
    %3806 = vmatpush1.msra.mxu0 0.0
    %3807 = vmatprep.mubr.f32.mxu0 0.0
    %3808 = vmatmul.mubr.f32.gmra.mrb[0].mxu0 %v3741
    %v3809 = vpop.f32.mrb[0].mxu0
    %v3810 = vadd.f32 %v258, %v3809
    %v3811 = vpop.f32.mrb[0].mxu0
    %3812 = vdwg.mxu0
    %v3813 = vtanh.pop %v3810
    %v3815 = vsel %vm93, %v3813, 0
    %3817 = vmatprep.subr.mxu0 0.0
    %3818 = vmatpush1.msra.mxu0 %v84
    %3819 = vmatprep.subr.mxu0 0.0
    %3820 = vmatpush1.msra.mxu0 %v85
    %3821 = vmatprep.subr.mxu0 0.0
    %3822 = vmatpush1.msra.mxu0 %v86
    %3823 = vmatprep.subr.mxu0 0.0
    %3824 = vmatpush1.msra.mxu0 %v87
    %3825 = vmatprep.subr.mxu0 0.0
    %3826 = vmatpush1.msra.mxu0 0.0
    %3827 = vmatprep.subr.mxu0 0.0
    %3828 = vmatpush1.msra.mxu0 0.0
    %3829 = vmatprep.subr.mxu0 0.0
    %3830 = vmatpush1.msra.mxu0 0.0
    %3831 = vmatprep.subr.mxu0 0.0
    %3832 = vmatpush1.msra.mxu0 0.0
    %3833 = vmatprep.subr.mxu0 0.0
    %3834 = vmatpush1.msra.mxu0 0.0
    %3835 = vmatprep.subr.mxu0 0.0
    %3836 = vmatpush1.msra.mxu0 0.0
    %3837 = vmatprep.subr.mxu0 0.0
    %3838 = vmatpush1.msra.mxu0 0.0
    %3839 = vmatprep.subr.mxu0 0.0
    %3840 = vmatpush1.msra.mxu0 0.0
    %3841 = vmatprep.subr.mxu0 0.0
    %3842 = vmatpush1.msra.mxu0 0.0
    %3843 = vmatprep.subr.mxu0 0.0
    %3844 = vmatpush1.msra.mxu0 0.0
    %3845 = vmatprep.subr.mxu0 0.0
    %3846 = vmatpush1.msra.mxu0 0.0
    %3847 = vmatprep.subr.mxu0 0.0
    %3848 = vmatpush1.msra.mxu0 0.0
    %3849 = vmatprep.subr.mxu0 0.0
    %3850 = vmatpush1.msra.mxu0 0.0
    %3851 = vmatprep.subr.mxu0 0.0
    %3852 = vmatpush1.msra.mxu0 0.0
    %3853 = vmatprep.subr.mxu0 0.0
    %3854 = vmatpush1.msra.mxu0 0.0
    %3855 = vmatprep.subr.mxu0 0.0
    %3856 = vmatpush1.msra.mxu0 0.0
    %3857 = vmatprep.subr.mxu0 0.0
    %3858 = vmatpush1.msra.mxu0 0.0
    %3859 = vmatprep.subr.mxu0 0.0
    %3860 = vmatpush1.msra.mxu0 0.0
    %3861 = vmatprep.subr.mxu0 0.0
    %3862 = vmatpush1.msra.mxu0 0.0
    %3863 = vmatprep.subr.mxu0 0.0
    %3864 = vmatpush1.msra.mxu0 0.0
    %3865 = vmatprep.subr.mxu0 0.0
    %3866 = vmatpush1.msra.mxu0 0.0
    %3867 = vmatprep.subr.mxu0 0.0
    %3868 = vmatpush1.msra.mxu0 0.0
    %3869 = vmatprep.subr.mxu0 0.0
    %3870 = vmatpush1.msra.mxu0 0.0
    %3871 = vmatprep.subr.mxu0 0.0
    %3872 = vmatpush1.msra.mxu0 0.0
    %3873 = vmatprep.subr.mxu0 0.0
    %3874 = vmatpush1.msra.mxu0 0.0
    %3875 = vmatprep.subr.mxu0 0.0
    %3876 = vmatpush1.msra.mxu0 0.0
    %3877 = vmatprep.subr.mxu0 0.0
    %3878 = vmatpush1.msra.mxu0 0.0
    %3879 = vmatprep.subr.mxu0 0.0
    %3880 = vmatpush1.msra.mxu0 0.0
    %3881 = vmatprep.mubr.f32.mxu0 0.0
    %3882 = vmatmul.mubr.f32.gmra.mrb[0].mxu0 %v3815
    %v3883 = vpop.f32.mrb[0].mxu0
    %v3884 = vadd.f32 %v337, %v3883
    %v3885 = vpop.f32.mrb[0].mxu0
    %3886 = vdwg.mxu0
    %v3887 = vadd.f32 %v3582, %v3732
    %v3888 = vmul.f32 %v3887, 3.0
    %v3889 = vadd.f32 %v3433, %v3888
    %v3890 = vmul.f32 %v3889, 0.017857144
    %v3891 = vadd.f32 %v3288, %v3890
    %v3892 = vmul.f32 %v3884, 0.017857144
    %v3893 = vadd.f32 %v3891, %v3892
    %v3895 = vsel %vm259, %v3893, 0
    %3897 = vmatprep.subr.mxu0 0.0
    %3898 = vmatpush1.msra.mxu0 %v82
    %3899 = vmatprep.subr.mxu0 0.0
    %3900 = vmatpush1.msra.mxu0 %v83
    %3901 = vmatprep.subr.mxu0 0.0
    %3902 = vmatpush1.msra.mxu0 0.0
    %3903 = vmatprep.subr.mxu0 0.0
    %3904 = vmatpush1.msra.mxu0 0.0
    %3905 = vmatprep.subr.mxu0 0.0
    %3906 = vmatpush1.msra.mxu0 0.0
    %3907 = vmatprep.subr.mxu0 0.0
    %3908 = vmatpush1.msra.mxu0 0.0
    %3909 = vmatprep.subr.mxu0 0.0
    %3910 = vmatpush1.msra.mxu0 0.0
    %3911 = vmatprep.subr.mxu0 0.0
    %3912 = vmatpush1.msra.mxu0 0.0
    %3913 = vmatprep.subr.mxu0 0.0
    %3914 = vmatpush1.msra.mxu0 0.0
    %3915 = vmatprep.subr.mxu0 0.0
    %3916 = vmatpush1.msra.mxu0 0.0
    %3917 = vmatprep.subr.mxu0 0.0
    %3918 = vmatpush1.msra.mxu0 0.0
    %3919 = vmatprep.subr.mxu0 0.0
    %3920 = vmatpush1.msra.mxu0 0.0
    %3921 = vmatprep.subr.mxu0 0.0
    %3922 = vmatpush1.msra.mxu0 0.0
    %3923 = vmatprep.subr.mxu0 0.0
    %3924 = vmatpush1.msra.mxu0 0.0
    %3925 = vmatprep.subr.mxu0 0.0
    %3926 = vmatpush1.msra.mxu0 0.0
    %3927 = vmatprep.subr.mxu0 0.0
    %3928 = vmatpush1.msra.mxu0 0.0
    %3929 = vmatprep.subr.mxu0 0.0
    %3930 = vmatpush1.msra.mxu0 0.0
    %3931 = vmatprep.subr.mxu0 0.0
    %3932 = vmatpush1.msra.mxu0 0.0
    %3933 = vmatprep.subr.mxu0 0.0
    %3934 = vmatpush1.msra.mxu0 0.0
    %3935 = vmatprep.subr.mxu0 0.0
    %3936 = vmatpush1.msra.mxu0 0.0
    %3937 = vmatprep.subr.mxu0 0.0
    %3938 = vmatpush1.msra.mxu0 0.0
    %3939 = vmatprep.subr.mxu0 0.0
    %3940 = vmatpush1.msra.mxu0 0.0
    %3941 = vmatprep.subr.mxu0 0.0
    %3942 = vmatpush1.msra.mxu0 0.0
    %3943 = vmatprep.subr.mxu0 0.0
    %3944 = vmatpush1.msra.mxu0 0.0
    %3945 = vmatprep.subr.mxu0 0.0
    %3946 = vmatpush1.msra.mxu0 0.0
    %3947 = vmatprep.subr.mxu0 0.0
    %3948 = vmatpush1.msra.mxu0 0.0
    %3949 = vmatprep.subr.mxu0 0.0
    %3950 = vmatpush1.msra.mxu0 0.0
    %3951 = vmatprep.subr.mxu0 0.0
    %3952 = vmatpush1.msra.mxu0 0.0
    %3953 = vmatprep.subr.mxu0 0.0
    %3954 = vmatpush1.msra.mxu0 0.0
    %3955 = vmatprep.subr.mxu0 0.0
    %3956 = vmatpush1.msra.mxu0 0.0
    %3957 = vmatprep.subr.mxu0 0.0
    %3958 = vmatpush1.msra.mxu0 0.0
    %3959 = vmatprep.subr.mxu0 0.0
    %3960 = vmatpush1.msra.mxu0 0.0
    %3961 = vmatprep.mubr.f32.mxu0 0.0
    %3962 = vmatmul.mubr.f32.gmra.mrb[0].mxu0 %v3895
    %v3963 = vpop.f32.mrb[0].mxu0
    %v3964 = vadd.f32 %v258, %v3963
    %v3965 = vpop.f32.mrb[0].mxu0
    %3966 = vdwg.mxu0
    %v3967 = vtanh.pop %v3964
    %v3969 = vsel %vm93, %v3967, 0
    %3971 = vmatprep.subr.mxu0 0.0
    %3972 = vmatpush1.msra.mxu0 %v84
    %3973 = vmatprep.subr.mxu0 0.0
    %3974 = vmatpush1.msra.mxu0 %v85
    %3975 = vmatprep.subr.mxu0 0.0
    %3976 = vmatpush1.msra.mxu0 %v86
    %3977 = vmatprep.subr.mxu0 0.0
    %3978 = vmatpush1.msra.mxu0 %v87
    %3979 = vmatprep.subr.mxu0 0.0
    %3980 = vmatpush1.msra.mxu0 0.0
    %3981 = vmatprep.subr.mxu0 0.0
    %3982 = vmatpush1.msra.mxu0 0.0
    %3983 = vmatprep.subr.mxu0 0.0
    %3984 = vmatpush1.msra.mxu0 0.0
    %3985 = vmatprep.subr.mxu0 0.0
    %3986 = vmatpush1.msra.mxu0 0.0
    %3987 = vmatprep.subr.mxu0 0.0
    %3988 = vmatpush1.msra.mxu0 0.0
    %3989 = vmatprep.subr.mxu0 0.0
    %3990 = vmatpush1.msra.mxu0 0.0
    %3991 = vmatprep.subr.mxu0 0.0
    %3992 = vmatpush1.msra.mxu0 0.0
    %3993 = vmatprep.subr.mxu0 0.0
    %3994 = vmatpush1.msra.mxu0 0.0
    %3995 = vmatprep.subr.mxu0 0.0
    %3996 = vmatpush1.msra.mxu0 0.0
    %3997 = vmatprep.subr.mxu0 0.0
    %3998 = vmatpush1.msra.mxu0 0.0
    %3999 = vmatprep.subr.mxu0 0.0
    %4000 = vmatpush1.msra.mxu0 0.0
    %4001 = vmatprep.subr.mxu0 0.0
    %4002 = vmatpush1.msra.mxu0 0.0
    %4003 = vmatprep.subr.mxu0 0.0
    %4004 = vmatpush1.msra.mxu0 0.0
    %4005 = vmatprep.subr.mxu0 0.0
    %4006 = vmatpush1.msra.mxu0 0.0
    %4007 = vmatprep.subr.mxu0 0.0
    %4008 = vmatpush1.msra.mxu0 0.0
    %4009 = vmatprep.subr.mxu0 0.0
    %4010 = vmatpush1.msra.mxu0 0.0
    %4011 = vmatprep.subr.mxu0 0.0
    %4012 = vmatpush1.msra.mxu0 0.0
    %4013 = vmatprep.subr.mxu0 0.0
    %4014 = vmatpush1.msra.mxu0 0.0
    %4015 = vmatprep.subr.mxu0 0.0
    %4016 = vmatpush1.msra.mxu0 0.0
    %4017 = vmatprep.subr.mxu0 0.0
    %4018 = vmatpush1.msra.mxu0 0.0
    %4019 = vmatprep.subr.mxu0 0.0
    %4020 = vmatpush1.msra.mxu0 0.0
    %4021 = vmatprep.subr.mxu0 0.0
    %4022 = vmatpush1.msra.mxu0 0.0
    %4023 = vmatprep.subr.mxu0 0.0
    %4024 = vmatpush1.msra.mxu0 0.0
    %4025 = vmatprep.subr.mxu0 0.0
    %4026 = vmatpush1.msra.mxu0 0.0
    %4027 = vmatprep.subr.mxu0 0.0
    %4028 = vmatpush1.msra.mxu0 0.0
    %4029 = vmatprep.subr.mxu0 0.0
    %4030 = vmatpush1.msra.mxu0 0.0
    %4031 = vmatprep.subr.mxu0 0.0
    %4032 = vmatpush1.msra.mxu0 0.0
    %4033 = vmatprep.subr.mxu0 0.0
    %4034 = vmatpush1.msra.mxu0 0.0
    %4035 = vmatprep.mubr.f32.mxu0 0.0
    %4036 = vmatmul.mubr.f32.gmra.mrb[0].mxu0 %v3969
    %v4037 = vpop.f32.mrb[0].mxu0
    %v4038 = vadd.f32 %v337, %v4037
    %v4039 = vpop.f32.mrb[0].mxu0
    %4040 = vdwg.mxu0
    %v4041 = vmul.f32 %v4038, 0.04761905
    %v4042 = vadd.f32 %v3893, %v4041
    %v4044 = vsel %vm259, %v4042, 0
    %4046 = vmatprep.subr.mxu0 0.0
    %4047 = vmatpush1.msra.mxu0 %v82
    %4048 = vmatprep.subr.mxu0 0.0
    %4049 = vmatpush1.msra.mxu0 %v83
    %4050 = vmatprep.subr.mxu0 0.0
    %4051 = vmatpush1.msra.mxu0 0.0
    %4052 = vmatprep.subr.mxu0 0.0
    %4053 = vmatpush1.msra.mxu0 0.0
    %4054 = vmatprep.subr.mxu0 0.0
    %4055 = vmatpush1.msra.mxu0 0.0
    %4056 = vmatprep.subr.mxu0 0.0
    %4057 = vmatpush1.msra.mxu0 0.0
    %4058 = vmatprep.subr.mxu0 0.0
    %4059 = vmatpush1.msra.mxu0 0.0
    %4060 = vmatprep.subr.mxu0 0.0
    %4061 = vmatpush1.msra.mxu0 0.0
    %4062 = vmatprep.subr.mxu0 0.0
    %4063 = vmatpush1.msra.mxu0 0.0
    %4064 = vmatprep.subr.mxu0 0.0
    %4065 = vmatpush1.msra.mxu0 0.0
    %4066 = vmatprep.subr.mxu0 0.0
    %4067 = vmatpush1.msra.mxu0 0.0
    %4068 = vmatprep.subr.mxu0 0.0
    %4069 = vmatpush1.msra.mxu0 0.0
    %4070 = vmatprep.subr.mxu0 0.0
    %4071 = vmatpush1.msra.mxu0 0.0
    %4072 = vmatprep.subr.mxu0 0.0
    %4073 = vmatpush1.msra.mxu0 0.0
    %4074 = vmatprep.subr.mxu0 0.0
    %4075 = vmatpush1.msra.mxu0 0.0
    %4076 = vmatprep.subr.mxu0 0.0
    %4077 = vmatpush1.msra.mxu0 0.0
    %4078 = vmatprep.subr.mxu0 0.0
    %4079 = vmatpush1.msra.mxu0 0.0
    %4080 = vmatprep.subr.mxu0 0.0
    %4081 = vmatpush1.msra.mxu0 0.0
    %4082 = vmatprep.subr.mxu0 0.0
    %4083 = vmatpush1.msra.mxu0 0.0
    %4084 = vmatprep.subr.mxu0 0.0
    %4085 = vmatpush1.msra.mxu0 0.0
    %4086 = vmatprep.subr.mxu0 0.0
    %4087 = vmatpush1.msra.mxu0 0.0
    %4088 = vmatprep.subr.mxu0 0.0
    %4089 = vmatpush1.msra.mxu0 0.0
    %4090 = vmatprep.subr.mxu0 0.0
    %4091 = vmatpush1.msra.mxu0 0.0
    %4092 = vmatprep.subr.mxu0 0.0
    %4093 = vmatpush1.msra.mxu0 0.0
    %4094 = vmatprep.subr.mxu0 0.0
    %4095 = vmatpush1.msra.mxu0 0.0
    %4096 = vmatprep.subr.mxu0 0.0
    %4097 = vmatpush1.msra.mxu0 0.0
    %4098 = vmatprep.subr.mxu0 0.0
    %4099 = vmatpush1.msra.mxu0 0.0
    %4100 = vmatprep.subr.mxu0 0.0
    %4101 = vmatpush1.msra.mxu0 0.0
    %4102 = vmatprep.subr.mxu0 0.0
    %4103 = vmatpush1.msra.mxu0 0.0
    %4104 = vmatprep.subr.mxu0 0.0
    %4105 = vmatpush1.msra.mxu0 0.0
    %4106 = vmatprep.subr.mxu0 0.0
    %4107 = vmatpush1.msra.mxu0 0.0
    %4108 = vmatprep.subr.mxu0 0.0
    %4109 = vmatpush1.msra.mxu0 0.0
    %4110 = vmatprep.mubr.f32.mxu0 0.0
    %4111 = vmatmul.mubr.f32.gmra.mrb[0].mxu0 %v4044
    %v4112 = vpop.f32.mrb[0].mxu0
    %v4113 = vadd.f32 %v258, %v4112
    %v4114 = vpop.f32.mrb[0].mxu0
    %4115 = vdwg.mxu0
    %v4116 = vtanh.pop %v4113
    %v4118 = vsel %vm93, %v4116, 0
    %4120 = vmatprep.subr.mxu0 0.0
    %4121 = vmatpush1.msra.mxu0 %v84
    %4122 = vmatprep.subr.mxu0 0.0
    %4123 = vmatpush1.msra.mxu0 %v85
    %4124 = vmatprep.subr.mxu0 0.0
    %4125 = vmatpush1.msra.mxu0 %v86
    %4126 = vmatprep.subr.mxu0 0.0
    %4127 = vmatpush1.msra.mxu0 %v87
    %4128 = vmatprep.subr.mxu0 0.0
    %4129 = vmatpush1.msra.mxu0 0.0
    %4130 = vmatprep.subr.mxu0 0.0
    %4131 = vmatpush1.msra.mxu0 0.0
    %4132 = vmatprep.subr.mxu0 0.0
    %4133 = vmatpush1.msra.mxu0 0.0
    %4134 = vmatprep.subr.mxu0 0.0
    %4135 = vmatpush1.msra.mxu0 0.0
    %4136 = vmatprep.subr.mxu0 0.0
    %4137 = vmatpush1.msra.mxu0 0.0
    %4138 = vmatprep.subr.mxu0 0.0
    %4139 = vmatpush1.msra.mxu0 0.0
    %4140 = vmatprep.subr.mxu0 0.0
    %4141 = vmatpush1.msra.mxu0 0.0
    %4142 = vmatprep.subr.mxu0 0.0
    %4143 = vmatpush1.msra.mxu0 0.0
    %4144 = vmatprep.subr.mxu0 0.0
    %4145 = vmatpush1.msra.mxu0 0.0
    %4146 = vmatprep.subr.mxu0 0.0
    %4147 = vmatpush1.msra.mxu0 0.0
    %4148 = vmatprep.subr.mxu0 0.0
    %4149 = vmatpush1.msra.mxu0 0.0
    %4150 = vmatprep.subr.mxu0 0.0
    %4151 = vmatpush1.msra.mxu0 0.0
    %4152 = vmatprep.subr.mxu0 0.0
    %4153 = vmatpush1.msra.mxu0 0.0
    %4154 = vmatprep.subr.mxu0 0.0
    %4155 = vmatpush1.msra.mxu0 0.0
    %4156 = vmatprep.subr.mxu0 0.0
    %4157 = vmatpush1.msra.mxu0 0.0
    %4158 = vmatprep.subr.mxu0 0.0
    %4159 = vmatpush1.msra.mxu0 0.0
    %4160 = vmatprep.subr.mxu0 0.0
    %4161 = vmatpush1.msra.mxu0 0.0
    %4162 = vmatprep.subr.mxu0 0.0
    %4163 = vmatpush1.msra.mxu0 0.0
    %4164 = vmatprep.subr.mxu0 0.0
    %4165 = vmatpush1.msra.mxu0 0.0
    %4166 = vmatprep.subr.mxu0 0.0
    %4167 = vmatpush1.msra.mxu0 0.0
    %4168 = vmatprep.subr.mxu0 0.0
    %4169 = vmatpush1.msra.mxu0 0.0
    %4170 = vmatprep.subr.mxu0 0.0
    %4171 = vmatpush1.msra.mxu0 0.0
    %4172 = vmatprep.subr.mxu0 0.0
    %4173 = vmatpush1.msra.mxu0 0.0
    %4174 = vmatprep.subr.mxu0 0.0
    %4175 = vmatpush1.msra.mxu0 0.0
    %4176 = vmatprep.subr.mxu0 0.0
    %4177 = vmatpush1.msra.mxu0 0.0
    %4178 = vmatprep.subr.mxu0 0.0
    %4179 = vmatpush1.msra.mxu0 0.0
    %4180 = vmatprep.subr.mxu0 0.0
    %4181 = vmatpush1.msra.mxu0 0.0
    %4182 = vmatprep.subr.mxu0 0.0
    %4183 = vmatpush1.msra.mxu0 0.0
    %4184 = vmatprep.mubr.f32.mxu0 0.0
    %4185 = vmatmul.mubr.f32.gmra.mrb[0].mxu0 %v4118
    %v4186 = vpop.f32.mrb[0].mxu0
    %v4187 = vadd.f32 %v337, %v4186
    %v4188 = vpop.f32.mrb[0].mxu0
    %4189 = vdwg.mxu0
    %v4190 = vsub.f32 %v3893, %v4041
    %v4191 = vmul.f32 %v4187, 0.14285715
    %v4192 = vadd.f32 %v4190, %v4191
    %v4194 = vsel %vm259, %v4192, 0
    %4196 = vmatprep.subr.mxu0 0.0
    %4197 = vmatpush1.msra.mxu0 %v82
    %4198 = vmatprep.subr.mxu0 0.0
    %4199 = vmatpush1.msra.mxu0 %v83
    %4200 = vmatprep.subr.mxu0 0.0
    %4201 = vmatpush1.msra.mxu0 0.0
    %4202 = vmatprep.subr.mxu0 0.0
    %4203 = vmatpush1.msra.mxu0 0.0
    %4204 = vmatprep.subr.mxu0 0.0
    %4205 = vmatpush1.msra.mxu0 0.0
    %4206 = vmatprep.subr.mxu0 0.0
    %4207 = vmatpush1.msra.mxu0 0.0
    %4208 = vmatprep.subr.mxu0 0.0
    %4209 = vmatpush1.msra.mxu0 0.0
    %4210 = vmatprep.subr.mxu0 0.0
    %4211 = vmatpush1.msra.mxu0 0.0
    %4212 = vmatprep.subr.mxu0 0.0
    %4213 = vmatpush1.msra.mxu0 0.0
    %4214 = vmatprep.subr.mxu0 0.0
    %4215 = vmatpush1.msra.mxu0 0.0
    %4216 = vmatprep.subr.mxu0 0.0
    %4217 = vmatpush1.msra.mxu0 0.0
    %4218 = vmatprep.subr.mxu0 0.0
    %4219 = vmatpush1.msra.mxu0 0.0
    %4220 = vmatprep.subr.mxu0 0.0
    %4221 = vmatpush1.msra.mxu0 0.0
    %4222 = vmatprep.subr.mxu0 0.0
    %4223 = vmatpush1.msra.mxu0 0.0
    %4224 = vmatprep.subr.mxu0 0.0
    %4225 = vmatpush1.msra.mxu0 0.0
    %4226 = vmatprep.subr.mxu0 0.0
    %4227 = vmatpush1.msra.mxu0 0.0
    %4228 = vmatprep.subr.mxu0 0.0
    %4229 = vmatpush1.msra.mxu0 0.0
    %4230 = vmatprep.subr.mxu0 0.0
    %4231 = vmatpush1.msra.mxu0 0.0
    %4232 = vmatprep.subr.mxu0 0.0
    %4233 = vmatpush1.msra.mxu0 0.0
    %4234 = vmatprep.subr.mxu0 0.0
    %4235 = vmatpush1.msra.mxu0 0.0
    %4236 = vmatprep.subr.mxu0 0.0
    %4237 = vmatpush1.msra.mxu0 0.0
    %4238 = vmatprep.subr.mxu0 0.0
    %4239 = vmatpush1.msra.mxu0 0.0
    %4240 = vmatprep.subr.mxu0 0.0
    %4241 = vmatpush1.msra.mxu0 0.0
    %4242 = vmatprep.subr.mxu0 0.0
    %4243 = vmatpush1.msra.mxu0 0.0
    %4244 = vmatprep.subr.mxu0 0.0
    %4245 = vmatpush1.msra.mxu0 0.0
    %4246 = vmatprep.subr.mxu0 0.0
    %4247 = vmatpush1.msra.mxu0 0.0
    %4248 = vmatprep.subr.mxu0 0.0
    %4249 = vmatpush1.msra.mxu0 0.0
    %4250 = vmatprep.subr.mxu0 0.0
    %4251 = vmatpush1.msra.mxu0 0.0
    %4252 = vmatprep.subr.mxu0 0.0
    %4253 = vmatpush1.msra.mxu0 0.0
    %4254 = vmatprep.subr.mxu0 0.0
    %4255 = vmatpush1.msra.mxu0 0.0
    %4256 = vmatprep.subr.mxu0 0.0
    %4257 = vmatpush1.msra.mxu0 0.0
    %4258 = vmatprep.subr.mxu0 0.0
    %4259 = vmatpush1.msra.mxu0 0.0
    %4260 = vmatprep.mubr.f32.mxu0 0.0
    %4261 = vmatmul.mubr.f32.gmra.mrb[0].mxu0 %v4194
    %v4262 = vpop.f32.mrb[0].mxu0
    %v4263 = vadd.f32 %v258, %v4262
    %v4264 = vpop.f32.mrb[0].mxu0
    %4265 = vdwg.mxu0
    %v4266 = vtanh.pop %v4263
    %v4268 = vsel %vm93, %v4266, 0
    %4270 = vmatprep.subr.mxu0 0.0
    %4271 = vmatpush1.msra.mxu0 %v84
    %4272 = vmatprep.subr.mxu0 0.0
    %4273 = vmatpush1.msra.mxu0 %v85
    %4274 = vmatprep.subr.mxu0 0.0
    %4275 = vmatpush1.msra.mxu0 %v86
    %4276 = vmatprep.subr.mxu0 0.0
    %4277 = vmatpush1.msra.mxu0 %v87
    %4278 = vmatprep.subr.mxu0 0.0
    %4279 = vmatpush1.msra.mxu0 0.0
    %4280 = vmatprep.subr.mxu0 0.0
    %4281 = vmatpush1.msra.mxu0 0.0
    %4282 = vmatprep.subr.mxu0 0.0
    %4283 = vmatpush1.msra.mxu0 0.0
    %4284 = vmatprep.subr.mxu0 0.0
    %4285 = vmatpush1.msra.mxu0 0.0
    %4286 = vmatprep.subr.mxu0 0.0
    %4287 = vmatpush1.msra.mxu0 0.0
    %4288 = vmatprep.subr.mxu0 0.0
    %4289 = vmatpush1.msra.mxu0 0.0
    %4290 = vmatprep.subr.mxu0 0.0
    %4291 = vmatpush1.msra.mxu0 0.0
    %4292 = vmatprep.subr.mxu0 0.0
    %4293 = vmatpush1.msra.mxu0 0.0
    %4294 = vmatprep.subr.mxu0 0.0
    %4295 = vmatpush1.msra.mxu0 0.0
    %4296 = vmatprep.subr.mxu0 0.0
    %4297 = vmatpush1.msra.mxu0 0.0
    %4298 = vmatprep.subr.mxu0 0.0
    %4299 = vmatpush1.msra.mxu0 0.0
    %4300 = vmatprep.subr.mxu0 0.0
    %4301 = vmatpush1.msra.mxu0 0.0
    %4302 = vmatprep.subr.mxu0 0.0
    %4303 = vmatpush1.msra.mxu0 0.0
    %4304 = vmatprep.subr.mxu0 0.0
    %4305 = vmatpush1.msra.mxu0 0.0
    %4306 = vmatprep.subr.mxu0 0.0
    %4307 = vmatpush1.msra.mxu0 0.0
    %4308 = vmatprep.subr.mxu0 0.0
    %4309 = vmatpush1.msra.mxu0 0.0
    %4310 = vmatprep.subr.mxu0 0.0
    %4311 = vmatpush1.msra.mxu0 0.0
    %4312 = vmatprep.subr.mxu0 0.0
    %4313 = vmatpush1.msra.mxu0 0.0
    %4314 = vmatprep.subr.mxu0 0.0
    %4315 = vmatpush1.msra.mxu0 0.0
    %4316 = vmatprep.subr.mxu0 0.0
    %4317 = vmatpush1.msra.mxu0 0.0
    %4318 = vmatprep.subr.mxu0 0.0
    %4319 = vmatpush1.msra.mxu0 0.0
    %4320 = vmatprep.subr.mxu0 0.0
    %4321 = vmatpush1.msra.mxu0 0.0
    %4322 = vmatprep.subr.mxu0 0.0
    %4323 = vmatpush1.msra.mxu0 0.0
    %4324 = vmatprep.subr.mxu0 0.0
    %4325 = vmatpush1.msra.mxu0 0.0
    %4326 = vmatprep.subr.mxu0 0.0
    %4327 = vmatpush1.msra.mxu0 0.0
    %4328 = vmatprep.subr.mxu0 0.0
    %4329 = vmatpush1.msra.mxu0 0.0
    %4330 = vmatprep.subr.mxu0 0.0
    %4331 = vmatpush1.msra.mxu0 0.0
    %4332 = vmatprep.subr.mxu0 0.0
    %4333 = vmatpush1.msra.mxu0 0.0
    %4334 = vmatprep.mubr.f32.mxu0 0.0
    %4335 = vmatmul.mubr.f32.gmra.mrb[0].mxu0 %v4268
    %v4336 = vpop.f32.mrb[0].mxu0
    %v4337 = vadd.f32 %v337, %v4336
    %v4338 = vpop.f32.mrb[0].mxu0
    %4339 = vdwg.mxu0
    %v4340 = vsub.f32 %v4038, %v4187
    %v4341 = vmul.f32 %v4340, 0.14285715
    %v4342 = vadd.f32 %v3893, %v4341
    %v4343 = vmul.f32 %v4337, 0.14285715
    %v4344 = vadd.f32 %v4342, %v4343
    %v4346 = vsel %vm259, %v4344, 0
    %4348 = vmatprep.subr.mxu0 0.0
    %4349 = vmatpush1.msra.mxu0 %v82
    %4350 = vmatprep.subr.mxu0 0.0
    %4351 = vmatpush1.msra.mxu0 %v83
    %4352 = vmatprep.subr.mxu0 0.0
    %4353 = vmatpush1.msra.mxu0 0.0
    %4354 = vmatprep.subr.mxu0 0.0
    %4355 = vmatpush1.msra.mxu0 0.0
    %4356 = vmatprep.subr.mxu0 0.0
    %4357 = vmatpush1.msra.mxu0 0.0
    %4358 = vmatprep.subr.mxu0 0.0
    %4359 = vmatpush1.msra.mxu0 0.0
    %4360 = vmatprep.subr.mxu0 0.0
    %4361 = vmatpush1.msra.mxu0 0.0
    %4362 = vmatprep.subr.mxu0 0.0
    %4363 = vmatpush1.msra.mxu0 0.0
    %4364 = vmatprep.subr.mxu0 0.0
    %4365 = vmatpush1.msra.mxu0 0.0
    %4366 = vmatprep.subr.mxu0 0.0
    %4367 = vmatpush1.msra.mxu0 0.0
    %4368 = vmatprep.subr.mxu0 0.0
    %4369 = vmatpush1.msra.mxu0 0.0
    %4370 = vmatprep.subr.mxu0 0.0
    %4371 = vmatpush1.msra.mxu0 0.0
    %4372 = vmatprep.subr.mxu0 0.0
    %4373 = vmatpush1.msra.mxu0 0.0
    %4374 = vmatprep.subr.mxu0 0.0
    %4375 = vmatpush1.msra.mxu0 0.0
    %4376 = vmatprep.subr.mxu0 0.0
    %4377 = vmatpush1.msra.mxu0 0.0
    %4378 = vmatprep.subr.mxu0 0.0
    %4379 = vmatpush1.msra.mxu0 0.0
    %4380 = vmatprep.subr.mxu0 0.0
    %4381 = vmatpush1.msra.mxu0 0.0
    %4382 = vmatprep.subr.mxu0 0.0
    %4383 = vmatpush1.msra.mxu0 0.0
    %4384 = vmatprep.subr.mxu0 0.0
    %4385 = vmatpush1.msra.mxu0 0.0
    %4386 = vmatprep.subr.mxu0 0.0
    %4387 = vmatpush1.msra.mxu0 0.0
    %4388 = vmatprep.subr.mxu0 0.0
    %4389 = vmatpush1.msra.mxu0 0.0
    %4390 = vmatprep.subr.mxu0 0.0
    %4391 = vmatpush1.msra.mxu0 0.0
    %4392 = vmatprep.subr.mxu0 0.0
    %4393 = vmatpush1.msra.mxu0 0.0
    %4394 = vmatprep.subr.mxu0 0.0
    %4395 = vmatpush1.msra.mxu0 0.0
    %4396 = vmatprep.subr.mxu0 0.0
    %4397 = vmatpush1.msra.mxu0 0.0
    %4398 = vmatprep.subr.mxu0 0.0
    %4399 = vmatpush1.msra.mxu0 0.0
    %4400 = vmatprep.subr.mxu0 0.0
    %4401 = vmatpush1.msra.mxu0 0.0
    %4402 = vmatprep.subr.mxu0 0.0
    %4403 = vmatpush1.msra.mxu0 0.0
    %4404 = vmatprep.subr.mxu0 0.0
    %4405 = vmatpush1.msra.mxu0 0.0
    %4406 = vmatprep.subr.mxu0 0.0
    %4407 = vmatpush1.msra.mxu0 0.0
    %4408 = vmatprep.subr.mxu0 0.0
    %4409 = vmatpush1.msra.mxu0 0.0
    %4410 = vmatprep.subr.mxu0 0.0
    %4411 = vmatpush1.msra.mxu0 0.0
    %4412 = vmatprep.mubr.f32.mxu0 0.0
    %4413 = vmatmul.mubr.f32.gmra.mrb[0].mxu0 %v4346
    %v4414 = vpop.f32.mrb[0].mxu0
    %v4415 = vadd.f32 %v258, %v4414
    %v4416 = vpop.f32.mrb[0].mxu0
    %4417 = vdwg.mxu0
    %v4418 = vtanh.pop %v4415
    %v4420 = vsel %vm93, %v4418, 0
    %4422 = vmatprep.subr.mxu0 0.0
    %4423 = vmatpush1.msra.mxu0 %v84
    %4424 = vmatprep.subr.mxu0 0.0
    %4425 = vmatpush1.msra.mxu0 %v85
    %4426 = vmatprep.subr.mxu0 0.0
    %4427 = vmatpush1.msra.mxu0 %v86
    %4428 = vmatprep.subr.mxu0 0.0
    %4429 = vmatpush1.msra.mxu0 %v87
    %4430 = vmatprep.subr.mxu0 0.0
    %4431 = vmatpush1.msra.mxu0 0.0
    %4432 = vmatprep.subr.mxu0 0.0
    %4433 = vmatpush1.msra.mxu0 0.0
    %4434 = vmatprep.subr.mxu0 0.0
    %4435 = vmatpush1.msra.mxu0 0.0
    %4436 = vmatprep.subr.mxu0 0.0
    %4437 = vmatpush1.msra.mxu0 0.0
    %4438 = vmatprep.subr.mxu0 0.0
    %4439 = vmatpush1.msra.mxu0 0.0
    %4440 = vmatprep.subr.mxu0 0.0
    %4441 = vmatpush1.msra.mxu0 0.0
    %4442 = vmatprep.subr.mxu0 0.0
    %4443 = vmatpush1.msra.mxu0 0.0
    %4444 = vmatprep.subr.mxu0 0.0
    %4445 = vmatpush1.msra.mxu0 0.0
    %4446 = vmatprep.subr.mxu0 0.0
    %4447 = vmatpush1.msra.mxu0 0.0
    %4448 = vmatprep.subr.mxu0 0.0
    %4449 = vmatpush1.msra.mxu0 0.0
    %4450 = vmatprep.subr.mxu0 0.0
    %4451 = vmatpush1.msra.mxu0 0.0
    %4452 = vmatprep.subr.mxu0 0.0
    %4453 = vmatpush1.msra.mxu0 0.0
    %4454 = vmatprep.subr.mxu0 0.0
    %4455 = vmatpush1.msra.mxu0 0.0
    %4456 = vmatprep.subr.mxu0 0.0
    %4457 = vmatpush1.msra.mxu0 0.0
    %4458 = vmatprep.subr.mxu0 0.0
    %4459 = vmatpush1.msra.mxu0 0.0
    %4460 = vmatprep.subr.mxu0 0.0
    %4461 = vmatpush1.msra.mxu0 0.0
    %4462 = vmatprep.subr.mxu0 0.0
    %4463 = vmatpush1.msra.mxu0 0.0
    %4464 = vmatprep.subr.mxu0 0.0
    %4465 = vmatpush1.msra.mxu0 0.0
    %4466 = vmatprep.subr.mxu0 0.0
    %4467 = vmatpush1.msra.mxu0 0.0
    %4468 = vmatprep.subr.mxu0 0.0
    %4469 = vmatpush1.msra.mxu0 0.0
    %4470 = vmatprep.subr.mxu0 0.0
    %4471 = vmatpush1.msra.mxu0 0.0
    %4472 = vmatprep.subr.mxu0 0.0
    %4473 = vmatpush1.msra.mxu0 0.0
    %4474 = vmatprep.subr.mxu0 0.0
    %4475 = vmatpush1.msra.mxu0 0.0
    %4476 = vmatprep.subr.mxu0 0.0
    %4477 = vmatpush1.msra.mxu0 0.0
    %4478 = vmatprep.subr.mxu0 0.0
    %4479 = vmatpush1.msra.mxu0 0.0
    %4480 = vmatprep.subr.mxu0 0.0
    %4481 = vmatpush1.msra.mxu0 0.0
    %4482 = vmatprep.subr.mxu0 0.0
    %4483 = vmatpush1.msra.mxu0 0.0
    %4484 = vmatprep.subr.mxu0 0.0
    %4485 = vmatpush1.msra.mxu0 0.0
    %4486 = vmatprep.mubr.f32.mxu0 0.0
    %4487 = vmatmul.mubr.f32.gmra.mrb[0].mxu0 %v4420
    %v4488 = vpop.f32.mrb[0].mxu0
    %v4489 = vadd.f32 %v337, %v4488
    %v4490 = vpop.f32.mrb[0].mxu0
    %4491 = vdwg.mxu0
    %v4492 = vadd.f32 %v4187, %v4337
    %v4493 = vmul.f32 %v4492, 3.0
    %v4494 = vadd.f32 %v4038, %v4493
    %v4495 = vmul.f32 %v4494, 0.017857144
    %v4496 = vadd.f32 %v3893, %v4495
    %v4497 = vmul.f32 %v4489, 0.017857144
    %v4498 = vadd.f32 %v4496, %v4497
    %4499 = vrot.lane.b32.xlu0 %v868, 16
    %v4500 = vpop.permute.xlu0 %4499
    %4502 = vrot.lane.b32.xlu0 %v1473, 32
    %v4503 = vpop.permute.xlu0 %4502
    %4505 = vrot.lane.b32.xlu0 %v2078, 48
    %v4506 = vpop.permute.xlu0 %4505
    %4508 = vrot.lane.b32.xlu0 %v2683, 64
    %v4509 = vpop.permute.xlu0 %4508
    %4511 = vrot.lane.b32.xlu0 %v3288, 80
    %v4512 = vpop.permute.xlu0 %4511
    %4514 = vrot.lane.b32.xlu0 %v3893, 96
    %v4515 = vpop.permute.xlu0 %4514
    %4518 = vrot.lane.b32.xlu0 %v4498, 112
    %v4519 = vpop.permute.xlu0 %4518
    %v4521 = vsel %vm259, %v254, %v4500
    %v4522 = vsel %vm93, %v4521, %v4503
    %vm4523 = vcmask 392192
    %v4524 = vsel %vm4523, %v4522, %v4506
    %vm4525 = vcmask 523264
    %v4526 = vsel %vm4525, %v4524, %v4509
    %vm4527 = vcmask 654336
    %v4528 = vsel %vm4527, %v4526, %v4512
    %vm4529 = vcmask 785408
    %v4530 = vsel %vm4529, %v4528, %v4515
    %vm4531 = vcmask 916480
    %v4532 = vsel %vm4531, %v4530, %v4519
    %v4533 = vld [vmem:[#allocation8] sm:$0xff]
    %v4534 = vld [vmem:[#allocation8 + $0x8] sm:$0xff]
    %v4535 = vld [vmem:[#allocation8 + $0x10] sm:$0xff]
    %v4536 = vld [vmem:[#allocation8 + $0x18] sm:$0xff]
    %v4537 = vld [vmem:[#allocation8 + $0x20] sm:$0xff]
    %v4538 = vld [vmem:[#allocation8 + $0x28] sm:$0xff]
    %v4539 = vld [vmem:[#allocation8 + $0x30] sm:$0xff]
    %v4540 = vld [vmem:[#allocation8 + $0x38] sm:$0xff]
    %v4541 = vld [vmem:[#allocation8 + $0x40] sm:$0xff]
    %v4542 = vld [vmem:[#allocation8 + $0x48] sm:$0xff]
    %v4543 = vld [vmem:[#allocation8 + $0x50] sm:$0xff]
    %v4544 = vld [vmem:[#allocation8 + $0x58] sm:$0xff]
    %v4545 = vld [vmem:[#allocation8 + $0x60] sm:$0xff]
    %v4546 = vld [vmem:[#allocation8 + $0x68] sm:$0xff]
    %v4547 = vld [vmem:[#allocation8 + $0x70] sm:$0xff]
    %v4548 = vld [vmem:[#allocation8 + $0x78] sm:$0xff]
    %v4549 = vld [vmem:[#allocation8 + $0x80] sm:$0xff]
    %v4550 = vld [vmem:[#allocation8 + $0x88] sm:$0xff]
    %v4551 = vld [vmem:[#allocation8 + $0x90] sm:$0xff]
    %v4552 = vld [vmem:[#allocation8 + $0x98] sm:$0xff]
    %v4553 = vld [vmem:[#allocation8 + $0xa0] sm:$0xff]
    %v4554 = vld [vmem:[#allocation8 + $0xa8] sm:$0xff]
    %v4555 = vld [vmem:[#allocation8 + $0xb0] sm:$0xff]
    %v4556 = vld [vmem:[#allocation8 + $0xb8] sm:$0xff]
    %v4557 = vld [vmem:[#allocation8 + $0xc0] sm:$0xff]
    %v4558 = vld [vmem:[#allocation8 + $0xc8] sm:$0xff]
    %v4559 = vld [vmem:[#allocation8 + $0xd0] sm:$0xff]
    %v4560 = vld [vmem:[#allocation8 + $0xd8] sm:$0xff]
    %v4561 = vld [vmem:[#allocation8 + $0xe0] sm:$0xff]
    %v4562 = vld [vmem:[#allocation8 + $0xe8] sm:$0xff]
    %v4563 = vld [vmem:[#allocation8 + $0xf0] sm:$0xff]
    %v4564 = vld [vmem:[#allocation8 + $0xf8] sm:$0xff]
    %v4565 = vld [vmem:[#allocation8 + $0x100] sm:$0xff]
    %v4566 = vld [vmem:[#allocation8 + $0x108] sm:$0xff]
    %v4567 = vld [vmem:[#allocation8 + $0x110] sm:$0xff]
    %v4568 = vld [vmem:[#allocation8 + $0x118] sm:$0xff]
    %v4569 = vld [vmem:[#allocation8 + $0x120] sm:$0xff]
    %v4570 = vld [vmem:[#allocation8 + $0x128] sm:$0xff]
    %v4571 = vld [vmem:[#allocation8 + $0x130] sm:$0xff]
    %v4572 = vld [vmem:[#allocation8 + $0x138] sm:$0xff]
    %v4573 = vld [vmem:[#allocation8 + $0x140] sm:$0xff]
    %v4574 = vld [vmem:[#allocation8 + $0x148] sm:$0xff]
    %v4575 = vld [vmem:[#allocation8 + $0x150] sm:$0xff]
    %v4576 = vld [vmem:[#allocation8 + $0x158] sm:$0xff]
    %v4577 = vld [vmem:[#allocation8 + $0x160] sm:$0xff]
    %v4578 = vld [vmem:[#allocation8 + $0x168] sm:$0xff]
    %v4579 = vld [vmem:[#allocation8 + $0x170] sm:$0xff]
    %v4580 = vld [vmem:[#allocation8 + $0x178] sm:$0xff]
    %v4581 = vld [vmem:[#allocation8 + $0x180] sm:$0xff]
    %v4582 = vld [vmem:[#allocation8 + $0x188] sm:$0xff]
    %v4583 = vld [vmem:[#allocation8 + $0x190] sm:$0xff]
    %v4584 = vld [vmem:[#allocation8 + $0x198] sm:$0xff]
    %v4585 = vld [vmem:[#allocation8 + $0x1a0] sm:$0xff]
    %v4586 = vld [vmem:[#allocation8 + $0x1a8] sm:$0xff]
    %v4587 = vld [vmem:[#allocation8 + $0x1b0] sm:$0xff]
    %v4588 = vld [vmem:[#allocation8 + $0x1b8] sm:$0xff]
    %v4589 = vld [vmem:[#allocation8 + $0x1c0] sm:$0xff]
    %v4590 = vld [vmem:[#allocation8 + $0x1c8] sm:$0xff]
    %v4591 = vld [vmem:[#allocation8 + $0x1d0] sm:$0xff]
    %v4592 = vld [vmem:[#allocation8 + $0x1d8] sm:$0xff]
    %v4593 = vld [vmem:[#allocation8 + $0x1e0] sm:$0xff]
    %v4594 = vld [vmem:[#allocation8 + $0x1e8] sm:$0xff]
    %v4595 = vld [vmem:[#allocation8 + $0x1f0] sm:$0xff]
    %v4596 = vld [vmem:[#allocation8 + $0x1f8] sm:$0xff]
    %v4597 = vld [vmem:[#allocation8 + $0x200] sm:$0xff]
    %v4598 = vld [vmem:[#allocation8 + $0x208] sm:$0xff]
    %v4599 = vld [vmem:[#allocation8 + $0x210] sm:$0xff]
    %v4600 = vld [vmem:[#allocation8 + $0x218] sm:$0xff]
    %v4601 = vld [vmem:[#allocation8 + $0x220] sm:$0xff]
    %v4602 = vld [vmem:[#allocation8 + $0x228] sm:$0xff]
    %v4603 = vld [vmem:[#allocation8 + $0x230] sm:$0xff]
    %v4604 = vld [vmem:[#allocation8 + $0x238] sm:$0xff]
    %v4605 = vld [vmem:[#allocation8 + $0x240] sm:$0xff]
    %v4606 = vld [vmem:[#allocation8 + $0x248] sm:$0xff]
    %v4607 = vld [vmem:[#allocation8 + $0x250] sm:$0xff]
    %v4608 = vld [vmem:[#allocation8 + $0x258] sm:$0xff]
    %v4609 = vld [vmem:[#allocation8 + $0x260] sm:$0xff]
    %v4610 = vld [vmem:[#allocation8 + $0x268] sm:$0xff]
    %v4611 = vld [vmem:[#allocation8 + $0x270] sm:$0xff]
    %v4612 = vld [vmem:[#allocation8 + $0x278] sm:$0xff]
    %v4613 = vld [vmem:[#allocation8 + $0x280] sm:$0xff]
    %v4614 = vld [vmem:[#allocation8 + $0x288] sm:$0xff]
    %v4615 = vld [vmem:[#allocation8 + $0x290] sm:$0xff]
    %v4616 = vld [vmem:[#allocation8 + $0x298] sm:$0xff]
    %v4617 = vld [vmem:[#allocation8 + $0x2a0] sm:$0xff]
    %v4618 = vld [vmem:[#allocation8 + $0x2a8] sm:$0xff]
    %v4619 = vld [vmem:[#allocation8 + $0x2b0] sm:$0xff]
    %v4620 = vld [vmem:[#allocation8 + $0x2b8] sm:$0xff]
    %v4621 = vld [vmem:[#allocation8 + $0x2c0] sm:$0xff]
    %v4622 = vld [vmem:[#allocation8 + $0x2c8] sm:$0xff]
    %v4623 = vld [vmem:[#allocation8 + $0x2d0] sm:$0xff]
    %v4624 = vld [vmem:[#allocation8 + $0x2d8] sm:$0xff]
    %v4625 = vld [vmem:[#allocation8 + $0x2e0] sm:$0xff]
    %v4626 = vld [vmem:[#allocation8 + $0x2e8] sm:$0xff]
    %v4627 = vld [vmem:[#allocation8 + $0x2f0] sm:$0xff]
    %v4628 = vld [vmem:[#allocation8 + $0x2f8] sm:$0xff]
    %s4629 = scalar_lea.vmem [#allocation8], 768
    %v4630 = vld [vmem:[%s4629] ss:$8 sm:$0x3]
    %s4631 = scalar_lea.vmem [#allocation8], 784
    %v4632 = vld [vmem:[%s4631] ss:$8 sm:$0x3]
    %v4634 = vlaneseq
    %v4635 = vshrl.u32 %v4634, 7
    %v4636 = vsub.s32 0, %v4635
    %v4637 = vrot.slane %v4630, %v4636
    %v4638 = vlaneseq
    %v4639 = vshrl.u32 %v4638, 7
    %v4640 = vsub.s32 1, %v4639
    %v4641 = vrot.slane %v4630, %v4640
    %4644 = vmatprep.subr.mxu0 %v4534
    %4645 = vmatpush1.msra.mxu0 %v4533
    %4646 = vmatprep.subr.mxu0 %v4536
    %4647 = vmatpush1.msra.mxu0 %v4535
    %4648 = vmatprep.subr.mxu0 %v4538
    %4649 = vmatpush1.msra.mxu0 %v4537
    %4650 = vmatprep.subr.mxu0 %v4540
    %4651 = vmatpush1.msra.mxu0 %v4539
    %4652 = vmatprep.subr.mxu0 %v4542
    %4653 = vmatpush1.msra.mxu0 %v4541
    %4654 = vmatprep.subr.mxu0 %v4544
    %4655 = vmatpush1.msra.mxu0 %v4543
    %4656 = vmatprep.subr.mxu0 %v4546
    %4657 = vmatpush1.msra.mxu0 %v4545
    %4658 = vmatprep.subr.mxu0 %v4548
    %4659 = vmatpush1.msra.mxu0 %v4547
    %4660 = vmatprep.subr.mxu0 %v4550
    %4661 = vmatpush1.msra.mxu0 %v4549
    %4662 = vmatprep.subr.mxu0 %v4552
    %4663 = vmatpush1.msra.mxu0 %v4551
    %4664 = vmatprep.subr.mxu0 %v4554
    %4665 = vmatpush1.msra.mxu0 %v4553
    %4666 = vmatprep.subr.mxu0 %v4556
    %4667 = vmatpush1.msra.mxu0 %v4555
    %4668 = vmatprep.subr.mxu0 %v4558
    %4669 = vmatpush1.msra.mxu0 %v4557
    %4670 = vmatprep.subr.mxu0 %v4560
    %4671 = vmatpush1.msra.mxu0 %v4559
    %4672 = vmatprep.subr.mxu0 %v4562
    %4673 = vmatpush1.msra.mxu0 %v4561
    %4674 = vmatprep.subr.mxu0 %v4564
    %4675 = vmatpush1.msra.mxu0 %v4563
    %4676 = vmatprep.subr.mxu0 0.0
    %4677 = vmatpush1.msra.mxu0 0.0
    %4678 = vmatprep.subr.mxu0 0.0
    %4679 = vmatpush1.msra.mxu0 0.0
    %4680 = vmatprep.subr.mxu0 0.0
    %4681 = vmatpush1.msra.mxu0 0.0
    %4682 = vmatprep.subr.mxu0 0.0
    %4683 = vmatpush1.msra.mxu0 0.0
    %4684 = vmatprep.subr.mxu0 0.0
    %4685 = vmatpush1.msra.mxu0 0.0
    %4686 = vmatprep.subr.mxu0 0.0
    %4687 = vmatpush1.msra.mxu0 0.0
    %4688 = vmatprep.subr.mxu0 0.0
    %4689 = vmatpush1.msra.mxu0 0.0
    %4690 = vmatprep.subr.mxu0 0.0
    %4691 = vmatpush1.msra.mxu0 0.0
    %4692 = vmatprep.subr.mxu0 0.0
    %4693 = vmatpush1.msra.mxu0 0.0
    %4694 = vmatprep.subr.mxu0 0.0
    %4695 = vmatpush1.msra.mxu0 0.0
    %4696 = vmatprep.subr.mxu0 0.0
    %4697 = vmatpush1.msra.mxu0 0.0
    %4698 = vmatprep.subr.mxu0 0.0
    %4699 = vmatpush1.msra.mxu0 0.0
    %4700 = vmatprep.subr.mxu0 0.0
    %4701 = vmatpush1.msra.mxu0 0.0
    %4702 = vmatprep.subr.mxu0 0.0
    %4703 = vmatpush1.msra.mxu0 0.0
    %4704 = vmatprep.subr.mxu0 0.0
    %4705 = vmatpush1.msra.mxu0 0.0
    %4706 = vmatprep.subr.mxu0 0.0
    %4707 = vmatpush1.msra.mxu0 0.0
    %4708 = vmatprep.mubr.f32.mxu0 0.0
    %4709 = vmatmul.mubr.f32.gmra.mrb[0].mxu0 %v4532
    %v4710 = vpop.f32.mrb[0].mxu0
    %v4711 = vadd.f32 %v4637, %v4710
    %v4712 = vpop.f32.mrb[0].mxu0
    %v4713 = vadd.f32 %v4641, %v4712
    %4714 = vdwg.mxu0
    %v4715 = vtanh.pop %v4711
    %v4716 = vtanh.pop %v4713
    %v4718 = vlaneseq
    %v4719 = vshrl.u32 %v4718, 7
    %v4720 = vsub.s32 0, %v4719
    %v4721 = vrot.slane %v4632, %v4720
    %v4722 = vlaneseq
    %v4723 = vshrl.u32 %v4722, 7
    %v4724 = vsub.s32 1, %v4723
    %v4725 = vrot.slane %v4632, %v4724
    %4728 = vmatprep.subr.mxu0 %v4566
    %4729 = vmatpush1.msra.mxu0 %v4565
    %4730 = vmatprep.subr.mxu0 %v4568
    %4731 = vmatpush1.msra.mxu0 %v4567
    %4732 = vmatprep.subr.mxu0 %v4570
    %4733 = vmatpush1.msra.mxu0 %v4569
    %4734 = vmatprep.subr.mxu0 %v4572
    %4735 = vmatpush1.msra.mxu0 %v4571
    %4736 = vmatprep.subr.mxu0 %v4574
    %4737 = vmatpush1.msra.mxu0 %v4573
    %4738 = vmatprep.subr.mxu0 %v4576
    %4739 = vmatpush1.msra.mxu0 %v4575
    %4740 = vmatprep.subr.mxu0 %v4578
    %4741 = vmatpush1.msra.mxu0 %v4577
    %4742 = vmatprep.subr.mxu0 %v4580
    %4743 = vmatpush1.msra.mxu0 %v4579
    %4744 = vmatprep.subr.mxu0 %v4582
    %4745 = vmatpush1.msra.mxu0 %v4581
    %4746 = vmatprep.subr.mxu0 %v4584
    %4747 = vmatpush1.msra.mxu0 %v4583
    %4748 = vmatprep.subr.mxu0 %v4586
    %4749 = vmatpush1.msra.mxu0 %v4585
    %4750 = vmatprep.subr.mxu0 %v4588
    %4751 = vmatpush1.msra.mxu0 %v4587
    %4752 = vmatprep.subr.mxu0 %v4590
    %4753 = vmatpush1.msra.mxu0 %v4589
    %4754 = vmatprep.subr.mxu0 %v4592
    %4755 = vmatpush1.msra.mxu0 %v4591
    %4756 = vmatprep.subr.mxu0 %v4594
    %4757 = vmatpush1.msra.mxu0 %v4593
    %4758 = vmatprep.subr.mxu0 %v4596
    %4759 = vmatpush1.msra.mxu0 %v4595
    %4760 = vmatprep.subr.mxu0 %v4598
    %4761 = vmatpush1.msra.mxu0 %v4597
    %4762 = vmatprep.subr.mxu0 %v4600
    %4763 = vmatpush1.msra.mxu0 %v4599
    %4764 = vmatprep.subr.mxu0 %v4602
    %4765 = vmatpush1.msra.mxu0 %v4601
    %4766 = vmatprep.subr.mxu0 %v4604
    %4767 = vmatpush1.msra.mxu0 %v4603
    %4768 = vmatprep.subr.mxu0 %v4606
    %4769 = vmatpush1.msra.mxu0 %v4605
    %4770 = vmatprep.subr.mxu0 %v4608
    %4771 = vmatpush1.msra.mxu0 %v4607
    %4772 = vmatprep.subr.mxu0 %v4610
    %4773 = vmatpush1.msra.mxu0 %v4609
    %4774 = vmatprep.subr.mxu0 %v4612
    %4775 = vmatpush1.msra.mxu0 %v4611
    %4776 = vmatprep.subr.mxu0 %v4614
    %4777 = vmatpush1.msra.mxu0 %v4613
    %4778 = vmatprep.subr.mxu0 %v4616
    %4779 = vmatpush1.msra.mxu0 %v4615
    %4780 = vmatprep.subr.mxu0 %v4618
    %4781 = vmatpush1.msra.mxu0 %v4617
    %4782 = vmatprep.subr.mxu0 %v4620
    %4783 = vmatpush1.msra.mxu0 %v4619
    %4784 = vmatprep.subr.mxu0 %v4622
    %4785 = vmatpush1.msra.mxu0 %v4621
    %4786 = vmatprep.subr.mxu0 %v4624
    %4787 = vmatpush1.msra.mxu0 %v4623
    %4788 = vmatprep.subr.mxu0 %v4626
    %4789 = vmatpush1.msra.mxu0 %v4625
    %4790 = vmatprep.subr.mxu0 %v4628
    %4791 = vmatpush1.msra.mxu0 %v4627
    %4792 = vmatprep.mubr.f32.mxu0 %v4716
    %4793 = vmatmul.mubr.f32.gmra.mrb[0].mxu0 %v4715
    %v4794 = vpop.f32.mrb[0].mxu0
    %v4795 = vadd.f32 %v4721, %v4794
    %v4796 = vpop.f32.mrb[0].mxu0
    %v4797 = vadd.f32 %v4725, %v4796
    %4798 = vdwg.mxu0
    %v4799 = vxor.u32 %v4795, 2147483648
    %v4800 = vxor.u32 %v4797, 2147483648
    %v4801 = vmul.f32 %v4799, 1.442695
    %v4802 = vpow.pop %v4801
    %v4803 = vmul.f32 %v4800, 1.442695
    %v4804 = vpow.pop %v4803
    %v4805 = vadd.f32 %v4802, 1.0
    %v4806 = vadd.f32 %v4804, 1.0
    %v4807 = vrcp.pop %v4805
    %v4808 = vmul.f32 1.0, %v4807
    %v4809 = vrcp.pop %v4806
    %v4810 = vmul.f32 1.0, %v4809
    %4811 = vst [vmem:[#allocation11] sm:$0xff] %v4808
    %4812 = vst [vmem:[#allocation11 + $0x8] sm:$0xff] %v4810
    // Predicated region
    $region34: #{tpu_custom_call.1} parent=1 // pred_check
      _
    $region35: #{tpu_custom_call.1} parent=1 // pred_check_branch
      %4814 = sbr.rel (0) target = $region37
    $region36: #{tpu_custom_call.1} parent=1 // pred_region
      %s4816 = ssub.s32 128, 128
      %4817 = vsyncadd [#allocation4], %s4816
      %s4819 = sshll.u32 [#allocation10], 4
      %s4820 = int_to_ptr.vmem [resolvable:$true] %s4819
      %4822 = dma.vmem_to_hbm [thread:$0]  %s4820, 128, %s4, [#allocation4]
    $region37: #{tpu_custom_call.1} parent=1 // pred_fallthru
      _
    // Predicated region
    $region38: #{tpu_custom_call.1} parent=1 // pred_check
      _
    $region39: #{tpu_custom_call.1} parent=1 // pred_check_branch
      %4824 = sbr.rel (0) target = $region41
    $region40: #{tpu_custom_call.1} parent=1 // pred_region
      %s4826 = ssub.s32 256, 256
      %4827 = vsyncadd [#allocation12], %s4826
      %s4829 = sshll.u32 [#allocation11], 4
      %s4830 = int_to_ptr.vmem [resolvable:$true] %s4829
      %4832 = dma.vmem_to_hbm [thread:$0]  %s4830, 256, %s5, [#allocation12]
    $region41: #{tpu_custom_call.1} parent=1 // pred_fallthru
      _
    // Predicated region
    $region42: #{tpu_custom_call.1} parent=1 // pred_check
      _
    $region43: #{tpu_custom_call.1} parent=1 // pred_check_branch
      %4834 = sbr.rel (0) target = $region45
    $region44: #{tpu_custom_call.1} parent=1 // pred_region
      %4835 = dma.done [#allocation4], 128
    $region45: #{tpu_custom_call.1} parent=1 // pred_fallthru
      _
    // Predicated region
    $region46: #{tpu_custom_call.1} parent=1 // pred_check
      _
    $region47: #{tpu_custom_call.1} parent=1 // pred_check_branch
      %4837 = sbr.rel (0) target = $region49
    $region48: #{tpu_custom_call.1} parent=1 // pred_region
      %4838 = dma.done [#allocation12], 256
    $region49: #{tpu_custom_call.1} parent=1 // pred_fallthru
      _
    %4839 = vsyncpa [#allocation3], 1
    %4840 = vsyncpa [#allocation6], 1
    %4841 = vsyncpa [#allocation9], 1
    %4842 = vsyncpa [#allocation4], 1
    %4843 = vsyncpa [#allocation12], 1

</llo_original>
